<compile_context>
chip_gen: v7x
topology: tpu7x:2x2x1
jax: 0.10.0
libtpu: 0.0.40
codegen_flags: <defaults>
</compile_context>

<pallas_src>
import numpy as np
import jax
import jax.numpy as jnp
from jax.experimental import pallas as pl
from jax.experimental.pallas import tpu as pltpu

CONV_T_K = 24      # conv_time kernel (24, 1)
N_CH = 40          # conv channel count
N_ELEC = 64        # conv_spat kernel (1, 64)
POOL_K = 80        # AvgPool2d kernel (80, 1)
POOL_S = 20        # AvgPool2d stride (20, 1)
HIDDEN = 10        # LSTM hidden size
N_CLASSES = 2
BN_EPS = 1e-5
LANE = 128         # lane-dense (padded) classifier output width


# ----------------------------------------------------------------------------------
# Fused kernel: one deep-contraction matmul (conv+BN+pool+LSTM-input-proj) ->
#               LSTM recurrence -> classifier.   One grid step = Bn batch rows.
# ----------------------------------------------------------------------------------
def _fused_kernel(xw_ref, wbig_ref, b_ref, whh_ref, wc_ref, bc_ref, o_ref):
    """Per-grid-step refs:
       xw_ref  : (S*Bn, LW*64) bf16  im2col windows (row = t*Bn + b, b local to the block)
       wbig_ref: (LW*64, 4*Hd) bf16  fused conv_time∘conv_spat∘BN∘AvgPool∘W_ih weight
       b_ref   : (1, 4*Hd)     f32   b_ih + b_hh + (conv bias + BN shift)·W_ih^T
       whh_ref : (Hd, 4*Hd)    f32   recurrent weight (right-multiply layout)
       wc_ref  : (Hd, 128)     f32   classifier weight padded to 128 lanes
       bc_ref  : (1, 128)      f32
       o_ref   : (Bn, 128)     f32   logits (cols >= N_CLASSES are padding)
    """
    SBn = xw_ref.shape[0]
    Bn = o_ref.shape[0]
    S = SBn // Bn
    Hd = whh_ref.shape[0]

    # Whole feature extractor + LSTM input projection = ONE MXU matmul, f32 accumulation
    # kept inside the MXU (bf16 inputs).  Shape (S*Bn, 6592) @ (6592, 4*Hd).
    gates_x = jnp.dot(xw_ref[...], wbig_ref[...],
                      preferred_element_type=jnp.float32) + b_ref[...]      # (S*Bn, 4*Hd)

    # LSTM recurrence (gate order i,f,g,o; zero init; last hidden).  Only the tiny
    # h @ W_hh (contraction = 10) remains on the serial critical path.
    whh = whh_ref[...]
    h = jnp.zeros((Bn, Hd), jnp.float32)
    c = jnp.zeros((Bn, Hd), jnp.float32)
    for t in range(S):                     # S is small & static (e.g. 5)
        gates = gates_x[t * Bn:(t + 1) * Bn, :] + jnp.dot(
            h, whh, preferred_element_type=jnp.float32)
        i = jax.nn.sigmoid(gates[:, 0:Hd])
        f = jax.nn.sigmoid(gates[:, Hd:2 * Hd])
        g = jnp.tanh(gates[:, 2 * Hd:3 * Hd])
        o = jax.nn.sigmoid(gates[:, 3 * Hd:4 * Hd])
        c = f * c + i * g
        h = o * jnp.tanh(c)

    # Dropout2d(p=0.5): identity at inference.
    # Linear(10, 2), padded to 128 output lanes -> unmasked lane-dense store.
    o_ref[...] = jnp.dot(h, wc_ref[...], preferred_element_type=jnp.float32) + bc_ref[...]


# ----------------------------------------------------------------------------------
# Wrapper: algebraic weight folding, window extraction, one pallas_call over the batch
# ----------------------------------------------------------------------------------
def conv_lstm_forward(x_nchw, p, *, batch_block=8):
    N, Cin, H, W = x_nchw.shape
    assert Cin == 1 and W == N_ELEC
    C1, K = p['w1'].shape
    C2 = p['w2'].shape[0]
    Tp = H - K + 1                              # conv_time output length
    S = (Tp - POOL_K) // POOL_S + 1             # pooled sequence length
    assert S >= 1
    LW = POOL_K + K - 1                         # fused pool+conv window length (103)
    KW = LW * W                                 # deep contraction size (6592)
    Hd = HIDDEN
    G = 4 * Hd

    Bn = batch_block
    assert Bn % 8 == 0, "batch_block must be a multiple of 8 (TPU sublane)"
    n_steps = -(-N // Bn)                       # cdiv; pad batch to a multiple of Bn
    Np = n_steps * Bn

    # ---- one-time algebraic folding (f32, runs once under jit) ----
    scale = p['bn_gamma'] / jnp.sqrt(p['bn_var'] + BN_EPS)                  # (C2,)
    # fused conv+BN weight: We[k, w, c2] = sum_c1 w1[c1,k] * w2[c2,c1,w] * scale[c2]
    we = jnp.einsum('ck,dcw->kwd', p['w1'], p['w2']) * scale                # (K, W, C2)
    # AvgPool(80, stride 20) folded over the conv-time tap axis:
    #   Weff[tau] = (1/80) * sum_{k : 0 <= tau-k <= 79} We[k],  tau in [0, LW)
    sel = np.zeros((LW, K), np.float32)
    for tau in range(LW):
        k0, k1 = max(0, tau - POOL_K + 1), min(K - 1, tau)
        sel[tau, k0:k1 + 1] = 1.0 / POOL_K
    weff = jnp.einsum('tk,kwd->twd', jnp.asarray(sel), we)                  # (LW, W, C2)
    # LSTM input projection folded in as well: Wbig[(tau,w), g] = sum_c2 Weff * W_ih^T
    wih_t = p['w_ih'].T.astype(jnp.float32)                                 # (C2, G)
    wbig = jnp.einsum('twd,dg->twg', weff, wih_t).reshape(KW, G).astype(jnp.bfloat16)
    # conv bias + BN shift commute with the pool; push them through W_ih^T into the bias.
    bias2 = jnp.einsum('dcw,c->d', p['w2'], p['b1'])                        # (C2,)
    shift = bias2 * scale + p['bn_beta'] - p['bn_mean'] * scale             # (C2,)
    b_total = (p['b_ih'] + p['b_hh'] + shift @ wih_t).astype(jnp.float32).reshape(1, G)

    whh_t = p['w_hh'].T.astype(jnp.float32)                                 # (Hd, G)
    # classifier padded to 128 lanes (lane-dense output stores); wrapper slices [:, :2]
    wc_pad = jnp.zeros((Hd, LANE), jnp.float32).at[:, :N_CLASSES].set(p['wc'].T)
    bc_pad = jnp.zeros((1, LANE), jnp.float32).at[0, :N_CLASSES].set(p['bc'])

    # ---- input prep: bf16 cast (halves DMA), batch pad, one-time window extraction ----
    x = x_nchw[:, 0, :, :].astype(jnp.bfloat16)                             # (N, H, 64)
    if Np != N:
        x = jnp.concatenate([x, jnp.zeros((Np - N, H, W), jnp.bfloat16)], axis=0)
    # im2col over the S pooled positions: window s covers time rows [20s, 20s+103)
    xw = jnp.stack(
        [x[:, POOL_S * s: POOL_S * s + LW, :].reshape(Np, KW) for s in range(S)],
        axis=1)                                                             # (Np, S, KW)
    # row order inside each grid block: (time-major, then batch) so the kernel's per-step
    # slices gates_x[t*Bn:(t+1)*Bn] are sublane-aligned.
    xw = xw.reshape(n_steps, Bn, S, KW).transpose(0, 2, 1, 3).reshape(n_steps * S * Bn, KW)

    out = pl.pallas_call(
        _fused_kernel,
        out_shape=jax.ShapeDtypeStruct((Np, LANE), jnp.float32),
        grid=(n_steps,),
        in_specs=[
            pl.BlockSpec((S * Bn, KW), lambda n: (n, 0)),        # im2col windows (bf16)
            pl.BlockSpec((KW, G), lambda n: (0, 0)),             # fused big weight (bf16)
            pl.BlockSpec((1, G), lambda n: (0, 0)),              # fused gate bias
            pl.BlockSpec((Hd, G), lambda n: (0, 0)),             # W_hh^T
            pl.BlockSpec((Hd, LANE), lambda n: (0, 0)),          # padded classifier weight
            pl.BlockSpec((1, LANE), lambda n: (0, 0)),           # padded classifier bias
        ],
        out_specs=pl.BlockSpec((Bn, LANE), lambda n: (n, 0)),
        compiler_params=pltpu.CompilerParams(
            dimension_semantics=("parallel",),
            vmem_limit_bytes=32 * 1024 * 1024),                  # explicit; ~2.2 MB/step used
    )(xw, wbig, b_total, whh_t, wc_pad, bc_pad)

    return out[:N, :N_CLASSES]


# ----------------------------------------------------------------------------------
# Pure-JAX reference (unfused, mirrors the PyTorch ops) for the correctness check
# ----------------------------------------------------------------------------------
def reference_forward(x_nchw, p):
    hi = jax.lax.Precision.HIGHEST
    x = x_nchw[:, 0]                                     # (N, H, 64)
    N, H, W = x.shape
    C1, K = p['w1'].shape
    Tp = H - K + 1
    pat = jnp.stack([x[:, k:k + Tp, :] for k in range(K)], axis=1)          # (N, K, Tp, W)
    h1 = jnp.einsum('ck,nktw->nctw', p['w1'], pat, precision=hi)
    h1 = h1 + p['b1'][None, :, None, None]
    h2 = jnp.einsum('dcw,nctw->ntd', p['w2'], h1, precision=hi)             # (N, Tp, 40)
    h2 = (h2 - p['bn_mean']) / jnp.sqrt(p['bn_var'] + BN_EPS) * p['bn_gamma'] + p['bn_beta']
    S = (Tp - POOL_K) // POOL_S + 1
    pooled = jnp.stack(
        [jnp.mean(h2[:, POOL_S * s:POOL_S * s + POOL_K, :], axis=1) for s in range(S)],
        axis=1)                                                              # (N, S, 40)
    h = jnp.zeros((N, HIDDEN), jnp.float32)
    c = jnp.zeros((N, HIDDEN), jnp.float32)
    for t in range(S):
        g = (jnp.dot(pooled[:, t], p['w_ih'].T, precision=hi)
             + jnp.dot(h, p['w_hh'].T, precision=hi) + p['b_ih'] + p['b_hh'])
        i = jax.nn.sigmoid(g[:, :HIDDEN])
        f = jax.nn.sigmoid(g[:, HIDDEN:2 * HIDDEN])
        gg = jnp.tanh(g[:, 2 * HIDDEN:3 * HIDDEN])
        o = jax.nn.sigmoid(g[:, 3 * HIDDEN:])
        c = f * c + i * gg
        h = o * jnp.tanh(c)
    return jnp.dot(h, p['wc'].T, precision=hi) + p['bc']


if __name__ == "__main__":
    # Input (N, 1, 183, 64): time=183 -> conv_time length 160 -> avgpool seq length 5.
    N, H = 16, 183            # Bn=8 -> 2 grid steps (even: both v7x TensorCores get work)
    key = jax.random.PRNGKey(0)
    keys = jax.random.split(key, 16)

    def rnd(k, shape, scale=0.1):
        return (scale * jax.random.normal(k, shape)).astype(jnp.float32)

    params = {
        'w1': rnd(keys[0], (N_CH, CONV_T_K)),            # conv_time.weight (40,1,24,1) squeezed
        'b1': rnd(keys[1], (N_CH,)),                     # conv_time.bias
        'w2': rnd(keys[2], (N_CH, N_CH, N_ELEC)),        # conv_spat.weight (40,40,1,64) squeezed
        'bn_gamma': (1.0 + rnd(keys[3], (N_CH,))).astype(jnp.float32),
        'bn_beta': rnd(keys[4], (N_CH,)),
        'bn_mean': rnd(keys[5], (N_CH,)),
        'bn_var': jax.random.uniform(keys[6], (N_CH,), minval=0.5, maxval=1.5,
                                     dtype=jnp.float32),
        'w_ih': rnd(keys[7], (4 * HIDDEN, N_CH)),        # LSTM input weights
        'w_hh': rnd(keys[8], (4 * HIDDEN, HIDDEN)),      # LSTM hidden weights
        'b_ih': rnd(keys[9], (4 * HIDDEN,)),
        'b_hh': rnd(keys[10], (4 * HIDDEN,)),
        'wc': rnd(keys[11], (N_CLASSES, HIDDEN)),        # classifier Linear(10, 2)
        'bc': rnd(keys[12], (N_CLASSES,)),
    }
    x = jax.random.normal(keys[13], (N, 1, H, N_ELEC), dtype=jnp.float32)

    fwd = jax.jit(conv_lstm_forward)
    out = jax.block_until_ready(fwd(x, params))
    ref = reference_forward(x, params)
    np.testing.assert_allclose(np.asarray(out), np.asarray(ref), rtol=1e-2, atol=1e-2)
    assert out.shape == (N, N_CLASSES)

    # Also exercise the batch-padding path (N not a multiple of batch_block).
    x_small = x[:3]
    out_small = jax.block_until_ready(fwd(x_small, params))
    np.testing.assert_allclose(np.asarray(out_small), np.asarray(ref)[:3],
                               rtol=1e-2, atol=1e-2)
    assert out_small.shape == (3, N_CLASSES)

    print("KERNEL_OK")
</pallas_src>

<mosaic_0001>
module attributes {stable_mosaic.version = 11 : i64} {
  func.func @_fused_kernel(%arg0: i32, %arg1: memref<40x6592xbf16, #tpu.memory_space<vmem>>, %arg2: memref<6592x40xbf16, #tpu.memory_space<vmem>>, %arg3: memref<1x40xf32, #tpu.memory_space<vmem>>, %arg4: memref<10x40xf32, #tpu.memory_space<vmem>>, %arg5: memref<10x128xf32, #tpu.memory_space<vmem>>, %arg6: memref<1x128xf32, #tpu.memory_space<vmem>>, %arg7: memref<8x128xf32, #tpu.memory_space<vmem>>) attributes {dimension_semantics = [#tpu.dimension_semantics<parallel>], iteration_bounds = array<i64: 2>, scalar_prefetch = 0 : i64, scratch_operands = 0 : i64, tpu.core_type = #tpu.core_type<tc>, window_params = [{transform_indices = @transform_0, window_bounds = array<i64: 40, 6592>}, {pipeline_mode = #tpu.pipeline_mode<synchronous>, transform_indices = @transform_1, window_bounds = array<i64: 6592, 40>}, {pipeline_mode = #tpu.pipeline_mode<synchronous>, transform_indices = @transform_2, window_bounds = array<i64: 1, 40>}, {pipeline_mode = #tpu.pipeline_mode<synchronous>, transform_indices = @transform_3, window_bounds = array<i64: 10, 40>}, {pipeline_mode = #tpu.pipeline_mode<synchronous>, transform_indices = @transform_4, window_bounds = array<i64: 10, 128>}, {pipeline_mode = #tpu.pipeline_mode<synchronous>, transform_indices = @transform_5, window_bounds = array<i64: 1, 128>}, {transform_indices = @transform_6, window_bounds = array<i64: 8, 128>}]} {
    %c0 = arith.constant 0 : index
    %c0_0 = arith.constant 0 : index
    %0 = vector.load %arg1[%c0, %c0_0] : memref<40x6592xbf16, #tpu.memory_space<vmem>>, vector<40x6592xbf16>
    %c0_1 = arith.constant 0 : index
    %c0_2 = arith.constant 0 : index
    %1 = vector.load %arg2[%c0_1, %c0_2] : memref<6592x40xbf16, #tpu.memory_space<vmem>>, vector<6592x40xbf16>
    %cst = arith.constant dense<0.000000e+00> : vector<40x40xf32>
    %2 = tpu.matmul %0, %1, %cst {dimension_numbers = #tpu.dot_dimension_numbers<[1], [0], [0], [1], [0, 0, 1, 1], [], []>} : vector<40x6592xbf16>, vector<6592x40xbf16>, vector<40x40xf32> -> vector<40x40xf32>
    %c0_3 = arith.constant 0 : index
    %c0_4 = arith.constant 0 : index
    %3 = vector.load %arg3[%c0_3, %c0_4] : memref<1x40xf32, #tpu.memory_space<vmem>>, vector<1x40xf32>
    %4 = vector.broadcast %3 : vector<1x40xf32> to vector<40x40xf32>
    %5 = arith.addf %2, %4 : vector<40x40xf32>
    %c0_5 = arith.constant 0 : index
    %c0_6 = arith.constant 0 : index
    %6 = vector.load %arg4[%c0_5, %c0_6] : memref<10x40xf32, #tpu.memory_space<vmem>>, vector<10x40xf32>
    %cst_7 = arith.constant 0.000000e+00 : f32
    %7 = vector.broadcast %cst_7 : f32 to vector<8x10xf32>
    %cst_8 = arith.constant 0.000000e+00 : f32
    %8 = vector.broadcast %cst_8 : f32 to vector<8x10xf32>
    %9 = vector.extract_strided_slice %5 {offsets = [0, 0], sizes = [8, 40], strides = [1, 1]} : vector<40x40xf32> to vector<8x40xf32>
    %cst_9 = arith.constant dense<0.000000e+00> : vector<8x40xf32>
    %10 = tpu.matmul %7, %6, %cst_9 {dimension_numbers = #tpu.dot_dimension_numbers<[1], [0], [0], [1], [0, 0, 1, 1], [], []>} : vector<8x10xf32>, vector<10x40xf32>, vector<8x40xf32> -> vector<8x40xf32>
    %11 = arith.addf %9, %10 : vector<8x40xf32>
    %12 = vector.extract_strided_slice %11 {offsets = [0, 0], sizes = [8, 10], strides = [1, 1]} : vector<8x40xf32> to vector<8x10xf32>
    %13 = arith.negf %12 : vector<8x10xf32>
    %14 = math.exp %13 : vector<8x10xf32>
    %cst_10 = arith.constant 1.000000e+00 : f32
    %15 = vector.broadcast %cst_10 : f32 to vector<8x10xf32>
    %16 = arith.addf %15, %14 : vector<8x10xf32>
    %17 = arith.divf %15, %16 : vector<8x10xf32>
    %18 = vector.extract_strided_slice %11 {offsets = [0, 10], sizes = [8, 10], strides = [1, 1]} : vector<8x40xf32> to vector<8x10xf32>
    %19 = arith.negf %18 : vector<8x10xf32>
    %20 = math.exp %19 : vector<8x10xf32>
    %cst_11 = arith.constant 1.000000e+00 : f32
    %21 = vector.broadcast %cst_11 : f32 to vector<8x10xf32>
    %22 = arith.addf %21, %20 : vector<8x10xf32>
    %23 = arith.divf %21, %22 : vector<8x10xf32>
    %24 = vector.extract_strided_slice %11 {offsets = [0, 20], sizes = [8, 10], strides = [1, 1]} : vector<8x40xf32> to vector<8x10xf32>
    %25 = math.tanh %24 : vector<8x10xf32>
    %26 = vector.extract_strided_slice %11 {offsets = [0, 30], sizes = [8, 10], strides = [1, 1]} : vector<8x40xf32> to vector<8x10xf32>
    %27 = arith.negf %26 : vector<8x10xf32>
    %28 = math.exp %27 : vector<8x10xf32>
    %cst_12 = arith.constant 1.000000e+00 : f32
    %29 = vector.broadcast %cst_12 : f32 to vector<8x10xf32>
    %30 = arith.addf %29, %28 : vector<8x10xf32>
    %31 = arith.divf %29, %30 : vector<8x10xf32>
    %32 = arith.mulf %23, %8 : vector<8x10xf32>
    %33 = arith.mulf %17, %25 : vector<8x10xf32>
    %34 = arith.addf %32, %33 : vector<8x10xf32>
    %35 = math.tanh %34 : vector<8x10xf32>
    %36 = arith.mulf %31, %35 : vector<8x10xf32>
    %37 = vector.extract_strided_slice %5 {offsets = [8, 0], sizes = [8, 40], strides = [1, 1]} : vector<40x40xf32> to vector<8x40xf32>
    %cst_13 = arith.constant dense<0.000000e+00> : vector<8x40xf32>
    %38 = tpu.matmul %36, %6, %cst_13 {dimension_numbers = #tpu.dot_dimension_numbers<[1], [0], [0], [1], [0, 0, 1, 1], [], []>} : vector<8x10xf32>, vector<10x40xf32>, vector<8x40xf32> -> vector<8x40xf32>
    %39 = arith.addf %37, %38 : vector<8x40xf32>
    %40 = vector.extract_strided_slice %39 {offsets = [0, 0], sizes = [8, 10], strides = [1, 1]} : vector<8x40xf32> to vector<8x10xf32>
    %41 = arith.negf %40 : vector<8x10xf32>
    %42 = math.exp %41 : vector<8x10xf32>
    %cst_14 = arith.constant 1.000000e+00 : f32
    %43 = vector.broadcast %cst_14 : f32 to vector<8x10xf32>
    %44 = arith.addf %43, %42 : vector<8x10xf32>
    %45 = arith.divf %43, %44 : vector<8x10xf32>
    %46 = vector.extract_strided_slice %39 {offsets = [0, 10], sizes = [8, 10], strides = [1, 1]} : vector<8x40xf32> to vector<8x10xf32>
    %47 = arith.negf %46 : vector<8x10xf32>
    %48 = math.exp %47 : vector<8x10xf32>
    %cst_15 = arith.constant 1.000000e+00 : f32
    %49 = vector.broadcast %cst_15 : f32 to vector<8x10xf32>
    %50 = arith.addf %49, %48 : vector<8x10xf32>
    %51 = arith.divf %49, %50 : vector<8x10xf32>
    %52 = vector.extract_strided_slice %39 {offsets = [0, 20], sizes = [8, 10], strides = [1, 1]} : vector<8x40xf32> to vector<8x10xf32>
    %53 = math.tanh %52 : vector<8x10xf32>
    %54 = vector.extract_strided_slice %39 {offsets = [0, 30], sizes = [8, 10], strides = [1, 1]} : vector<8x40xf32> to vector<8x10xf32>
    %55 = arith.negf %54 : vector<8x10xf32>
    %56 = math.exp %55 : vector<8x10xf32>
    %cst_16 = arith.constant 1.000000e+00 : f32
    %57 = vector.broadcast %cst_16 : f32 to vector<8x10xf32>
    %58 = arith.addf %57, %56 : vector<8x10xf32>
    %59 = arith.divf %57, %58 : vector<8x10xf32>
    %60 = arith.mulf %51, %34 : vector<8x10xf32>
    %61 = arith.mulf %45, %53 : vector<8x10xf32>
    %62 = arith.addf %60, %61 : vector<8x10xf32>
    %63 = math.tanh %62 : vector<8x10xf32>
    %64 = arith.mulf %59, %63 : vector<8x10xf32>
    %65 = vector.extract_strided_slice %5 {offsets = [16, 0], sizes = [8, 40], strides = [1, 1]} : vector<40x40xf32> to vector<8x40xf32>
    %cst_17 = arith.constant dense<0.000000e+00> : vector<8x40xf32>
    %66 = tpu.matmul %64, %6, %cst_17 {dimension_numbers = #tpu.dot_dimension_numbers<[1], [0], [0], [1], [0, 0, 1, 1], [], []>} : vector<8x10xf32>, vector<10x40xf32>, vector<8x40xf32> -> vector<8x40xf32>
    %67 = arith.addf %65, %66 : vector<8x40xf32>
    %68 = vector.extract_strided_slice %67 {offsets = [0, 0], sizes = [8, 10], strides = [1, 1]} : vector<8x40xf32> to vector<8x10xf32>
    %69 = arith.negf %68 : vector<8x10xf32>
    %70 = math.exp %69 : vector<8x10xf32>
    %cst_18 = arith.constant 1.000000e+00 : f32
    %71 = vector.broadcast %cst_18 : f32 to vector<8x10xf32>
    %72 = arith.addf %71, %70 : vector<8x10xf32>
    %73 = arith.divf %71, %72 : vector<8x10xf32>
    %74 = vector.extract_strided_slice %67 {offsets = [0, 10], sizes = [8, 10], strides = [1, 1]} : vector<8x40xf32> to vector<8x10xf32>
    %75 = arith.negf %74 : vector<8x10xf32>
    %76 = math.exp %75 : vector<8x10xf32>
    %cst_19 = arith.constant 1.000000e+00 : f32
    %77 = vector.broadcast %cst_19 : f32 to vector<8x10xf32>
    %78 = arith.addf %77, %76 : vector<8x10xf32>
    %79 = arith.divf %77, %78 : vector<8x10xf32>
    %80 = vector.extract_strided_slice %67 {offsets = [0, 20], sizes = [8, 10], strides = [1, 1]} : vector<8x40xf32> to vector<8x10xf32>
    %81 = math.tanh %80 : vector<8x10xf32>
    %82 = vector.extract_strided_slice %67 {offsets = [0, 30], sizes = [8, 10], strides = [1, 1]} : vector<8x40xf32> to vector<8x10xf32>
    %83 = arith.negf %82 : vector<8x10xf32>
    %84 = math.exp %83 : vector<8x10xf32>
    %cst_20 = arith.constant 1.000000e+00 : f32
    %85 = vector.broadcast %cst_20 : f32 to vector<8x10xf32>
    %86 = arith.addf %85, %84 : vector<8x10xf32>
    %87 = arith.divf %85, %86 : vector<8x10xf32>
    %88 = arith.mulf %79, %62 : vector<8x10xf32>
    %89 = arith.mulf %73, %81 : vector<8x10xf32>
    %90 = arith.addf %88, %89 : vector<8x10xf32>
    %91 = math.tanh %90 : vector<8x10xf32>
    %92 = arith.mulf %87, %91 : vector<8x10xf32>
    %93 = vector.extract_strided_slice %5 {offsets = [24, 0], sizes = [8, 40], strides = [1, 1]} : vector<40x40xf32> to vector<8x40xf32>
    %cst_21 = arith.constant dense<0.000000e+00> : vector<8x40xf32>
    %94 = tpu.matmul %92, %6, %cst_21 {dimension_numbers = #tpu.dot_dimension_numbers<[1], [0], [0], [1], [0, 0, 1, 1], [], []>} : vector<8x10xf32>, vector<10x40xf32>, vector<8x40xf32> -> vector<8x40xf32>
    %95 = arith.addf %93, %94 : vector<8x40xf32>
    %96 = vector.extract_strided_slice %95 {offsets = [0, 0], sizes = [8, 10], strides = [1, 1]} : vector<8x40xf32> to vector<8x10xf32>
    %97 = arith.negf %96 : vector<8x10xf32>
    %98 = math.exp %97 : vector<8x10xf32>
    %cst_22 = arith.constant 1.000000e+00 : f32
    %99 = vector.broadcast %cst_22 : f32 to vector<8x10xf32>
    %100 = arith.addf %99, %98 : vector<8x10xf32>
    %101 = arith.divf %99, %100 : vector<8x10xf32>
    %102 = vector.extract_strided_slice %95 {offsets = [0, 10], sizes = [8, 10], strides = [1, 1]} : vector<8x40xf32> to vector<8x10xf32>
    %103 = arith.negf %102 : vector<8x10xf32>
    %104 = math.exp %103 : vector<8x10xf32>
    %cst_23 = arith.constant 1.000000e+00 : f32
    %105 = vector.broadcast %cst_23 : f32 to vector<8x10xf32>
    %106 = arith.addf %105, %104 : vector<8x10xf32>
    %107 = arith.divf %105, %106 : vector<8x10xf32>
    %108 = vector.extract_strided_slice %95 {offsets = [0, 20], sizes = [8, 10], strides = [1, 1]} : vector<8x40xf32> to vector<8x10xf32>
    %109 = math.tanh %108 : vector<8x10xf32>
    %110 = vector.extract_strided_slice %95 {offsets = [0, 30], sizes = [8, 10], strides = [1, 1]} : vector<8x40xf32> to vector<8x10xf32>
    %111 = arith.negf %110 : vector<8x10xf32>
    %112 = math.exp %111 : vector<8x10xf32>
    %cst_24 = arith.constant 1.000000e+00 : f32
    %113 = vector.broadcast %cst_24 : f32 to vector<8x10xf32>
    %114 = arith.addf %113, %112 : vector<8x10xf32>
    %115 = arith.divf %113, %114 : vector<8x10xf32>
    %116 = arith.mulf %107, %90 : vector<8x10xf32>
    %117 = arith.mulf %101, %109 : vector<8x10xf32>
    %118 = arith.addf %116, %117 : vector<8x10xf32>
    %119 = math.tanh %118 : vector<8x10xf32>
    %120 = arith.mulf %115, %119 : vector<8x10xf32>
    %121 = vector.extract_strided_slice %5 {offsets = [32, 0], sizes = [8, 40], strides = [1, 1]} : vector<40x40xf32> to vector<8x40xf32>
    %cst_25 = arith.constant dense<0.000000e+00> : vector<8x40xf32>
    %122 = tpu.matmul %120, %6, %cst_25 {dimension_numbers = #tpu.dot_dimension_numbers<[1], [0], [0], [1], [0, 0, 1, 1], [], []>} : vector<8x10xf32>, vector<10x40xf32>, vector<8x40xf32> -> vector<8x40xf32>
    %123 = arith.addf %121, %122 : vector<8x40xf32>
    %124 = vector.extract_strided_slice %123 {offsets = [0, 0], sizes = [8, 10], strides = [1, 1]} : vector<8x40xf32> to vector<8x10xf32>
    %125 = arith.negf %124 : vector<8x10xf32>
    %126 = math.exp %125 : vector<8x10xf32>
    %cst_26 = arith.constant 1.000000e+00 : f32
    %127 = vector.broadcast %cst_26 : f32 to vector<8x10xf32>
    %128 = arith.addf %127, %126 : vector<8x10xf32>
    %129 = arith.divf %127, %128 : vector<8x10xf32>
    %130 = vector.extract_strided_slice %123 {offsets = [0, 10], sizes = [8, 10], strides = [1, 1]} : vector<8x40xf32> to vector<8x10xf32>
    %131 = arith.negf %130 : vector<8x10xf32>
    %132 = math.exp %131 : vector<8x10xf32>
    %cst_27 = arith.constant 1.000000e+00 : f32
    %133 = vector.broadcast %cst_27 : f32 to vector<8x10xf32>
    %134 = arith.addf %133, %132 : vector<8x10xf32>
    %135 = arith.divf %133, %134 : vector<8x10xf32>
    %136 = vector.extract_strided_slice %123 {offsets = [0, 20], sizes = [8, 10], strides = [1, 1]} : vector<8x40xf32> to vector<8x10xf32>
    %137 = math.tanh %136 : vector<8x10xf32>
    %138 = vector.extract_strided_slice %123 {offsets = [0, 30], sizes = [8, 10], strides = [1, 1]} : vector<8x40xf32> to vector<8x10xf32>
    %139 = arith.negf %138 : vector<8x10xf32>
    %140 = math.exp %139 : vector<8x10xf32>
    %cst_28 = arith.constant 1.000000e+00 : f32
    %141 = vector.broadcast %cst_28 : f32 to vector<8x10xf32>
    %142 = arith.addf %141, %140 : vector<8x10xf32>
    %143 = arith.divf %141, %142 : vector<8x10xf32>
    %144 = arith.mulf %135, %118 : vector<8x10xf32>
    %145 = arith.mulf %129, %137 : vector<8x10xf32>
    %146 = arith.addf %144, %145 : vector<8x10xf32>
    %147 = math.tanh %146 : vector<8x10xf32>
    %148 = arith.mulf %143, %147 : vector<8x10xf32>
    %c0_29 = arith.constant 0 : index
    %c0_30 = arith.constant 0 : index
    %149 = vector.load %arg5[%c0_29, %c0_30] : memref<10x128xf32, #tpu.memory_space<vmem>>, vector<10x128xf32>
    %cst_31 = arith.constant dense<0.000000e+00> : vector<8x128xf32>
    %150 = tpu.matmul %148, %149, %cst_31 {dimension_numbers = #tpu.dot_dimension_numbers<[1], [0], [0], [1], [0, 0, 1, 1], [], []>} : vector<8x10xf32>, vector<10x128xf32>, vector<8x128xf32> -> vector<8x128xf32>
    %c0_32 = arith.constant 0 : index
    %c0_33 = arith.constant 0 : index
    %151 = vector.load %arg6[%c0_32, %c0_33] : memref<1x128xf32, #tpu.memory_space<vmem>>, vector<1x128xf32>
    %152 = vector.broadcast %151 : vector<1x128xf32> to vector<8x128xf32>
    %153 = arith.addf %150, %152 : vector<8x128xf32>
    %c0_34 = arith.constant 0 : index
    %c0_35 = arith.constant 0 : index
    %154 = vector.load %arg7[%c0_34, %c0_35] : memref<8x128xf32, #tpu.memory_space<vmem>>, vector<8x128xf32>
    tpu.vector_store %arg7[%c0_34, %c0_35], %153 {strides = array<i32>} : memref<8x128xf32, #tpu.memory_space<vmem>>, vector<8x128xf32>,
    return
  }
  func.func @transform_0(%arg0: i32) -> (i32, i32) {
    %c0_i32 = arith.constant 0 : i32
    %c0_i32_0 = arith.constant 0 : i32
    return %arg0, %c0_i32 : i32, i32
  }
  func.func @transform_1(%arg0: i32) -> (i32, i32) {
    %c0_i32 = arith.constant 0 : i32
    %c0_i32_0 = arith.constant 0 : i32
    %c0_i32_1 = arith.constant 0 : i32
    return %c0_i32, %c0_i32_0 : i32, i32
  }
  func.func @transform_2(%arg0: i32) -> (i32, i32) {
    %c0_i32 = arith.constant 0 : i32
    %c0_i32_0 = arith.constant 0 : i32
    %c0_i32_1 = arith.constant 0 : i32
    return %c0_i32, %c0_i32_0 : i32, i32
  }
  func.func @transform_3(%arg0: i32) -> (i32, i32) {
    %c0_i32 = arith.constant 0 : i32
    %c0_i32_0 = arith.constant 0 : i32
    %c0_i32_1 = arith.constant 0 : i32
    return %c0_i32, %c0_i32_0 : i32, i32
  }
  func.func @transform_4(%arg0: i32) -> (i32, i32) {
    %c0_i32 = arith.constant 0 : i32
    %c0_i32_0 = arith.constant 0 : i32
    %c0_i32_1 = arith.constant 0 : i32
    return %c0_i32, %c0_i32_0 : i32, i32
  }
  func.func @transform_5(%arg0: i32) -> (i32, i32) {
    %c0_i32 = arith.constant 0 : i32
    %c0_i32_0 = arith.constant 0 : i32
    %c0_i32_1 = arith.constant 0 : i32
    return %c0_i32, %c0_i32_0 : i32, i32
  }
  func.func @transform_6(%arg0: i32) -> (i32, i32) {
    %c0_i32 = arith.constant 0 : i32
    %c0_i32_0 = arith.constant 0 : i32
    return %arg0, %c0_i32 : i32, i32
  }
}

</mosaic_0001>

<llo_original>
// kernel: conv_lstm_forward.1
$region0: #{conv_lstm_forward.1}
  #allocation0 [shape = 'u32[]', space=smem, size = 0x4, offset = 0x4, fixed_abs, tag = 'smem constant byte address 0x4 - core index']
  #allocation1 [shape = 'u32[144,128]{1,0:T(1,128)}', space=vmem, size = 0x12000, scoped, tag = 'internal scratch']
  %s0 = inlined_call_operand.vmem [shape: bf16[80,6592], index: 0, kind: input, shape index: {}]
  %s1 = inlined_call_operand.vmem [shape: bf16[6592,40], index: 1, kind: input, shape index: {}]
  %s2 = inlined_call_operand.vmem [shape: f32[1,40], index: 2, kind: input, shape index: {}]
  %s3 = inlined_call_operand.vmem [shape: f32[10,40], index: 3, kind: input, shape index: {}]
  %s4 = inlined_call_operand.vmem [shape: f32[10,128], index: 4, kind: input, shape index: {}]
  %s5 = inlined_call_operand.vmem [shape: f32[1,128], index: 5, kind: input, shape index: {}]
  %s6 = inlined_call_operand.vmem [shape: f32[16,128], index: 6, kind: output, shape index: {}]
  %s7 = sld [smem:[#allocation0]]
  $region57: #{conv_lstm_forward.1} parent=0
    _
  %s9 = ssub.s32 1, %s7
  %s10 = scalar_select 0, %s9, %s7
  loop: start=0, step=1, limit=4
  $region2: #{conv_lstm_forward.1} parent=0 // loop_pre_header
    _
  $region3: #{conv_lstm_forward.1} parent=0 // loop_header
    %s12 = sphi 0, %s16
    %p13 = scmp.ge.s32.totalorder %s12, 4
    %s22 = sphi 0, %s24
    %s25 = sphi 0, %s22
    %s26 = sphi 0, %s25
    %s42 = sphi 0, %s26
    %s46 = sphi 0, %s46
    %s48 = sphi 0, %s46
    %s49 = sphi 0, %s48
    %s63 = sphi 0, %s49
    %s67 = sphi 0, %s67
    %s69 = sphi 0, %s67
    %s70 = sphi 0, %s69
    %s84 = sphi 0, %s70
    %s88 = sphi 0, %s88
    %s90 = sphi 0, %s88
    %s91 = sphi 0, %s90
    %s105 = sphi 0, %s91
    %s109 = sphi 0, %s109
    %s111 = sphi 0, %s109
    %s112 = sphi 0, %s111
    %s126 = sphi 0, %s112
    %s130 = sphi 0, %s130
    %s132 = sphi 0, %s130
    %s133 = sphi 0, %s132
    %s147 = sphi 0, %s133
    %s153 = sphi 0, %s155
    %s156 = sphi 0, %s153
    %s157 = sphi 0, %s156
    %s173 = sphi 0, %s157
  $region4: #{conv_lstm_forward.1} parent=0 // loop_header_branch
    %15 = sbr.rel (%p13) target = $region8
  $region5: #{conv_lstm_forward.1} parent=0 // loop_body
    %s17 = ssub.s32 %s12, 1
    %s18 = ssub.s32 %s12, 2
    %s19 = sadd.s32 %s12, 1
    %s20 = ssub.s32 %s12, %s19
    %p21 = scmp.eq.s32.totalorder %s20, 0
    %s23 = sadd.s32 %s22, 1
    %s24 = scalar_select %p21, %s22, %s23
    %p27 = pneg %p21
    %p28 = scmp.eq.s32.totalorder %s12, 1
    %p29 = por %p27, %p28
    %p30 = scmp.ne.s32.totalorder %s22, %s25
    %p31 = scmp.eq.s32.totalorder %s12, 0
    %p32 = por %p30, %p31
    %p33 = scmp.ne.s32.totalorder %s22, %s25
    %p34 = scmp.eq.s32.totalorder %s17, 1
    %p35 = por %p33, %p34
    %p36 = scmp.ne.s32.totalorder %s25, %s26
    %p37 = scmp.eq.s32.totalorder %s17, 0
    %p38 = por %p36, %p37
    %p39 = scmp.ne.s32.totalorder %s25, %s26
    %p40 = scmp.eq.s32.totalorder %s18, 1
    %p41 = por %p39, %p40
    %p43 = scmp.ne.s32.totalorder %s26, %s42
    %p44 = scmp.eq.s32.totalorder %s18, 0
    %p45 = por %p43, %p44
    %s47 = sadd.s32 %s46, 1
    %p50 = scmp.eq.s32.totalorder %s12, 1
    %p51 = scmp.ne.s32.totalorder %s46, %s48
    %p52 = scmp.eq.s32.totalorder %s12, 0
    %p53 = por %p51, %p52
    %p54 = scmp.ne.s32.totalorder %s46, %s48
    %p55 = scmp.eq.s32.totalorder %s17, 1
    %p56 = por %p54, %p55
    %p57 = scmp.ne.s32.totalorder %s48, %s49
    %p58 = scmp.eq.s32.totalorder %s17, 0
    %p59 = por %p57, %p58
    %p60 = scmp.ne.s32.totalorder %s48, %s49
    %p61 = scmp.eq.s32.totalorder %s18, 1
    %p62 = por %p60, %p61
    %p64 = scmp.ne.s32.totalorder %s49, %s63
    %p65 = scmp.eq.s32.totalorder %s18, 0
    %p66 = por %p64, %p65
    %s68 = sadd.s32 %s67, 1
    %p71 = scmp.eq.s32.totalorder %s12, 1
    %p72 = scmp.ne.s32.totalorder %s67, %s69
    %p73 = scmp.eq.s32.totalorder %s12, 0
    %p74 = por %p72, %p73
    %p75 = scmp.ne.s32.totalorder %s67, %s69
    %p76 = scmp.eq.s32.totalorder %s17, 1
    %p77 = por %p75, %p76
    %p78 = scmp.ne.s32.totalorder %s69, %s70
    %p79 = scmp.eq.s32.totalorder %s17, 0
    %p80 = por %p78, %p79
    %p81 = scmp.ne.s32.totalorder %s69, %s70
    %p82 = scmp.eq.s32.totalorder %s18, 1
    %p83 = por %p81, %p82
    %p85 = scmp.ne.s32.totalorder %s70, %s84
    %p86 = scmp.eq.s32.totalorder %s18, 0
    %p87 = por %p85, %p86
    %s89 = sadd.s32 %s88, 1
    %p92 = scmp.eq.s32.totalorder %s12, 1
    %p93 = scmp.ne.s32.totalorder %s88, %s90
    %p94 = scmp.eq.s32.totalorder %s12, 0
    %p95 = por %p93, %p94
    %p96 = scmp.ne.s32.totalorder %s88, %s90
    %p97 = scmp.eq.s32.totalorder %s17, 1
    %p98 = por %p96, %p97
    %p99 = scmp.ne.s32.totalorder %s90, %s91
    %p100 = scmp.eq.s32.totalorder %s17, 0
    %p101 = por %p99, %p100
    %p102 = scmp.ne.s32.totalorder %s90, %s91
    %p103 = scmp.eq.s32.totalorder %s18, 1
    %p104 = por %p102, %p103
    %p106 = scmp.ne.s32.totalorder %s91, %s105
    %p107 = scmp.eq.s32.totalorder %s18, 0
    %p108 = por %p106, %p107
    %s110 = sadd.s32 %s109, 1
    %p113 = scmp.eq.s32.totalorder %s12, 1
    %p114 = scmp.ne.s32.totalorder %s109, %s111
    %p115 = scmp.eq.s32.totalorder %s12, 0
    %p116 = por %p114, %p115
    %p117 = scmp.ne.s32.totalorder %s109, %s111
    %p118 = scmp.eq.s32.totalorder %s17, 1
    %p119 = por %p117, %p118
    %p120 = scmp.ne.s32.totalorder %s111, %s112
    %p121 = scmp.eq.s32.totalorder %s17, 0
    %p122 = por %p120, %p121
    %p123 = scmp.ne.s32.totalorder %s111, %s112
    %p124 = scmp.eq.s32.totalorder %s18, 1
    %p125 = por %p123, %p124
    %p127 = scmp.ne.s32.totalorder %s112, %s126
    %p128 = scmp.eq.s32.totalorder %s18, 0
    %p129 = por %p127, %p128
    %s131 = sadd.s32 %s130, 1
    %p134 = scmp.eq.s32.totalorder %s12, 1
    %p135 = scmp.ne.s32.totalorder %s130, %s132
    %p136 = scmp.eq.s32.totalorder %s12, 0
    %p137 = por %p135, %p136
    %p138 = scmp.ne.s32.totalorder %s130, %s132
    %p139 = scmp.eq.s32.totalorder %s17, 1
    %p140 = por %p138, %p139
    %p141 = scmp.ne.s32.totalorder %s132, %s133
    %p142 = scmp.eq.s32.totalorder %s17, 0
    %p143 = por %p141, %p142
    %p144 = scmp.ne.s32.totalorder %s132, %s133
    %p145 = scmp.eq.s32.totalorder %s18, 1
    %p146 = por %p144, %p145
    %p148 = scmp.ne.s32.totalorder %s133, %s147
    %p149 = scmp.eq.s32.totalorder %s18, 0
    %p150 = por %p148, %p149
    %s151 = ssub.s32 %s12, %s19
    %p152 = scmp.eq.s32.totalorder %s151, 0
    %s154 = sadd.s32 %s153, 1
    %s155 = scalar_select %p152, %s153, %s154
    %p158 = pneg %p152
    %p159 = scmp.eq.s32.totalorder %s12, 1
    %p160 = por %p158, %p159
    %p161 = scmp.ne.s32.totalorder %s153, %s156
    %p162 = scmp.eq.s32.totalorder %s12, 0
    %p163 = por %p161, %p162
    %p164 = scmp.ne.s32.totalorder %s153, %s156
    %p165 = scmp.eq.s32.totalorder %s17, 1
    %p166 = por %p164, %p165
    %p167 = scmp.ne.s32.totalorder %s156, %s157
    %p168 = scmp.eq.s32.totalorder %s17, 0
    %p169 = por %p167, %p168
    %p170 = scmp.ne.s32.totalorder %s156, %s157
    %p171 = scmp.eq.s32.totalorder %s18, 1
    %p172 = por %p170, %p171
    %p174 = scmp.ne.s32.totalorder %s157, %s173
    %p175 = scmp.eq.s32.totalorder %s18, 0
    %p176 = por %p174, %p175
    %p177 = scmp.le.s32.totalorder 1, %s12
    %p178 = scmp.lt.s32.totalorder %s12, 3
    %p179 = pnand %p177, %p178
    %p180 = pneg %p179
    // Predicated region
    $region9: #{conv_lstm_forward.1} parent=5 // pred_check
      _
    $region10: #{conv_lstm_forward.1} parent=5 // pred_check_branch
      %182 = sbr.rel (%p179) target = $region12
    $region11: #{conv_lstm_forward.1} parent=5 // pred_region
      %s183 = ssub.s32 %s12, 1
      // Predicated region
      $region13: #{conv_lstm_forward.1} parent=11 // pred_check
        %p184 = pneg %p59
      $region14: #{conv_lstm_forward.1} parent=11 // pred_check_branch
        %186 = sbr.rel (%p184) target = $region16
      $region15: #{conv_lstm_forward.1} parent=11 // pred_region
        _
      $region16: #{conv_lstm_forward.1} parent=11 // pred_fallthru
        _
      // Predicated region
      $region17: #{conv_lstm_forward.1} parent=11 // pred_check
        %p187 = pneg %p80
      $region18: #{conv_lstm_forward.1} parent=11 // pred_check_branch
        %189 = sbr.rel (%p187) target = $region20
      $region19: #{conv_lstm_forward.1} parent=11 // pred_region
        _
      $region20: #{conv_lstm_forward.1} parent=11 // pred_fallthru
        _
      // Predicated region
      $region21: #{conv_lstm_forward.1} parent=11 // pred_check
        %p190 = pneg %p101
      $region22: #{conv_lstm_forward.1} parent=11 // pred_check_branch
        %192 = sbr.rel (%p190) target = $region24
      $region23: #{conv_lstm_forward.1} parent=11 // pred_region
        _
      $region24: #{conv_lstm_forward.1} parent=11 // pred_fallthru
        _
      // Predicated region
      $region25: #{conv_lstm_forward.1} parent=11 // pred_check
        %p193 = pneg %p122
      $region26: #{conv_lstm_forward.1} parent=11 // pred_check_branch
        %195 = sbr.rel (%p193) target = $region28
      $region27: #{conv_lstm_forward.1} parent=11 // pred_region
        _
      $region28: #{conv_lstm_forward.1} parent=11 // pred_fallthru
        _
      // Predicated region
      $region29: #{conv_lstm_forward.1} parent=11 // pred_check
        %p196 = pneg %p143
      $region30: #{conv_lstm_forward.1} parent=11 // pred_check_branch
        %198 = sbr.rel (%p196) target = $region32
      $region31: #{conv_lstm_forward.1} parent=11 // pred_region
        _
      $region32: #{conv_lstm_forward.1} parent=11 // pred_fallthru
        _
    $region12: #{conv_lstm_forward.1} parent=5 // pred_fallthru
      _
    %p199 = scmp.lt.s32.totalorder %s12, 2
    // Predicated region
    $region33: #{conv_lstm_forward.1} parent=5 // pred_check
      %p200 = pneg %p199
    $region34: #{conv_lstm_forward.1} parent=5 // pred_check_branch
      %202 = sbr.rel (%p200) target = $region36
    $region35: #{conv_lstm_forward.1} parent=5 // pred_region
      // Predicated region
      $region37: #{conv_lstm_forward.1} parent=35 // pred_check
        %p203 = pneg %p32
      $region38: #{conv_lstm_forward.1} parent=35 // pred_check_branch
        %205 = sbr.rel (%p203) target = $region40
      $region39: #{conv_lstm_forward.1} parent=35 // pred_region
        %s206 = smul.u32 5, %s12
        %p207 = scmp.lt.s32.totalorder %s206, 9
        %s208 = scalar_select %p207, %s206, 9
        %s209 = smul.addr %s208, 52
        %s210 = smul.addr %s209, 4
        %s211 = scalar_lea.vmem %s0, %s210
        %s212 = smul.u32 5, %s12
      $region40: #{conv_lstm_forward.1} parent=35 // pred_fallthru
        _
    $region36: #{conv_lstm_forward.1} parent=5 // pred_fallthru
      _
    %p213 = scmp.le.s32.totalorder 1, %s12
    %p214 = scmp.lt.s32.totalorder %s12, 3
    %p215 = pnand %p213, %p214
    %p216 = pneg %p215
    // Predicated region
    $region41: #{conv_lstm_forward.1} parent=5 // pred_check
      _
    $region42: #{conv_lstm_forward.1} parent=5 // pred_check_branch
      %218 = sbr.rel (%p215) target = $region44
    $region43: #{conv_lstm_forward.1} parent=5 // pred_region
      %s219 = ssub.s32 %s12, 1
      %s220 = smul.u32 5, %s17
      %p221 = scmp.lt.s32.totalorder %s220, 9
      %s222 = scalar_select %p221, %s220, 9
      %s223 = smul.addr %s222, 52
      %s224 = smul.addr %s223, 4
      %s225 = scalar_lea.vmem %s0, %s224
      %p226 = pneg %p38
      %p227 = pneg %p35
      %p228 = pneg %p59
      %p229 = pneg %p56
      %p230 = pneg %p80
      %p231 = pneg %p77
      %p232 = pneg %p101
      %p233 = pneg %p98
      %p234 = pneg %p122
      %p235 = pneg %p119
      %p236 = pneg %p143
      %p237 = pneg %p140
      %p238 = pneg %p169
      %p239 = pneg %p166
      %p240 = scmp.lt.s32.totalorder %s17, 1
      %s241 = scalar_select %p240, %s17, 1
      %s242 = smul.addr %s241, 8
      %s243 = scalar_lea.vmem %s6, %s242
      %s244 = smul.u32 5, %s17
      %p245 = scmp.lt.s32.totalorder %s244, 9
      %s246 = scalar_select %p245, %s244, 9
      %s247 = smul.addr %s246, 52
      %s248 = smul.addr %s247, 4
      %s249 = scalar_lea.vmem %s0, %s248
      %s250 = smul.u32 5, %s17
      %p251 = scmp.lt.s32.totalorder %s17, 1
      %s252 = scalar_select %p251, %s17, 1
      %s253 = smul.addr %s252, 8
      %s254 = scalar_lea.vmem %s6, %s253
      %v256 = vld [vmem:[%s249] sm:$0xff]
      %v257 = vld [vmem:[%s249 + $0x8] sm:$0xff]
      %v258 = vld [vmem:[%s249 + $0x10] sm:$0xff]
      %v259 = vld [vmem:[%s249 + $0x18] sm:$0xff]
      %v260 = vld [vmem:[%s249 + $0x20] sm:$0xff]
      %v261 = vld [vmem:[%s249 + $0x28] sm:$0xff]
      %v262 = vld [vmem:[%s249 + $0x30] sm:$0xff]
      %v263 = vld [vmem:[%s249 + $0x38] sm:$0xff]
      %v264 = vld [vmem:[%s249 + $0x40] sm:$0xff]
      %v265 = vld [vmem:[%s249 + $0x48] sm:$0xff]
      %v266 = vld [vmem:[%s249 + $0x50] sm:$0xff]
      %v267 = vld [vmem:[%s249 + $0x58] sm:$0xff]
      %v268 = vld [vmem:[%s249 + $0x60] sm:$0xff]
      %v269 = vld [vmem:[%s249 + $0x68] sm:$0xff]
      %v270 = vld [vmem:[%s249 + $0x70] sm:$0xff]
      %v271 = vld [vmem:[%s249 + $0x78] sm:$0xff]
      %v272 = vld [vmem:[%s249 + $0x80] sm:$0xff]
      %v273 = vld [vmem:[%s249 + $0x88] sm:$0xff]
      %v274 = vld [vmem:[%s249 + $0x90] sm:$0xff]
      %v275 = vld [vmem:[%s249 + $0x98] sm:$0xff]
      %v276 = vld [vmem:[%s249 + $0xa0] sm:$0xff]
      %v277 = vld [vmem:[%s249 + $0xa8] sm:$0xff]
      %v278 = vld [vmem:[%s249 + $0xb0] sm:$0xff]
      %v279 = vld [vmem:[%s249 + $0xb8] sm:$0xff]
      %v280 = vld [vmem:[%s249 + $0xc0] sm:$0xff]
      %v281 = vld [vmem:[%s249 + $0xc8] sm:$0xff]
      %v282 = vld [vmem:[%s249 + $0xd0] sm:$0xff]
      %v283 = vld [vmem:[%s249 + $0xd8] sm:$0xff]
      %v284 = vld [vmem:[%s249 + $0xe0] sm:$0xff]
      %v285 = vld [vmem:[%s249 + $0xe8] sm:$0xff]
      %v286 = vld [vmem:[%s249 + $0xf0] sm:$0xff]
      %v287 = vld [vmem:[%s249 + $0xf8] sm:$0xff]
      %v288 = vld [vmem:[%s249 + $0x100] sm:$0xff]
      %v289 = vld [vmem:[%s249 + $0x108] sm:$0xff]
      %v290 = vld [vmem:[%s249 + $0x110] sm:$0xff]
      %v291 = vld [vmem:[%s249 + $0x118] sm:$0xff]
      %v292 = vld [vmem:[%s249 + $0x120] sm:$0xff]
      %v293 = vld [vmem:[%s249 + $0x128] sm:$0xff]
      %v294 = vld [vmem:[%s249 + $0x130] sm:$0xff]
      %v295 = vld [vmem:[%s249 + $0x138] sm:$0xff]
      %v296 = vld [vmem:[%s249 + $0x140] sm:$0xff]
      %v297 = vld [vmem:[%s249 + $0x148] sm:$0xff]
      %v298 = vld [vmem:[%s249 + $0x150] sm:$0xff]
      %v299 = vld [vmem:[%s249 + $0x158] sm:$0xff]
      %v300 = vld [vmem:[%s249 + $0x160] sm:$0xff]
      %v301 = vld [vmem:[%s249 + $0x168] sm:$0xff]
      %v302 = vld [vmem:[%s249 + $0x170] sm:$0xff]
      %v303 = vld [vmem:[%s249 + $0x178] sm:$0xff]
      %v304 = vld [vmem:[%s249 + $0x180] sm:$0xff]
      %v305 = vld [vmem:[%s249 + $0x188] sm:$0xff]
      %v306 = vld [vmem:[%s249 + $0x190] sm:$0xff]
      %v307 = vld [vmem:[%s249 + $0x198] sm:$0xff]
      %v308 = vld [vmem:[%s249 + $0x1a0] sm:$0xff]
      %v309 = vld [vmem:[%s249 + $0x1a8] sm:$0xff]
      %v310 = vld [vmem:[%s249 + $0x1b0] sm:$0xff]
      %v311 = vld [vmem:[%s249 + $0x1b8] sm:$0xff]
      %v312 = vld [vmem:[%s249 + $0x1c0] sm:$0xff]
      %v313 = vld [vmem:[%s249 + $0x1c8] sm:$0xff]
      %v314 = vld [vmem:[%s249 + $0x1d0] sm:$0xff]
      %v315 = vld [vmem:[%s249 + $0x1d8] sm:$0xff]
      %v316 = vld [vmem:[%s249 + $0x1e0] sm:$0xff]
      %v317 = vld [vmem:[%s249 + $0x1e8] sm:$0xff]
      %v318 = vld [vmem:[%s249 + $0x1f0] sm:$0xff]
      %v319 = vld [vmem:[%s249 + $0x1f8] sm:$0xff]
      %v320 = vld [vmem:[%s249 + $0x200] sm:$0xff]
      %v321 = vld [vmem:[%s249 + $0x208] sm:$0xff]
      %v322 = vld [vmem:[%s249 + $0x210] sm:$0xff]
      %v323 = vld [vmem:[%s249 + $0x218] sm:$0xff]
      %v324 = vld [vmem:[%s249 + $0x220] sm:$0xff]
      %v325 = vld [vmem:[%s249 + $0x228] sm:$0xff]
      %v326 = vld [vmem:[%s249 + $0x230] sm:$0xff]
      %v327 = vld [vmem:[%s249 + $0x238] sm:$0xff]
      %v328 = vld [vmem:[%s249 + $0x240] sm:$0xff]
      %v329 = vld [vmem:[%s249 + $0x248] sm:$0xff]
      %v330 = vld [vmem:[%s249 + $0x250] sm:$0xff]
      %v331 = vld [vmem:[%s249 + $0x258] sm:$0xff]
      %v332 = vld [vmem:[%s249 + $0x260] sm:$0xff]
      %v333 = vld [vmem:[%s249 + $0x268] sm:$0xff]
      %v334 = vld [vmem:[%s249 + $0x270] sm:$0xff]
      %v335 = vld [vmem:[%s249 + $0x278] sm:$0xff]
      %v336 = vld [vmem:[%s249 + $0x280] sm:$0xff]
      %v337 = vld [vmem:[%s249 + $0x288] sm:$0xff]
      %v338 = vld [vmem:[%s249 + $0x290] sm:$0xff]
      %v339 = vld [vmem:[%s249 + $0x298] sm:$0xff]
      %v340 = vld [vmem:[%s249 + $0x2a0] sm:$0xff]
      %v341 = vld [vmem:[%s249 + $0x2a8] sm:$0xff]
      %v342 = vld [vmem:[%s249 + $0x2b0] sm:$0xff]
      %v343 = vld [vmem:[%s249 + $0x2b8] sm:$0xff]
      %v344 = vld [vmem:[%s249 + $0x2c0] sm:$0xff]
      %v345 = vld [vmem:[%s249 + $0x2c8] sm:$0xff]
      %v346 = vld [vmem:[%s249 + $0x2d0] sm:$0xff]
      %v347 = vld [vmem:[%s249 + $0x2d8] sm:$0xff]
      %v348 = vld [vmem:[%s249 + $0x2e0] sm:$0xff]
      %v349 = vld [vmem:[%s249 + $0x2e8] sm:$0xff]
      %v350 = vld [vmem:[%s249 + $0x2f0] sm:$0xff]
      %v351 = vld [vmem:[%s249 + $0x2f8] sm:$0xff]
      %v352 = vld [vmem:[%s249 + $0x300] sm:$0xff]
      %v353 = vld [vmem:[%s249 + $0x308] sm:$0xff]
      %v354 = vld [vmem:[%s249 + $0x310] sm:$0xff]
      %v355 = vld [vmem:[%s249 + $0x318] sm:$0xff]
      %v356 = vld [vmem:[%s249 + $0x320] sm:$0xff]
      %v357 = vld [vmem:[%s249 + $0x328] sm:$0xff]
      %v358 = vld [vmem:[%s249 + $0x330] sm:$0xff]
      %v359 = vld [vmem:[%s249 + $0x338] sm:$0xff]
      %v360 = vld [vmem:[%s249 + $0x340] sm:$0xff]
      %v361 = vld [vmem:[%s249 + $0x348] sm:$0xff]
      %v362 = vld [vmem:[%s249 + $0x350] sm:$0xff]
      %v363 = vld [vmem:[%s249 + $0x358] sm:$0xff]
      %v364 = vld [vmem:[%s249 + $0x360] sm:$0xff]
      %v365 = vld [vmem:[%s249 + $0x368] sm:$0xff]
      %v366 = vld [vmem:[%s249 + $0x370] sm:$0xff]
      %v367 = vld [vmem:[%s249 + $0x378] sm:$0xff]
      %v368 = vld [vmem:[%s249 + $0x380] sm:$0xff]
      %v369 = vld [vmem:[%s249 + $0x388] sm:$0xff]
      %v370 = vld [vmem:[%s249 + $0x390] sm:$0xff]
      %v371 = vld [vmem:[%s249 + $0x398] sm:$0xff]
      %v372 = vld [vmem:[%s249 + $0x3a0] sm:$0xff]
      %v373 = vld [vmem:[%s249 + $0x3a8] sm:$0xff]
      %v374 = vld [vmem:[%s249 + $0x3b0] sm:$0xff]
      %v375 = vld [vmem:[%s249 + $0x3b8] sm:$0xff]
      %v376 = vld [vmem:[%s249 + $0x3c0] sm:$0xff]
      %v377 = vld [vmem:[%s249 + $0x3c8] sm:$0xff]
      %v378 = vld [vmem:[%s249 + $0x3d0] sm:$0xff]
      %v379 = vld [vmem:[%s249 + $0x3d8] sm:$0xff]
      %v380 = vld [vmem:[%s249 + $0x3e0] sm:$0xff]
      %v381 = vld [vmem:[%s249 + $0x3e8] sm:$0xff]
      %v382 = vld [vmem:[%s249 + $0x3f0] sm:$0xff]
      %v383 = vld [vmem:[%s249 + $0x3f8] sm:$0xff]
      %v384 = vld [vmem:[%s249 + $0x400] sm:$0xff]
      %v385 = vld [vmem:[%s249 + $0x408] sm:$0xff]
      %v386 = vld [vmem:[%s1] sm:$0xf]
      %v387 = vld [vmem:[%s1 + $0x4] sm:$0xf]
      %v388 = vld [vmem:[%s1 + $0x8] sm:$0xf]
      %v389 = vld [vmem:[%s1 + $0xc] sm:$0xf]
      %v390 = vld [vmem:[%s1 + $0x10] sm:$0xf]
      %v391 = vld [vmem:[%s1 + $0x14] sm:$0xf]
      %v392 = vld [vmem:[%s1 + $0x18] sm:$0xf]
      %v393 = vld [vmem:[%s1 + $0x1c] sm:$0xf]
      %v394 = vld [vmem:[%s1 + $0x20] sm:$0xf]
      %v395 = vld [vmem:[%s1 + $0x24] sm:$0xf]
      %v396 = vld [vmem:[%s1 + $0x28] sm:$0xf]
      %v397 = vld [vmem:[%s1 + $0x2c] sm:$0xf]
      %v398 = vld [vmem:[%s1 + $0x30] sm:$0xf]
      %v399 = vld [vmem:[%s1 + $0x34] sm:$0xf]
      %v400 = vld [vmem:[%s1 + $0x38] sm:$0xf]
      %v401 = vld [vmem:[%s1 + $0x3c] sm:$0xf]
      %v402 = vld [vmem:[%s1 + $0x40] sm:$0xf]
      %v403 = vld [vmem:[%s1 + $0x44] sm:$0xf]
      %v404 = vld [vmem:[%s1 + $0x48] sm:$0xf]
      %v405 = vld [vmem:[%s1 + $0x4c] sm:$0xf]
      %v406 = vld [vmem:[%s1 + $0x50] sm:$0xf]
      %v407 = vld [vmem:[%s1 + $0x54] sm:$0xf]
      %v408 = vld [vmem:[%s1 + $0x58] sm:$0xf]
      %v409 = vld [vmem:[%s1 + $0x5c] sm:$0xf]
      %v410 = vld [vmem:[%s1 + $0x60] sm:$0xf]
      %v411 = vld [vmem:[%s1 + $0x64] sm:$0xf]
      %v412 = vld [vmem:[%s1 + $0x68] sm:$0xf]
      %v413 = vld [vmem:[%s1 + $0x6c] sm:$0xf]
      %v414 = vld [vmem:[%s1 + $0x70] sm:$0xf]
      %v415 = vld [vmem:[%s1 + $0x74] sm:$0xf]
      %v416 = vld [vmem:[%s1 + $0x78] sm:$0xf]
      %v417 = vld [vmem:[%s1 + $0x7c] sm:$0xf]
      %v418 = vld [vmem:[%s1 + $0x80] sm:$0xf]
      %v419 = vld [vmem:[%s1 + $0x84] sm:$0xf]
      %v420 = vld [vmem:[%s1 + $0x88] sm:$0xf]
      %v421 = vld [vmem:[%s1 + $0x8c] sm:$0xf]
      %v422 = vld [vmem:[%s1 + $0x90] sm:$0xf]
      %v423 = vld [vmem:[%s1 + $0x94] sm:$0xf]
      %v424 = vld [vmem:[%s1 + $0x98] sm:$0xf]
      %v425 = vld [vmem:[%s1 + $0x9c] sm:$0xf]
      %v426 = vld [vmem:[%s1 + $0xa0] sm:$0xf]
      %v427 = vld [vmem:[%s1 + $0xa4] sm:$0xf]
      %v428 = vld [vmem:[%s1 + $0xa8] sm:$0xf]
      %v429 = vld [vmem:[%s1 + $0xac] sm:$0xf]
      %v430 = vld [vmem:[%s1 + $0xb0] sm:$0xf]
      %v431 = vld [vmem:[%s1 + $0xb4] sm:$0xf]
      %v432 = vld [vmem:[%s1 + $0xb8] sm:$0xf]
      %v433 = vld [vmem:[%s1 + $0xbc] sm:$0xf]
      %v434 = vld [vmem:[%s1 + $0xc0] sm:$0xf]
      %v435 = vld [vmem:[%s1 + $0xc4] sm:$0xf]
      %v436 = vld [vmem:[%s1 + $0xc8] sm:$0xf]
      %v437 = vld [vmem:[%s1 + $0xcc] sm:$0xf]
      %v438 = vld [vmem:[%s1 + $0xd0] sm:$0xf]
      %v439 = vld [vmem:[%s1 + $0xd4] sm:$0xf]
      %v440 = vld [vmem:[%s1 + $0xd8] sm:$0xf]
      %v441 = vld [vmem:[%s1 + $0xdc] sm:$0xf]
      %v442 = vld [vmem:[%s1 + $0xe0] sm:$0xf]
      %v443 = vld [vmem:[%s1 + $0xe4] sm:$0xf]
      %v444 = vld [vmem:[%s1 + $0xe8] sm:$0xf]
      %v445 = vld [vmem:[%s1 + $0xec] sm:$0xf]
      %v446 = vld [vmem:[%s1 + $0xf0] sm:$0xf]
      %v447 = vld [vmem:[%s1 + $0xf4] sm:$0xf]
      %v448 = vld [vmem:[%s1 + $0xf8] sm:$0xf]
      %v449 = vld [vmem:[%s1 + $0xfc] sm:$0xf]
      %v450 = vld [vmem:[%s1 + $0x100] sm:$0xf]
      %v451 = vld [vmem:[%s1 + $0x104] sm:$0xf]
      %v452 = vld [vmem:[%s1 + $0x108] sm:$0xf]
      %v453 = vld [vmem:[%s1 + $0x10c] sm:$0xf]
      %v454 = vld [vmem:[%s1 + $0x110] sm:$0xf]
      %v455 = vld [vmem:[%s1 + $0x114] sm:$0xf]
      %v456 = vld [vmem:[%s1 + $0x118] sm:$0xf]
      %v457 = vld [vmem:[%s1 + $0x11c] sm:$0xf]
      %v458 = vld [vmem:[%s1 + $0x120] sm:$0xf]
      %v459 = vld [vmem:[%s1 + $0x124] sm:$0xf]
      %v460 = vld [vmem:[%s1 + $0x128] sm:$0xf]
      %v461 = vld [vmem:[%s1 + $0x12c] sm:$0xf]
      %v462 = vld [vmem:[%s1 + $0x130] sm:$0xf]
      %v463 = vld [vmem:[%s1 + $0x134] sm:$0xf]
      %v464 = vld [vmem:[%s1 + $0x138] sm:$0xf]
      %v465 = vld [vmem:[%s1 + $0x13c] sm:$0xf]
      %v466 = vld [vmem:[%s1 + $0x140] sm:$0xf]
      %v467 = vld [vmem:[%s1 + $0x144] sm:$0xf]
      %v468 = vld [vmem:[%s1 + $0x148] sm:$0xf]
      %v469 = vld [vmem:[%s1 + $0x14c] sm:$0xf]
      %v470 = vld [vmem:[%s1 + $0x150] sm:$0xf]
      %v471 = vld [vmem:[%s1 + $0x154] sm:$0xf]
      %v472 = vld [vmem:[%s1 + $0x158] sm:$0xf]
      %v473 = vld [vmem:[%s1 + $0x15c] sm:$0xf]
      %v474 = vld [vmem:[%s1 + $0x160] sm:$0xf]
      %v475 = vld [vmem:[%s1 + $0x164] sm:$0xf]
      %v476 = vld [vmem:[%s1 + $0x168] sm:$0xf]
      %v477 = vld [vmem:[%s1 + $0x16c] sm:$0xf]
      %v478 = vld [vmem:[%s1 + $0x170] sm:$0xf]
      %v479 = vld [vmem:[%s1 + $0x174] sm:$0xf]
      %v480 = vld [vmem:[%s1 + $0x178] sm:$0xf]
      %v481 = vld [vmem:[%s1 + $0x17c] sm:$0xf]
      %v482 = vld [vmem:[%s1 + $0x180] sm:$0xf]
      %v483 = vld [vmem:[%s1 + $0x184] sm:$0xf]
      %v484 = vld [vmem:[%s1 + $0x188] sm:$0xf]
      %v485 = vld [vmem:[%s1 + $0x18c] sm:$0xf]
      %v486 = vld [vmem:[%s1 + $0x190] sm:$0xf]
      %v487 = vld [vmem:[%s1 + $0x194] sm:$0xf]
      %v488 = vld [vmem:[%s1 + $0x198] sm:$0xf]
      %v489 = vld [vmem:[%s1 + $0x19c] sm:$0xf]
      %v490 = vld [vmem:[%s1 + $0x1a0] sm:$0xf]
      %v491 = vld [vmem:[%s1 + $0x1a4] sm:$0xf]
      %v492 = vld [vmem:[%s1 + $0x1a8] sm:$0xf]
      %v493 = vld [vmem:[%s1 + $0x1ac] sm:$0xf]
      %v494 = vld [vmem:[%s1 + $0x1b0] sm:$0xf]
      %v495 = vld [vmem:[%s1 + $0x1b4] sm:$0xf]
      %v496 = vld [vmem:[%s1 + $0x1b8] sm:$0xf]
      %v497 = vld [vmem:[%s1 + $0x1bc] sm:$0xf]
      %v498 = vld [vmem:[%s1 + $0x1c0] sm:$0xf]
      %v499 = vld [vmem:[%s1 + $0x1c4] sm:$0xf]
      %v500 = vld [vmem:[%s1 + $0x1c8] sm:$0xf]
      %v501 = vld [vmem:[%s1 + $0x1cc] sm:$0xf]
      %v502 = vld [vmem:[%s1 + $0x1d0] sm:$0xf]
      %v503 = vld [vmem:[%s1 + $0x1d4] sm:$0xf]
      %v504 = vld [vmem:[%s1 + $0x1d8] sm:$0xf]
      %v505 = vld [vmem:[%s1 + $0x1dc] sm:$0xf]
      %v506 = vld [vmem:[%s1 + $0x1e0] sm:$0xf]
      %v507 = vld [vmem:[%s1 + $0x1e4] sm:$0xf]
      %v508 = vld [vmem:[%s1 + $0x1e8] sm:$0xf]
      %v509 = vld [vmem:[%s1 + $0x1ec] sm:$0xf]
      %v510 = vld [vmem:[%s1 + $0x1f0] sm:$0xf]
      %v511 = vld [vmem:[%s1 + $0x1f4] sm:$0xf]
      %v512 = vld [vmem:[%s1 + $0x1f8] sm:$0xf]
      %v513 = vld [vmem:[%s1 + $0x1fc] sm:$0xf]
      %v514 = vld [vmem:[%s1 + $0x200] sm:$0xf]
      %v515 = vld [vmem:[%s1 + $0x204] sm:$0xf]
      %v516 = vld [vmem:[%s1 + $0x208] sm:$0xf]
      %v517 = vld [vmem:[%s1 + $0x20c] sm:$0xf]
      %v518 = vld [vmem:[%s1 + $0x210] sm:$0xf]
      %v519 = vld [vmem:[%s1 + $0x214] sm:$0xf]
      %v520 = vld [vmem:[%s1 + $0x218] sm:$0xf]
      %v521 = vld [vmem:[%s1 + $0x21c] sm:$0xf]
      %v522 = vld [vmem:[%s1 + $0x220] sm:$0xf]
      %v523 = vld [vmem:[%s1 + $0x224] sm:$0xf]
      %v524 = vld [vmem:[%s1 + $0x228] sm:$0xf]
      %v525 = vld [vmem:[%s1 + $0x22c] sm:$0xf]
      %v526 = vld [vmem:[%s1 + $0x230] sm:$0xf]
      %v527 = vld [vmem:[%s1 + $0x234] sm:$0xf]
      %v528 = vld [vmem:[%s1 + $0x238] sm:$0xf]
      %v529 = vld [vmem:[%s1 + $0x23c] sm:$0xf]
      %v530 = vld [vmem:[%s1 + $0x240] sm:$0xf]
      %v531 = vld [vmem:[%s1 + $0x244] sm:$0xf]
      %v532 = vld [vmem:[%s1 + $0x248] sm:$0xf]
      %v533 = vld [vmem:[%s1 + $0x24c] sm:$0xf]
      %v534 = vld [vmem:[%s1 + $0x250] sm:$0xf]
      %v535 = vld [vmem:[%s1 + $0x254] sm:$0xf]
      %v536 = vld [vmem:[%s1 + $0x258] sm:$0xf]
      %v537 = vld [vmem:[%s1 + $0x25c] sm:$0xf]
      %v538 = vld [vmem:[%s1 + $0x260] sm:$0xf]
      %v539 = vld [vmem:[%s1 + $0x264] sm:$0xf]
      %v540 = vld [vmem:[%s1 + $0x268] sm:$0xf]
      %v541 = vld [vmem:[%s1 + $0x26c] sm:$0xf]
      %v542 = vld [vmem:[%s1 + $0x270] sm:$0xf]
      %v543 = vld [vmem:[%s1 + $0x274] sm:$0xf]
      %v544 = vld [vmem:[%s1 + $0x278] sm:$0xf]
      %v545 = vld [vmem:[%s1 + $0x27c] sm:$0xf]
      %v546 = vld [vmem:[%s1 + $0x280] sm:$0xf]
      %v547 = vld [vmem:[%s1 + $0x284] sm:$0xf]
      %v548 = vld [vmem:[%s1 + $0x288] sm:$0xf]
      %v549 = vld [vmem:[%s1 + $0x28c] sm:$0xf]
      %v550 = vld [vmem:[%s1 + $0x290] sm:$0xf]
      %v551 = vld [vmem:[%s1 + $0x294] sm:$0xf]
      %v552 = vld [vmem:[%s1 + $0x298] sm:$0xf]
      %v553 = vld [vmem:[%s1 + $0x29c] sm:$0xf]
      %v554 = vld [vmem:[%s1 + $0x2a0] sm:$0xf]
      %v555 = vld [vmem:[%s1 + $0x2a4] sm:$0xf]
      %v556 = vld [vmem:[%s1 + $0x2a8] sm:$0xf]
      %v557 = vld [vmem:[%s1 + $0x2ac] sm:$0xf]
      %v558 = vld [vmem:[%s1 + $0x2b0] sm:$0xf]
      %v559 = vld [vmem:[%s1 + $0x2b4] sm:$0xf]
      %v560 = vld [vmem:[%s1 + $0x2b8] sm:$0xf]
      %v561 = vld [vmem:[%s1 + $0x2bc] sm:$0xf]
      %v562 = vld [vmem:[%s1 + $0x2c0] sm:$0xf]
      %v563 = vld [vmem:[%s1 + $0x2c4] sm:$0xf]
      %v564 = vld [vmem:[%s1 + $0x2c8] sm:$0xf]
      %v565 = vld [vmem:[%s1 + $0x2cc] sm:$0xf]
      %v566 = vld [vmem:[%s1 + $0x2d0] sm:$0xf]
      %v567 = vld [vmem:[%s1 + $0x2d4] sm:$0xf]
      %v568 = vld [vmem:[%s1 + $0x2d8] sm:$0xf]
      %v569 = vld [vmem:[%s1 + $0x2dc] sm:$0xf]
      %v570 = vld [vmem:[%s1 + $0x2e0] sm:$0xf]
      %v571 = vld [vmem:[%s1 + $0x2e4] sm:$0xf]
      %v572 = vld [vmem:[%s1 + $0x2e8] sm:$0xf]
      %v573 = vld [vmem:[%s1 + $0x2ec] sm:$0xf]
      %v574 = vld [vmem:[%s1 + $0x2f0] sm:$0xf]
      %v575 = vld [vmem:[%s1 + $0x2f4] sm:$0xf]
      %v576 = vld [vmem:[%s1 + $0x2f8] sm:$0xf]
      %v577 = vld [vmem:[%s1 + $0x2fc] sm:$0xf]
      %v578 = vld [vmem:[%s1 + $0x300] sm:$0xf]
      %v579 = vld [vmem:[%s1 + $0x304] sm:$0xf]
      %v580 = vld [vmem:[%s1 + $0x308] sm:$0xf]
      %v581 = vld [vmem:[%s1 + $0x30c] sm:$0xf]
      %v582 = vld [vmem:[%s1 + $0x310] sm:$0xf]
      %v583 = vld [vmem:[%s1 + $0x314] sm:$0xf]
      %v584 = vld [vmem:[%s1 + $0x318] sm:$0xf]
      %v585 = vld [vmem:[%s1 + $0x31c] sm:$0xf]
      %v586 = vld [vmem:[%s1 + $0x320] sm:$0xf]
      %v587 = vld [vmem:[%s1 + $0x324] sm:$0xf]
      %v588 = vld [vmem:[%s1 + $0x328] sm:$0xf]
      %v589 = vld [vmem:[%s1 + $0x32c] sm:$0xf]
      %v590 = vld [vmem:[%s1 + $0x330] sm:$0xf]
      %v591 = vld [vmem:[%s1 + $0x334] sm:$0xf]
      %v592 = vld [vmem:[%s1 + $0x338] sm:$0xf]
      %v593 = vld [vmem:[%s1 + $0x33c] sm:$0xf]
      %v594 = vld [vmem:[%s1 + $0x340] sm:$0xf]
      %v595 = vld [vmem:[%s1 + $0x344] sm:$0xf]
      %v596 = vld [vmem:[%s1 + $0x348] sm:$0xf]
      %v597 = vld [vmem:[%s1 + $0x34c] sm:$0xf]
      %v598 = vld [vmem:[%s1 + $0x350] sm:$0xf]
      %v599 = vld [vmem:[%s1 + $0x354] sm:$0xf]
      %v600 = vld [vmem:[%s1 + $0x358] sm:$0xf]
      %v601 = vld [vmem:[%s1 + $0x35c] sm:$0xf]
      %v602 = vld [vmem:[%s1 + $0x360] sm:$0xf]
      %v603 = vld [vmem:[%s1 + $0x364] sm:$0xf]
      %v604 = vld [vmem:[%s1 + $0x368] sm:$0xf]
      %v605 = vld [vmem:[%s1 + $0x36c] sm:$0xf]
      %v606 = vld [vmem:[%s1 + $0x370] sm:$0xf]
      %v607 = vld [vmem:[%s1 + $0x374] sm:$0xf]
      %v608 = vld [vmem:[%s1 + $0x378] sm:$0xf]
      %v609 = vld [vmem:[%s1 + $0x37c] sm:$0xf]
      %v610 = vld [vmem:[%s1 + $0x380] sm:$0xf]
      %v611 = vld [vmem:[%s1 + $0x384] sm:$0xf]
      %v612 = vld [vmem:[%s1 + $0x388] sm:$0xf]
      %v613 = vld [vmem:[%s1 + $0x38c] sm:$0xf]
      %v614 = vld [vmem:[%s1 + $0x390] sm:$0xf]
      %v615 = vld [vmem:[%s1 + $0x394] sm:$0xf]
      %v616 = vld [vmem:[%s1 + $0x398] sm:$0xf]
      %v617 = vld [vmem:[%s1 + $0x39c] sm:$0xf]
      %v618 = vld [vmem:[%s1 + $0x3a0] sm:$0xf]
      %v619 = vld [vmem:[%s1 + $0x3a4] sm:$0xf]
      %v620 = vld [vmem:[%s1 + $0x3a8] sm:$0xf]
      %v621 = vld [vmem:[%s1 + $0x3ac] sm:$0xf]
      %v622 = vld [vmem:[%s1 + $0x3b0] sm:$0xf]
      %v623 = vld [vmem:[%s1 + $0x3b4] sm:$0xf]
      %v624 = vld [vmem:[%s1 + $0x3b8] sm:$0xf]
      %v625 = vld [vmem:[%s1 + $0x3bc] sm:$0xf]
      %v626 = vld [vmem:[%s1 + $0x3c0] sm:$0xf]
      %v627 = vld [vmem:[%s1 + $0x3c4] sm:$0xf]
      %v628 = vld [vmem:[%s1 + $0x3c8] sm:$0xf]
      %v629 = vld [vmem:[%s1 + $0x3cc] sm:$0xf]
      %v630 = vld [vmem:[%s1 + $0x3d0] sm:$0xf]
      %v631 = vld [vmem:[%s1 + $0x3d4] sm:$0xf]
      %v632 = vld [vmem:[%s1 + $0x3d8] sm:$0xf]
      %v633 = vld [vmem:[%s1 + $0x3dc] sm:$0xf]
      %v634 = vld [vmem:[%s1 + $0x3e0] sm:$0xf]
      %v635 = vld [vmem:[%s1 + $0x3e4] sm:$0xf]
      %v636 = vld [vmem:[%s1 + $0x3e8] sm:$0xf]
      %v637 = vld [vmem:[%s1 + $0x3ec] sm:$0xf]
      %v638 = vld [vmem:[%s1 + $0x3f0] sm:$0xf]
      %v639 = vld [vmem:[%s1 + $0x3f4] sm:$0xf]
      %v640 = vld [vmem:[%s1 + $0x3f8] sm:$0xf]
      %v641 = vld [vmem:[%s1 + $0x3fc] sm:$0xf]
      %v642 = vld [vmem:[%s1 + $0x400] sm:$0xf]
      %v643 = vld [vmem:[%s1 + $0x404] sm:$0xf]
      %v644 = vld [vmem:[%s1 + $0x408] sm:$0xf]
      %v645 = vld [vmem:[%s1 + $0x40c] sm:$0xf]
      %v646 = vld [vmem:[%s1 + $0x410] sm:$0xf]
      %v647 = vld [vmem:[%s1 + $0x414] sm:$0xf]
      %v648 = vld [vmem:[%s1 + $0x418] sm:$0xf]
      %v649 = vld [vmem:[%s1 + $0x41c] sm:$0xf]
      %v650 = vld [vmem:[%s1 + $0x420] sm:$0xf]
      %v651 = vld [vmem:[%s1 + $0x424] sm:$0xf]
      %v652 = vld [vmem:[%s1 + $0x428] sm:$0xf]
      %v653 = vld [vmem:[%s1 + $0x42c] sm:$0xf]
      %v654 = vld [vmem:[%s1 + $0x430] sm:$0xf]
      %v655 = vld [vmem:[%s1 + $0x434] sm:$0xf]
      %v656 = vld [vmem:[%s1 + $0x438] sm:$0xf]
      %v657 = vld [vmem:[%s1 + $0x43c] sm:$0xf]
      %v658 = vld [vmem:[%s1 + $0x440] sm:$0xf]
      %v659 = vld [vmem:[%s1 + $0x444] sm:$0xf]
      %v660 = vld [vmem:[%s1 + $0x448] sm:$0xf]
      %v661 = vld [vmem:[%s1 + $0x44c] sm:$0xf]
      %v662 = vld [vmem:[%s1 + $0x450] sm:$0xf]
      %v663 = vld [vmem:[%s1 + $0x454] sm:$0xf]
      %v664 = vld [vmem:[%s1 + $0x458] sm:$0xf]
      %v665 = vld [vmem:[%s1 + $0x45c] sm:$0xf]
      %v666 = vld [vmem:[%s1 + $0x460] sm:$0xf]
      %v667 = vld [vmem:[%s1 + $0x464] sm:$0xf]
      %v668 = vld [vmem:[%s1 + $0x468] sm:$0xf]
      %v669 = vld [vmem:[%s1 + $0x46c] sm:$0xf]
      %v670 = vld [vmem:[%s1 + $0x470] sm:$0xf]
      %v671 = vld [vmem:[%s1 + $0x474] sm:$0xf]
      %v672 = vld [vmem:[%s1 + $0x478] sm:$0xf]
      %v673 = vld [vmem:[%s1 + $0x47c] sm:$0xf]
      %v674 = vld [vmem:[%s1 + $0x480] sm:$0xf]
      %v675 = vld [vmem:[%s1 + $0x484] sm:$0xf]
      %v676 = vld [vmem:[%s1 + $0x488] sm:$0xf]
      %v677 = vld [vmem:[%s1 + $0x48c] sm:$0xf]
      %v678 = vld [vmem:[%s1 + $0x490] sm:$0xf]
      %v679 = vld [vmem:[%s1 + $0x494] sm:$0xf]
      %v680 = vld [vmem:[%s1 + $0x498] sm:$0xf]
      %v681 = vld [vmem:[%s1 + $0x49c] sm:$0xf]
      %v682 = vld [vmem:[%s1 + $0x4a0] sm:$0xf]
      %v683 = vld [vmem:[%s1 + $0x4a4] sm:$0xf]
      %v684 = vld [vmem:[%s1 + $0x4a8] sm:$0xf]
      %v685 = vld [vmem:[%s1 + $0x4ac] sm:$0xf]
      %v686 = vld [vmem:[%s1 + $0x4b0] sm:$0xf]
      %v687 = vld [vmem:[%s1 + $0x4b4] sm:$0xf]
      %v688 = vld [vmem:[%s1 + $0x4b8] sm:$0xf]
      %v689 = vld [vmem:[%s1 + $0x4bc] sm:$0xf]
      %v690 = vld [vmem:[%s1 + $0x4c0] sm:$0xf]
      %v691 = vld [vmem:[%s1 + $0x4c4] sm:$0xf]
      %v692 = vld [vmem:[%s1 + $0x4c8] sm:$0xf]
      %v693 = vld [vmem:[%s1 + $0x4cc] sm:$0xf]
      %v694 = vld [vmem:[%s1 + $0x4d0] sm:$0xf]
      %v695 = vld [vmem:[%s1 + $0x4d4] sm:$0xf]
      %v696 = vld [vmem:[%s1 + $0x4d8] sm:$0xf]
      %v697 = vld [vmem:[%s1 + $0x4dc] sm:$0xf]
      %v698 = vld [vmem:[%s1 + $0x4e0] sm:$0xf]
      %v699 = vld [vmem:[%s1 + $0x4e4] sm:$0xf]
      %v700 = vld [vmem:[%s1 + $0x4e8] sm:$0xf]
      %v701 = vld [vmem:[%s1 + $0x4ec] sm:$0xf]
      %v702 = vld [vmem:[%s1 + $0x4f0] sm:$0xf]
      %v703 = vld [vmem:[%s1 + $0x4f4] sm:$0xf]
      %v704 = vld [vmem:[%s1 + $0x4f8] sm:$0xf]
      %v705 = vld [vmem:[%s1 + $0x4fc] sm:$0xf]
      %v706 = vld [vmem:[%s1 + $0x500] sm:$0xf]
      %v707 = vld [vmem:[%s1 + $0x504] sm:$0xf]
      %v708 = vld [vmem:[%s1 + $0x508] sm:$0xf]
      %v709 = vld [vmem:[%s1 + $0x50c] sm:$0xf]
      %v710 = vld [vmem:[%s1 + $0x510] sm:$0xf]
      %v711 = vld [vmem:[%s1 + $0x514] sm:$0xf]
      %v712 = vld [vmem:[%s1 + $0x518] sm:$0xf]
      %v713 = vld [vmem:[%s1 + $0x51c] sm:$0xf]
      %v714 = vld [vmem:[%s1 + $0x520] sm:$0xf]
      %v715 = vld [vmem:[%s1 + $0x524] sm:$0xf]
      %v716 = vld [vmem:[%s1 + $0x528] sm:$0xf]
      %v717 = vld [vmem:[%s1 + $0x52c] sm:$0xf]
      %v718 = vld [vmem:[%s1 + $0x530] sm:$0xf]
      %v719 = vld [vmem:[%s1 + $0x534] sm:$0xf]
      %v720 = vld [vmem:[%s1 + $0x538] sm:$0xf]
      %v721 = vld [vmem:[%s1 + $0x53c] sm:$0xf]
      %v722 = vld [vmem:[%s1 + $0x540] sm:$0xf]
      %v723 = vld [vmem:[%s1 + $0x544] sm:$0xf]
      %v724 = vld [vmem:[%s1 + $0x548] sm:$0xf]
      %v725 = vld [vmem:[%s1 + $0x54c] sm:$0xf]
      %v726 = vld [vmem:[%s1 + $0x550] sm:$0xf]
      %v727 = vld [vmem:[%s1 + $0x554] sm:$0xf]
      %v728 = vld [vmem:[%s1 + $0x558] sm:$0xf]
      %v729 = vld [vmem:[%s1 + $0x55c] sm:$0xf]
      %v730 = vld [vmem:[%s1 + $0x560] sm:$0xf]
      %v731 = vld [vmem:[%s1 + $0x564] sm:$0xf]
      %v732 = vld [vmem:[%s1 + $0x568] sm:$0xf]
      %v733 = vld [vmem:[%s1 + $0x56c] sm:$0xf]
      %v734 = vld [vmem:[%s1 + $0x570] sm:$0xf]
      %v735 = vld [vmem:[%s1 + $0x574] sm:$0xf]
      %v736 = vld [vmem:[%s1 + $0x578] sm:$0xf]
      %v737 = vld [vmem:[%s1 + $0x57c] sm:$0xf]
      %v738 = vld [vmem:[%s1 + $0x580] sm:$0xf]
      %v739 = vld [vmem:[%s1 + $0x584] sm:$0xf]
      %v740 = vld [vmem:[%s1 + $0x588] sm:$0xf]
      %v741 = vld [vmem:[%s1 + $0x58c] sm:$0xf]
      %v742 = vld [vmem:[%s1 + $0x590] sm:$0xf]
      %v743 = vld [vmem:[%s1 + $0x594] sm:$0xf]
      %v744 = vld [vmem:[%s1 + $0x598] sm:$0xf]
      %v745 = vld [vmem:[%s1 + $0x59c] sm:$0xf]
      %v746 = vld [vmem:[%s1 + $0x5a0] sm:$0xf]
      %v747 = vld [vmem:[%s1 + $0x5a4] sm:$0xf]
      %v748 = vld [vmem:[%s1 + $0x5a8] sm:$0xf]
      %v749 = vld [vmem:[%s1 + $0x5ac] sm:$0xf]
      %v750 = vld [vmem:[%s1 + $0x5b0] sm:$0xf]
      %v751 = vld [vmem:[%s1 + $0x5b4] sm:$0xf]
      %v752 = vld [vmem:[%s1 + $0x5b8] sm:$0xf]
      %v753 = vld [vmem:[%s1 + $0x5bc] sm:$0xf]
      %v754 = vld [vmem:[%s1 + $0x5c0] sm:$0xf]
      %v755 = vld [vmem:[%s1 + $0x5c4] sm:$0xf]
      %v756 = vld [vmem:[%s1 + $0x5c8] sm:$0xf]
      %v757 = vld [vmem:[%s1 + $0x5cc] sm:$0xf]
      %v758 = vld [vmem:[%s1 + $0x5d0] sm:$0xf]
      %v759 = vld [vmem:[%s1 + $0x5d4] sm:$0xf]
      %v760 = vld [vmem:[%s1 + $0x5d8] sm:$0xf]
      %v761 = vld [vmem:[%s1 + $0x5dc] sm:$0xf]
      %v762 = vld [vmem:[%s1 + $0x5e0] sm:$0xf]
      %v763 = vld [vmem:[%s1 + $0x5e4] sm:$0xf]
      %v764 = vld [vmem:[%s1 + $0x5e8] sm:$0xf]
      %v765 = vld [vmem:[%s1 + $0x5ec] sm:$0xf]
      %v766 = vld [vmem:[%s1 + $0x5f0] sm:$0xf]
      %v767 = vld [vmem:[%s1 + $0x5f4] sm:$0xf]
      %v768 = vld [vmem:[%s1 + $0x5f8] sm:$0xf]
      %v769 = vld [vmem:[%s1 + $0x5fc] sm:$0xf]
      %v770 = vld [vmem:[%s1 + $0x600] sm:$0xf]
      %v771 = vld [vmem:[%s1 + $0x604] sm:$0xf]
      %v772 = vld [vmem:[%s1 + $0x608] sm:$0xf]
      %v773 = vld [vmem:[%s1 + $0x60c] sm:$0xf]
      %v774 = vld [vmem:[%s1 + $0x610] sm:$0xf]
      %v775 = vld [vmem:[%s1 + $0x614] sm:$0xf]
      %v776 = vld [vmem:[%s1 + $0x618] sm:$0xf]
      %v777 = vld [vmem:[%s1 + $0x61c] sm:$0xf]
      %v778 = vld [vmem:[%s1 + $0x620] sm:$0xf]
      %v779 = vld [vmem:[%s1 + $0x624] sm:$0xf]
      %v780 = vld [vmem:[%s1 + $0x628] sm:$0xf]
      %v781 = vld [vmem:[%s1 + $0x62c] sm:$0xf]
      %v782 = vld [vmem:[%s1 + $0x630] sm:$0xf]
      %v783 = vld [vmem:[%s1 + $0x634] sm:$0xf]
      %v784 = vld [vmem:[%s1 + $0x638] sm:$0xf]
      %v785 = vld [vmem:[%s1 + $0x63c] sm:$0xf]
      %v786 = vld [vmem:[%s1 + $0x640] sm:$0xf]
      %v787 = vld [vmem:[%s1 + $0x644] sm:$0xf]
      %v788 = vld [vmem:[%s1 + $0x648] sm:$0xf]
      %v789 = vld [vmem:[%s1 + $0x64c] sm:$0xf]
      %v790 = vld [vmem:[%s1 + $0x650] sm:$0xf]
      %v791 = vld [vmem:[%s1 + $0x654] sm:$0xf]
      %v792 = vld [vmem:[%s1 + $0x658] sm:$0xf]
      %v793 = vld [vmem:[%s1 + $0x65c] sm:$0xf]
      %v794 = vld [vmem:[%s1 + $0x660] sm:$0xf]
      %v795 = vld [vmem:[%s1 + $0x664] sm:$0xf]
      %v796 = vld [vmem:[%s1 + $0x668] sm:$0xf]
      %v797 = vld [vmem:[%s1 + $0x66c] sm:$0xf]
      %v798 = vld [vmem:[%s1 + $0x670] sm:$0xf]
      %v799 = vld [vmem:[%s1 + $0x674] sm:$0xf]
      %v800 = vld [vmem:[%s1 + $0x678] sm:$0xf]
      %v801 = vld [vmem:[%s1 + $0x67c] sm:$0xf]
      %v802 = vld [vmem:[%s1 + $0x680] sm:$0xf]
      %v803 = vld [vmem:[%s1 + $0x684] sm:$0xf]
      %v804 = vld [vmem:[%s1 + $0x688] sm:$0xf]
      %v805 = vld [vmem:[%s1 + $0x68c] sm:$0xf]
      %v806 = vld [vmem:[%s1 + $0x690] sm:$0xf]
      %v807 = vld [vmem:[%s1 + $0x694] sm:$0xf]
      %v808 = vld [vmem:[%s1 + $0x698] sm:$0xf]
      %v809 = vld [vmem:[%s1 + $0x69c] sm:$0xf]
      %v810 = vld [vmem:[%s1 + $0x6a0] sm:$0xf]
      %v811 = vld [vmem:[%s1 + $0x6a4] sm:$0xf]
      %v812 = vld [vmem:[%s1 + $0x6a8] sm:$0xf]
      %v813 = vld [vmem:[%s1 + $0x6ac] sm:$0xf]
      %v814 = vld [vmem:[%s1 + $0x6b0] sm:$0xf]
      %v815 = vld [vmem:[%s1 + $0x6b4] sm:$0xf]
      %v816 = vld [vmem:[%s1 + $0x6b8] sm:$0xf]
      %v817 = vld [vmem:[%s1 + $0x6bc] sm:$0xf]
      %v818 = vld [vmem:[%s1 + $0x6c0] sm:$0xf]
      %v819 = vld [vmem:[%s1 + $0x6c4] sm:$0xf]
      %v820 = vld [vmem:[%s1 + $0x6c8] sm:$0xf]
      %v821 = vld [vmem:[%s1 + $0x6cc] sm:$0xf]
      %v822 = vld [vmem:[%s1 + $0x6d0] sm:$0xf]
      %v823 = vld [vmem:[%s1 + $0x6d4] sm:$0xf]
      %v824 = vld [vmem:[%s1 + $0x6d8] sm:$0xf]
      %v825 = vld [vmem:[%s1 + $0x6dc] sm:$0xf]
      %v826 = vld [vmem:[%s1 + $0x6e0] sm:$0xf]
      %v827 = vld [vmem:[%s1 + $0x6e4] sm:$0xf]
      %v828 = vld [vmem:[%s1 + $0x6e8] sm:$0xf]
      %v829 = vld [vmem:[%s1 + $0x6ec] sm:$0xf]
      %v830 = vld [vmem:[%s1 + $0x6f0] sm:$0xf]
      %v831 = vld [vmem:[%s1 + $0x6f4] sm:$0xf]
      %v832 = vld [vmem:[%s1 + $0x6f8] sm:$0xf]
      %v833 = vld [vmem:[%s1 + $0x6fc] sm:$0xf]
      %v834 = vld [vmem:[%s1 + $0x700] sm:$0xf]
      %v835 = vld [vmem:[%s1 + $0x704] sm:$0xf]
      %v836 = vld [vmem:[%s1 + $0x708] sm:$0xf]
      %v837 = vld [vmem:[%s1 + $0x70c] sm:$0xf]
      %v838 = vld [vmem:[%s1 + $0x710] sm:$0xf]
      %v839 = vld [vmem:[%s1 + $0x714] sm:$0xf]
      %v840 = vld [vmem:[%s1 + $0x718] sm:$0xf]
      %v841 = vld [vmem:[%s1 + $0x71c] sm:$0xf]
      %v842 = vld [vmem:[%s1 + $0x720] sm:$0xf]
      %v843 = vld [vmem:[%s1 + $0x724] sm:$0xf]
      %v844 = vld [vmem:[%s1 + $0x728] sm:$0xf]
      %v845 = vld [vmem:[%s1 + $0x72c] sm:$0xf]
      %v846 = vld [vmem:[%s1 + $0x730] sm:$0xf]
      %v847 = vld [vmem:[%s1 + $0x734] sm:$0xf]
      %v848 = vld [vmem:[%s1 + $0x738] sm:$0xf]
      %v849 = vld [vmem:[%s1 + $0x73c] sm:$0xf]
      %v850 = vld [vmem:[%s1 + $0x740] sm:$0xf]
      %v851 = vld [vmem:[%s1 + $0x744] sm:$0xf]
      %v852 = vld [vmem:[%s1 + $0x748] sm:$0xf]
      %v853 = vld [vmem:[%s1 + $0x74c] sm:$0xf]
      %v854 = vld [vmem:[%s1 + $0x750] sm:$0xf]
      %v855 = vld [vmem:[%s1 + $0x754] sm:$0xf]
      %v856 = vld [vmem:[%s1 + $0x758] sm:$0xf]
      %v857 = vld [vmem:[%s1 + $0x75c] sm:$0xf]
      %v858 = vld [vmem:[%s1 + $0x760] sm:$0xf]
      %v859 = vld [vmem:[%s1 + $0x764] sm:$0xf]
      %v860 = vld [vmem:[%s1 + $0x768] sm:$0xf]
      %v861 = vld [vmem:[%s1 + $0x76c] sm:$0xf]
      %v862 = vld [vmem:[%s1 + $0x770] sm:$0xf]
      %v863 = vld [vmem:[%s1 + $0x774] sm:$0xf]
      %v864 = vld [vmem:[%s1 + $0x778] sm:$0xf]
      %v865 = vld [vmem:[%s1 + $0x77c] sm:$0xf]
      %v866 = vld [vmem:[%s1 + $0x780] sm:$0xf]
      %v867 = vld [vmem:[%s1 + $0x784] sm:$0xf]
      %v868 = vld [vmem:[%s1 + $0x788] sm:$0xf]
      %v869 = vld [vmem:[%s1 + $0x78c] sm:$0xf]
      %v870 = vld [vmem:[%s1 + $0x790] sm:$0xf]
      %v871 = vld [vmem:[%s1 + $0x794] sm:$0xf]
      %v872 = vld [vmem:[%s1 + $0x798] sm:$0xf]
      %v873 = vld [vmem:[%s1 + $0x79c] sm:$0xf]
      %v874 = vld [vmem:[%s1 + $0x7a0] sm:$0xf]
      %v875 = vld [vmem:[%s1 + $0x7a4] sm:$0xf]
      %v876 = vld [vmem:[%s1 + $0x7a8] sm:$0xf]
      %v877 = vld [vmem:[%s1 + $0x7ac] sm:$0xf]
      %v878 = vld [vmem:[%s1 + $0x7b0] sm:$0xf]
      %v879 = vld [vmem:[%s1 + $0x7b4] sm:$0xf]
      %v880 = vld [vmem:[%s1 + $0x7b8] sm:$0xf]
      %v881 = vld [vmem:[%s1 + $0x7bc] sm:$0xf]
      %v882 = vld [vmem:[%s1 + $0x7c0] sm:$0xf]
      %v883 = vld [vmem:[%s1 + $0x7c4] sm:$0xf]
      %v884 = vld [vmem:[%s1 + $0x7c8] sm:$0xf]
      %v885 = vld [vmem:[%s1 + $0x7cc] sm:$0xf]
      %v886 = vld [vmem:[%s1 + $0x7d0] sm:$0xf]
      %v887 = vld [vmem:[%s1 + $0x7d4] sm:$0xf]
      %v888 = vld [vmem:[%s1 + $0x7d8] sm:$0xf]
      %v889 = vld [vmem:[%s1 + $0x7dc] sm:$0xf]
      %v890 = vld [vmem:[%s1 + $0x7e0] sm:$0xf]
      %v891 = vld [vmem:[%s1 + $0x7e4] sm:$0xf]
      %v892 = vld [vmem:[%s1 + $0x7e8] sm:$0xf]
      %v893 = vld [vmem:[%s1 + $0x7ec] sm:$0xf]
      %v894 = vld [vmem:[%s1 + $0x7f0] sm:$0xf]
      %v895 = vld [vmem:[%s1 + $0x7f4] sm:$0xf]
      %v896 = vld [vmem:[%s1 + $0x7f8] sm:$0xf]
      %v897 = vld [vmem:[%s1 + $0x7fc] sm:$0xf]
      %v898 = vld [vmem:[%s1 + $0x800] sm:$0xf]
      %v899 = vld [vmem:[%s1 + $0x804] sm:$0xf]
      %v900 = vld [vmem:[%s1 + $0x808] sm:$0xf]
      %v901 = vld [vmem:[%s1 + $0x80c] sm:$0xf]
      %v902 = vld [vmem:[%s1 + $0x810] sm:$0xf]
      %v903 = vld [vmem:[%s1 + $0x814] sm:$0xf]
      %v904 = vld [vmem:[%s1 + $0x818] sm:$0xf]
      %v905 = vld [vmem:[%s1 + $0x81c] sm:$0xf]
      %v906 = vld [vmem:[%s1 + $0x820] sm:$0xf]
      %v907 = vld [vmem:[%s1 + $0x824] sm:$0xf]
      %v908 = vld [vmem:[%s1 + $0x828] sm:$0xf]
      %v909 = vld [vmem:[%s1 + $0x82c] sm:$0xf]
      %v910 = vld [vmem:[%s1 + $0x830] sm:$0xf]
      %v911 = vld [vmem:[%s1 + $0x834] sm:$0xf]
      %v912 = vld [vmem:[%s1 + $0x838] sm:$0xf]
      %v913 = vld [vmem:[%s1 + $0x83c] sm:$0xf]
      %v914 = vld [vmem:[%s1 + $0x840] sm:$0xf]
      %v915 = vld [vmem:[%s1 + $0x844] sm:$0xf]
      %v916 = vld [vmem:[%s1 + $0x848] sm:$0xf]
      %v917 = vld [vmem:[%s1 + $0x84c] sm:$0xf]
      %v918 = vld [vmem:[%s1 + $0x850] sm:$0xf]
      %v919 = vld [vmem:[%s1 + $0x854] sm:$0xf]
      %v920 = vld [vmem:[%s1 + $0x858] sm:$0xf]
      %v921 = vld [vmem:[%s1 + $0x85c] sm:$0xf]
      %v922 = vld [vmem:[%s1 + $0x860] sm:$0xf]
      %v923 = vld [vmem:[%s1 + $0x864] sm:$0xf]
      %v924 = vld [vmem:[%s1 + $0x868] sm:$0xf]
      %v925 = vld [vmem:[%s1 + $0x86c] sm:$0xf]
      %v926 = vld [vmem:[%s1 + $0x870] sm:$0xf]
      %v927 = vld [vmem:[%s1 + $0x874] sm:$0xf]
      %v928 = vld [vmem:[%s1 + $0x878] sm:$0xf]
      %v929 = vld [vmem:[%s1 + $0x87c] sm:$0xf]
      %v930 = vld [vmem:[%s1 + $0x880] sm:$0xf]
      %v931 = vld [vmem:[%s1 + $0x884] sm:$0xf]
      %v932 = vld [vmem:[%s1 + $0x888] sm:$0xf]
      %v933 = vld [vmem:[%s1 + $0x88c] sm:$0xf]
      %v934 = vld [vmem:[%s1 + $0x890] sm:$0xf]
      %v935 = vld [vmem:[%s1 + $0x894] sm:$0xf]
      %v936 = vld [vmem:[%s1 + $0x898] sm:$0xf]
      %v937 = vld [vmem:[%s1 + $0x89c] sm:$0xf]
      %v938 = vld [vmem:[%s1 + $0x8a0] sm:$0xf]
      %v939 = vld [vmem:[%s1 + $0x8a4] sm:$0xf]
      %v940 = vld [vmem:[%s1 + $0x8a8] sm:$0xf]
      %v941 = vld [vmem:[%s1 + $0x8ac] sm:$0xf]
      %v942 = vld [vmem:[%s1 + $0x8b0] sm:$0xf]
      %v943 = vld [vmem:[%s1 + $0x8b4] sm:$0xf]
      %v944 = vld [vmem:[%s1 + $0x8b8] sm:$0xf]
      %v945 = vld [vmem:[%s1 + $0x8bc] sm:$0xf]
      %v946 = vld [vmem:[%s1 + $0x8c0] sm:$0xf]
      %v947 = vld [vmem:[%s1 + $0x8c4] sm:$0xf]
      %v948 = vld [vmem:[%s1 + $0x8c8] sm:$0xf]
      %v949 = vld [vmem:[%s1 + $0x8cc] sm:$0xf]
      %v950 = vld [vmem:[%s1 + $0x8d0] sm:$0xf]
      %v951 = vld [vmem:[%s1 + $0x8d4] sm:$0xf]
      %v952 = vld [vmem:[%s1 + $0x8d8] sm:$0xf]
      %v953 = vld [vmem:[%s1 + $0x8dc] sm:$0xf]
      %v954 = vld [vmem:[%s1 + $0x8e0] sm:$0xf]
      %v955 = vld [vmem:[%s1 + $0x8e4] sm:$0xf]
      %v956 = vld [vmem:[%s1 + $0x8e8] sm:$0xf]
      %v957 = vld [vmem:[%s1 + $0x8ec] sm:$0xf]
      %v958 = vld [vmem:[%s1 + $0x8f0] sm:$0xf]
      %v959 = vld [vmem:[%s1 + $0x8f4] sm:$0xf]
      %v960 = vld [vmem:[%s1 + $0x8f8] sm:$0xf]
      %v961 = vld [vmem:[%s1 + $0x8fc] sm:$0xf]
      %v962 = vld [vmem:[%s1 + $0x900] sm:$0xf]
      %v963 = vld [vmem:[%s1 + $0x904] sm:$0xf]
      %v964 = vld [vmem:[%s1 + $0x908] sm:$0xf]
      %v965 = vld [vmem:[%s1 + $0x90c] sm:$0xf]
      %v966 = vld [vmem:[%s1 + $0x910] sm:$0xf]
      %v967 = vld [vmem:[%s1 + $0x914] sm:$0xf]
      %v968 = vld [vmem:[%s1 + $0x918] sm:$0xf]
      %v969 = vld [vmem:[%s1 + $0x91c] sm:$0xf]
      %v970 = vld [vmem:[%s1 + $0x920] sm:$0xf]
      %v971 = vld [vmem:[%s1 + $0x924] sm:$0xf]
      %v972 = vld [vmem:[%s1 + $0x928] sm:$0xf]
      %v973 = vld [vmem:[%s1 + $0x92c] sm:$0xf]
      %v974 = vld [vmem:[%s1 + $0x930] sm:$0xf]
      %v975 = vld [vmem:[%s1 + $0x934] sm:$0xf]
      %v976 = vld [vmem:[%s1 + $0x938] sm:$0xf]
      %v977 = vld [vmem:[%s1 + $0x93c] sm:$0xf]
      %v978 = vld [vmem:[%s1 + $0x940] sm:$0xf]
      %v979 = vld [vmem:[%s1 + $0x944] sm:$0xf]
      %v980 = vld [vmem:[%s1 + $0x948] sm:$0xf]
      %v981 = vld [vmem:[%s1 + $0x94c] sm:$0xf]
      %v982 = vld [vmem:[%s1 + $0x950] sm:$0xf]
      %v983 = vld [vmem:[%s1 + $0x954] sm:$0xf]
      %v984 = vld [vmem:[%s1 + $0x958] sm:$0xf]
      %v985 = vld [vmem:[%s1 + $0x95c] sm:$0xf]
      %v986 = vld [vmem:[%s1 + $0x960] sm:$0xf]
      %v987 = vld [vmem:[%s1 + $0x964] sm:$0xf]
      %v988 = vld [vmem:[%s1 + $0x968] sm:$0xf]
      %v989 = vld [vmem:[%s1 + $0x96c] sm:$0xf]
      %v990 = vld [vmem:[%s1 + $0x970] sm:$0xf]
      %v991 = vld [vmem:[%s1 + $0x974] sm:$0xf]
      %v992 = vld [vmem:[%s1 + $0x978] sm:$0xf]
      %v993 = vld [vmem:[%s1 + $0x97c] sm:$0xf]
      %v994 = vld [vmem:[%s1 + $0x980] sm:$0xf]
      %v995 = vld [vmem:[%s1 + $0x984] sm:$0xf]
      %v996 = vld [vmem:[%s1 + $0x988] sm:$0xf]
      %v997 = vld [vmem:[%s1 + $0x98c] sm:$0xf]
      %v998 = vld [vmem:[%s1 + $0x990] sm:$0xf]
      %v999 = vld [vmem:[%s1 + $0x994] sm:$0xf]
      %v1000 = vld [vmem:[%s1 + $0x998] sm:$0xf]
      %v1001 = vld [vmem:[%s1 + $0x99c] sm:$0xf]
      %v1002 = vld [vmem:[%s1 + $0x9a0] sm:$0xf]
      %v1003 = vld [vmem:[%s1 + $0x9a4] sm:$0xf]
      %v1004 = vld [vmem:[%s1 + $0x9a8] sm:$0xf]
      %v1005 = vld [vmem:[%s1 + $0x9ac] sm:$0xf]
      %v1006 = vld [vmem:[%s1 + $0x9b0] sm:$0xf]
      %v1007 = vld [vmem:[%s1 + $0x9b4] sm:$0xf]
      %v1008 = vld [vmem:[%s1 + $0x9b8] sm:$0xf]
      %v1009 = vld [vmem:[%s1 + $0x9bc] sm:$0xf]
      %v1010 = vld [vmem:[%s1 + $0x9c0] sm:$0xf]
      %v1011 = vld [vmem:[%s1 + $0x9c4] sm:$0xf]
      %v1012 = vld [vmem:[%s1 + $0x9c8] sm:$0xf]
      %v1013 = vld [vmem:[%s1 + $0x9cc] sm:$0xf]
      %v1014 = vld [vmem:[%s1 + $0x9d0] sm:$0xf]
      %v1015 = vld [vmem:[%s1 + $0x9d4] sm:$0xf]
      %v1016 = vld [vmem:[%s1 + $0x9d8] sm:$0xf]
      %v1017 = vld [vmem:[%s1 + $0x9dc] sm:$0xf]
      %v1018 = vld [vmem:[%s1 + $0x9e0] sm:$0xf]
      %v1019 = vld [vmem:[%s1 + $0x9e4] sm:$0xf]
      %v1020 = vld [vmem:[%s1 + $0x9e8] sm:$0xf]
      %v1021 = vld [vmem:[%s1 + $0x9ec] sm:$0xf]
      %v1022 = vld [vmem:[%s1 + $0x9f0] sm:$0xf]
      %v1023 = vld [vmem:[%s1 + $0x9f4] sm:$0xf]
      %v1024 = vld [vmem:[%s1 + $0x9f8] sm:$0xf]
      %v1025 = vld [vmem:[%s1 + $0x9fc] sm:$0xf]
      %v1026 = vld [vmem:[%s1 + $0xa00] sm:$0xf]
      %v1027 = vld [vmem:[%s1 + $0xa04] sm:$0xf]
      %v1028 = vld [vmem:[%s1 + $0xa08] sm:$0xf]
      %v1029 = vld [vmem:[%s1 + $0xa0c] sm:$0xf]
      %v1030 = vld [vmem:[%s1 + $0xa10] sm:$0xf]
      %v1031 = vld [vmem:[%s1 + $0xa14] sm:$0xf]
      %v1032 = vld [vmem:[%s1 + $0xa18] sm:$0xf]
      %v1033 = vld [vmem:[%s1 + $0xa1c] sm:$0xf]
      %v1034 = vld [vmem:[%s1 + $0xa20] sm:$0xf]
      %v1035 = vld [vmem:[%s1 + $0xa24] sm:$0xf]
      %v1036 = vld [vmem:[%s1 + $0xa28] sm:$0xf]
      %v1037 = vld [vmem:[%s1 + $0xa2c] sm:$0xf]
      %v1038 = vld [vmem:[%s1 + $0xa30] sm:$0xf]
      %v1039 = vld [vmem:[%s1 + $0xa34] sm:$0xf]
      %v1040 = vld [vmem:[%s1 + $0xa38] sm:$0xf]
      %v1041 = vld [vmem:[%s1 + $0xa3c] sm:$0xf]
      %v1042 = vld [vmem:[%s1 + $0xa40] sm:$0xf]
      %v1043 = vld [vmem:[%s1 + $0xa44] sm:$0xf]
      %v1044 = vld [vmem:[%s1 + $0xa48] sm:$0xf]
      %v1045 = vld [vmem:[%s1 + $0xa4c] sm:$0xf]
      %v1046 = vld [vmem:[%s1 + $0xa50] sm:$0xf]
      %v1047 = vld [vmem:[%s1 + $0xa54] sm:$0xf]
      %v1048 = vld [vmem:[%s1 + $0xa58] sm:$0xf]
      %v1049 = vld [vmem:[%s1 + $0xa5c] sm:$0xf]
      %v1050 = vld [vmem:[%s1 + $0xa60] sm:$0xf]
      %v1051 = vld [vmem:[%s1 + $0xa64] sm:$0xf]
      %v1052 = vld [vmem:[%s1 + $0xa68] sm:$0xf]
      %v1053 = vld [vmem:[%s1 + $0xa6c] sm:$0xf]
      %v1054 = vld [vmem:[%s1 + $0xa70] sm:$0xf]
      %v1055 = vld [vmem:[%s1 + $0xa74] sm:$0xf]
      %v1056 = vld [vmem:[%s1 + $0xa78] sm:$0xf]
      %v1057 = vld [vmem:[%s1 + $0xa7c] sm:$0xf]
      %v1058 = vld [vmem:[%s1 + $0xa80] sm:$0xf]
      %v1059 = vld [vmem:[%s1 + $0xa84] sm:$0xf]
      %v1060 = vld [vmem:[%s1 + $0xa88] sm:$0xf]
      %v1061 = vld [vmem:[%s1 + $0xa8c] sm:$0xf]
      %v1062 = vld [vmem:[%s1 + $0xa90] sm:$0xf]
      %v1063 = vld [vmem:[%s1 + $0xa94] sm:$0xf]
      %v1064 = vld [vmem:[%s1 + $0xa98] sm:$0xf]
      %v1065 = vld [vmem:[%s1 + $0xa9c] sm:$0xf]
      %v1066 = vld [vmem:[%s1 + $0xaa0] sm:$0xf]
      %v1067 = vld [vmem:[%s1 + $0xaa4] sm:$0xf]
      %v1068 = vld [vmem:[%s1 + $0xaa8] sm:$0xf]
      %v1069 = vld [vmem:[%s1 + $0xaac] sm:$0xf]
      %v1070 = vld [vmem:[%s1 + $0xab0] sm:$0xf]
      %v1071 = vld [vmem:[%s1 + $0xab4] sm:$0xf]
      %v1072 = vld [vmem:[%s1 + $0xab8] sm:$0xf]
      %v1073 = vld [vmem:[%s1 + $0xabc] sm:$0xf]
      %v1074 = vld [vmem:[%s1 + $0xac0] sm:$0xf]
      %v1075 = vld [vmem:[%s1 + $0xac4] sm:$0xf]
      %v1076 = vld [vmem:[%s1 + $0xac8] sm:$0xf]
      %v1077 = vld [vmem:[%s1 + $0xacc] sm:$0xf]
      %v1078 = vld [vmem:[%s1 + $0xad0] sm:$0xf]
      %v1079 = vld [vmem:[%s1 + $0xad4] sm:$0xf]
      %v1080 = vld [vmem:[%s1 + $0xad8] sm:$0xf]
      %v1081 = vld [vmem:[%s1 + $0xadc] sm:$0xf]
      %v1082 = vld [vmem:[%s1 + $0xae0] sm:$0xf]
      %v1083 = vld [vmem:[%s1 + $0xae4] sm:$0xf]
      %v1084 = vld [vmem:[%s1 + $0xae8] sm:$0xf]
      %v1085 = vld [vmem:[%s1 + $0xaec] sm:$0xf]
      %v1086 = vld [vmem:[%s1 + $0xaf0] sm:$0xf]
      %v1087 = vld [vmem:[%s1 + $0xaf4] sm:$0xf]
      %v1088 = vld [vmem:[%s1 + $0xaf8] sm:$0xf]
      %v1089 = vld [vmem:[%s1 + $0xafc] sm:$0xf]
      %v1090 = vld [vmem:[%s1 + $0xb00] sm:$0xf]
      %v1091 = vld [vmem:[%s1 + $0xb04] sm:$0xf]
      %v1092 = vld [vmem:[%s1 + $0xb08] sm:$0xf]
      %v1093 = vld [vmem:[%s1 + $0xb0c] sm:$0xf]
      %v1094 = vld [vmem:[%s1 + $0xb10] sm:$0xf]
      %v1095 = vld [vmem:[%s1 + $0xb14] sm:$0xf]
      %v1096 = vld [vmem:[%s1 + $0xb18] sm:$0xf]
      %v1097 = vld [vmem:[%s1 + $0xb1c] sm:$0xf]
      %v1098 = vld [vmem:[%s1 + $0xb20] sm:$0xf]
      %v1099 = vld [vmem:[%s1 + $0xb24] sm:$0xf]
      %v1100 = vld [vmem:[%s1 + $0xb28] sm:$0xf]
      %v1101 = vld [vmem:[%s1 + $0xb2c] sm:$0xf]
      %v1102 = vld [vmem:[%s1 + $0xb30] sm:$0xf]
      %v1103 = vld [vmem:[%s1 + $0xb34] sm:$0xf]
      %v1104 = vld [vmem:[%s1 + $0xb38] sm:$0xf]
      %v1105 = vld [vmem:[%s1 + $0xb3c] sm:$0xf]
      %v1106 = vld [vmem:[%s1 + $0xb40] sm:$0xf]
      %v1107 = vld [vmem:[%s1 + $0xb44] sm:$0xf]
      %v1108 = vld [vmem:[%s1 + $0xb48] sm:$0xf]
      %v1109 = vld [vmem:[%s1 + $0xb4c] sm:$0xf]
      %v1110 = vld [vmem:[%s1 + $0xb50] sm:$0xf]
      %v1111 = vld [vmem:[%s1 + $0xb54] sm:$0xf]
      %v1112 = vld [vmem:[%s1 + $0xb58] sm:$0xf]
      %v1113 = vld [vmem:[%s1 + $0xb5c] sm:$0xf]
      %v1114 = vld [vmem:[%s1 + $0xb60] sm:$0xf]
      %v1115 = vld [vmem:[%s1 + $0xb64] sm:$0xf]
      %v1116 = vld [vmem:[%s1 + $0xb68] sm:$0xf]
      %v1117 = vld [vmem:[%s1 + $0xb6c] sm:$0xf]
      %v1118 = vld [vmem:[%s1 + $0xb70] sm:$0xf]
      %v1119 = vld [vmem:[%s1 + $0xb74] sm:$0xf]
      %v1120 = vld [vmem:[%s1 + $0xb78] sm:$0xf]
      %v1121 = vld [vmem:[%s1 + $0xb7c] sm:$0xf]
      %v1122 = vld [vmem:[%s1 + $0xb80] sm:$0xf]
      %v1123 = vld [vmem:[%s1 + $0xb84] sm:$0xf]
      %v1124 = vld [vmem:[%s1 + $0xb88] sm:$0xf]
      %v1125 = vld [vmem:[%s1 + $0xb8c] sm:$0xf]
      %v1126 = vld [vmem:[%s1 + $0xb90] sm:$0xf]
      %v1127 = vld [vmem:[%s1 + $0xb94] sm:$0xf]
      %v1128 = vld [vmem:[%s1 + $0xb98] sm:$0xf]
      %v1129 = vld [vmem:[%s1 + $0xb9c] sm:$0xf]
      %v1130 = vld [vmem:[%s1 + $0xba0] sm:$0xf]
      %v1131 = vld [vmem:[%s1 + $0xba4] sm:$0xf]
      %v1132 = vld [vmem:[%s1 + $0xba8] sm:$0xf]
      %v1133 = vld [vmem:[%s1 + $0xbac] sm:$0xf]
      %v1134 = vld [vmem:[%s1 + $0xbb0] sm:$0xf]
      %v1135 = vld [vmem:[%s1 + $0xbb4] sm:$0xf]
      %v1136 = vld [vmem:[%s1 + $0xbb8] sm:$0xf]
      %v1137 = vld [vmem:[%s1 + $0xbbc] sm:$0xf]
      %v1138 = vld [vmem:[%s1 + $0xbc0] sm:$0xf]
      %v1139 = vld [vmem:[%s1 + $0xbc4] sm:$0xf]
      %v1140 = vld [vmem:[%s1 + $0xbc8] sm:$0xf]
      %v1141 = vld [vmem:[%s1 + $0xbcc] sm:$0xf]
      %v1142 = vld [vmem:[%s1 + $0xbd0] sm:$0xf]
      %v1143 = vld [vmem:[%s1 + $0xbd4] sm:$0xf]
      %v1144 = vld [vmem:[%s1 + $0xbd8] sm:$0xf]
      %v1145 = vld [vmem:[%s1 + $0xbdc] sm:$0xf]
      %v1146 = vld [vmem:[%s1 + $0xbe0] sm:$0xf]
      %v1147 = vld [vmem:[%s1 + $0xbe4] sm:$0xf]
      %v1148 = vld [vmem:[%s1 + $0xbe8] sm:$0xf]
      %v1149 = vld [vmem:[%s1 + $0xbec] sm:$0xf]
      %v1150 = vld [vmem:[%s1 + $0xbf0] sm:$0xf]
      %v1151 = vld [vmem:[%s1 + $0xbf4] sm:$0xf]
      %v1152 = vld [vmem:[%s1 + $0xbf8] sm:$0xf]
      %v1153 = vld [vmem:[%s1 + $0xbfc] sm:$0xf]
      %v1154 = vld [vmem:[%s1 + $0xc00] sm:$0xf]
      %v1155 = vld [vmem:[%s1 + $0xc04] sm:$0xf]
      %v1156 = vld [vmem:[%s1 + $0xc08] sm:$0xf]
      %v1157 = vld [vmem:[%s1 + $0xc0c] sm:$0xf]
      %v1158 = vld [vmem:[%s1 + $0xc10] sm:$0xf]
      %v1159 = vld [vmem:[%s1 + $0xc14] sm:$0xf]
      %v1160 = vld [vmem:[%s1 + $0xc18] sm:$0xf]
      %v1161 = vld [vmem:[%s1 + $0xc1c] sm:$0xf]
      %v1162 = vld [vmem:[%s1 + $0xc20] sm:$0xf]
      %v1163 = vld [vmem:[%s1 + $0xc24] sm:$0xf]
      %v1164 = vld [vmem:[%s1 + $0xc28] sm:$0xf]
      %v1165 = vld [vmem:[%s1 + $0xc2c] sm:$0xf]
      %v1166 = vld [vmem:[%s1 + $0xc30] sm:$0xf]
      %v1167 = vld [vmem:[%s1 + $0xc34] sm:$0xf]
      %v1168 = vld [vmem:[%s1 + $0xc38] sm:$0xf]
      %v1169 = vld [vmem:[%s1 + $0xc3c] sm:$0xf]
      %v1170 = vld [vmem:[%s1 + $0xc40] sm:$0xf]
      %v1171 = vld [vmem:[%s1 + $0xc44] sm:$0xf]
      %v1172 = vld [vmem:[%s1 + $0xc48] sm:$0xf]
      %v1173 = vld [vmem:[%s1 + $0xc4c] sm:$0xf]
      %v1174 = vld [vmem:[%s1 + $0xc50] sm:$0xf]
      %v1175 = vld [vmem:[%s1 + $0xc54] sm:$0xf]
      %v1176 = vld [vmem:[%s1 + $0xc58] sm:$0xf]
      %v1177 = vld [vmem:[%s1 + $0xc5c] sm:$0xf]
      %v1178 = vld [vmem:[%s1 + $0xc60] sm:$0xf]
      %v1179 = vld [vmem:[%s1 + $0xc64] sm:$0xf]
      %v1180 = vld [vmem:[%s1 + $0xc68] sm:$0xf]
      %v1181 = vld [vmem:[%s1 + $0xc6c] sm:$0xf]
      %v1182 = vld [vmem:[%s1 + $0xc70] sm:$0xf]
      %v1183 = vld [vmem:[%s1 + $0xc74] sm:$0xf]
      %v1184 = vld [vmem:[%s1 + $0xc78] sm:$0xf]
      %v1185 = vld [vmem:[%s1 + $0xc7c] sm:$0xf]
      %v1186 = vld [vmem:[%s1 + $0xc80] sm:$0xf]
      %v1187 = vld [vmem:[%s1 + $0xc84] sm:$0xf]
      %v1188 = vld [vmem:[%s1 + $0xc88] sm:$0xf]
      %v1189 = vld [vmem:[%s1 + $0xc8c] sm:$0xf]
      %v1190 = vld [vmem:[%s1 + $0xc90] sm:$0xf]
      %v1191 = vld [vmem:[%s1 + $0xc94] sm:$0xf]
      %v1192 = vld [vmem:[%s1 + $0xc98] sm:$0xf]
      %v1193 = vld [vmem:[%s1 + $0xc9c] sm:$0xf]
      %v1194 = vld [vmem:[%s1 + $0xca0] sm:$0xf]
      %v1195 = vld [vmem:[%s1 + $0xca4] sm:$0xf]
      %v1196 = vld [vmem:[%s1 + $0xca8] sm:$0xf]
      %v1197 = vld [vmem:[%s1 + $0xcac] sm:$0xf]
      %v1198 = vld [vmem:[%s1 + $0xcb0] sm:$0xf]
      %v1199 = vld [vmem:[%s1 + $0xcb4] sm:$0xf]
      %v1200 = vld [vmem:[%s1 + $0xcb8] sm:$0xf]
      %v1201 = vld [vmem:[%s1 + $0xcbc] sm:$0xf]
      %v1202 = vld [vmem:[%s1 + $0xcc0] sm:$0xf]
      %v1203 = vld [vmem:[%s1 + $0xcc4] sm:$0xf]
      %v1204 = vld [vmem:[%s1 + $0xcc8] sm:$0xf]
      %v1205 = vld [vmem:[%s1 + $0xccc] sm:$0xf]
      %v1206 = vld [vmem:[%s1 + $0xcd0] sm:$0xf]
      %v1207 = vld [vmem:[%s1 + $0xcd4] sm:$0xf]
      %v1208 = vld [vmem:[%s1 + $0xcd8] sm:$0xf]
      %v1209 = vld [vmem:[%s1 + $0xcdc] sm:$0xf]
      %v1210 = vld [vmem:[%s2] sm:$0x1]
      %v1212 = vlaneseq
      %v1213 = vshrl.u32 %v1212, 7
      %v1214 = vsub.s32 0, %v1213
      %v1215 = vrot.slane %v1210, %v1214
      %v1347 = vunpack.c.l.b16 %v256
      %v1348 = vunpack.c.h.b16 %v256
      %v1349 = vunpack.c.l.b16 %v257
      %v1350 = vunpack.c.h.b16 %v257
      %v1351 = vunpack.c.l.b16 %v258
      %v1352 = vunpack.c.h.b16 %v258
      %v1353 = vunpack.c.l.b16 %v259
      %v1354 = vunpack.c.h.b16 %v259
      %v1355 = vunpack.c.l.b16 %v260
      %v1356 = vunpack.c.h.b16 %v260
      %v1357 = vunpack.c.l.b16 %v261
      %v1358 = vunpack.c.h.b16 %v261
      %v1359 = vunpack.c.l.b16 %v262
      %v1360 = vunpack.c.h.b16 %v262
      %v1361 = vunpack.c.l.b16 %v263
      %v1362 = vunpack.c.h.b16 %v263
      %v1363 = vunpack.c.l.b16 %v264
      %v1364 = vunpack.c.h.b16 %v264
      %v1365 = vunpack.c.l.b16 %v265
      %v1366 = vunpack.c.h.b16 %v265
      %v1367 = vunpack.c.l.b16 %v266
      %v1368 = vunpack.c.h.b16 %v266
      %v1369 = vunpack.c.l.b16 %v267
      %v1370 = vunpack.c.h.b16 %v267
      %v1371 = vunpack.c.l.b16 %v268
      %v1372 = vunpack.c.h.b16 %v268
      %v1373 = vunpack.c.l.b16 %v269
      %v1374 = vunpack.c.h.b16 %v269
      %v1375 = vunpack.c.l.b16 %v270
      %v1376 = vunpack.c.h.b16 %v270
      %v1377 = vunpack.c.l.b16 %v271
      %v1378 = vunpack.c.h.b16 %v271
      %v1379 = vunpack.c.l.b16 %v272
      %v1380 = vunpack.c.h.b16 %v272
      %v1381 = vunpack.c.l.b16 %v273
      %v1382 = vunpack.c.h.b16 %v273
      %v1383 = vunpack.c.l.b16 %v274
      %v1384 = vunpack.c.h.b16 %v274
      %v1385 = vunpack.c.l.b16 %v275
      %v1386 = vunpack.c.h.b16 %v275
      %v1387 = vunpack.c.l.b16 %v276
      %v1388 = vunpack.c.h.b16 %v276
      %v1389 = vunpack.c.l.b16 %v277
      %v1390 = vunpack.c.h.b16 %v277
      %v1391 = vunpack.c.l.b16 %v278
      %v1392 = vunpack.c.h.b16 %v278
      %v1393 = vunpack.c.l.b16 %v279
      %v1394 = vunpack.c.h.b16 %v279
      %v1395 = vunpack.c.l.b16 %v280
      %v1396 = vunpack.c.h.b16 %v280
      %v1397 = vunpack.c.l.b16 %v281
      %v1398 = vunpack.c.h.b16 %v281
      %v1399 = vunpack.c.l.b16 %v282
      %v1400 = vunpack.c.h.b16 %v282
      %v1401 = vunpack.c.l.b16 %v283
      %v1402 = vunpack.c.h.b16 %v283
      %v1403 = vunpack.c.l.b16 %v284
      %v1404 = vunpack.c.h.b16 %v284
      %v1405 = vunpack.c.l.b16 %v285
      %v1406 = vunpack.c.h.b16 %v285
      %v1407 = vunpack.c.l.b16 %v286
      %v1408 = vunpack.c.h.b16 %v286
      %v1409 = vunpack.c.l.b16 %v287
      %v1410 = vunpack.c.h.b16 %v287
      %v1411 = vunpack.c.l.b16 %v288
      %v1412 = vunpack.c.h.b16 %v288
      %v1413 = vunpack.c.l.b16 %v289
      %v1414 = vunpack.c.h.b16 %v289
      %v1415 = vunpack.c.l.b16 %v290
      %v1416 = vunpack.c.h.b16 %v290
      %v1417 = vunpack.c.l.b16 %v291
      %v1418 = vunpack.c.h.b16 %v291
      %v1419 = vunpack.c.l.b16 %v292
      %v1420 = vunpack.c.h.b16 %v292
      %v1421 = vunpack.c.l.b16 %v293
      %v1422 = vunpack.c.h.b16 %v293
      %v1423 = vunpack.c.l.b16 %v294
      %v1424 = vunpack.c.h.b16 %v294
      %v1425 = vunpack.c.l.b16 %v295
      %v1426 = vunpack.c.h.b16 %v295
      %v1427 = vunpack.c.l.b16 %v296
      %v1428 = vunpack.c.h.b16 %v296
      %v1429 = vunpack.c.l.b16 %v297
      %v1430 = vunpack.c.h.b16 %v297
      %v1431 = vunpack.c.l.b16 %v298
      %v1432 = vunpack.c.h.b16 %v298
      %v1433 = vunpack.c.l.b16 %v299
      %v1434 = vunpack.c.h.b16 %v299
      %v1435 = vunpack.c.l.b16 %v300
      %v1436 = vunpack.c.h.b16 %v300
      %v1437 = vunpack.c.l.b16 %v301
      %v1438 = vunpack.c.h.b16 %v301
      %v1439 = vunpack.c.l.b16 %v302
      %v1440 = vunpack.c.h.b16 %v302
      %v1441 = vunpack.c.l.b16 %v303
      %v1442 = vunpack.c.h.b16 %v303
      %v1443 = vunpack.c.l.b16 %v304
      %v1444 = vunpack.c.h.b16 %v304
      %v1445 = vunpack.c.l.b16 %v305
      %v1446 = vunpack.c.h.b16 %v305
      %v1447 = vunpack.c.l.b16 %v306
      %v1448 = vunpack.c.h.b16 %v306
      %v1449 = vunpack.c.l.b16 %v307
      %v1450 = vunpack.c.h.b16 %v307
      %v1451 = vunpack.c.l.b16 %v308
      %v1452 = vunpack.c.h.b16 %v308
      %v1453 = vunpack.c.l.b16 %v309
      %v1454 = vunpack.c.h.b16 %v309
      %v1455 = vunpack.c.l.b16 %v310
      %v1456 = vunpack.c.h.b16 %v310
      %v1457 = vunpack.c.l.b16 %v311
      %v1458 = vunpack.c.h.b16 %v311
      %v1459 = vunpack.c.l.b16 %v312
      %v1460 = vunpack.c.h.b16 %v312
      %v1461 = vunpack.c.l.b16 %v313
      %v1462 = vunpack.c.h.b16 %v313
      %v1463 = vunpack.c.l.b16 %v314
      %v1464 = vunpack.c.h.b16 %v314
      %v1465 = vunpack.c.l.b16 %v315
      %v1466 = vunpack.c.h.b16 %v315
      %v1467 = vunpack.c.l.b16 %v316
      %v1468 = vunpack.c.h.b16 %v316
      %v1469 = vunpack.c.l.b16 %v317
      %v1470 = vunpack.c.h.b16 %v317
      %v1471 = vunpack.c.l.b16 %v318
      %v1472 = vunpack.c.h.b16 %v318
      %v1473 = vunpack.c.l.b16 %v319
      %v1474 = vunpack.c.h.b16 %v319
      %v1475 = vunpack.c.l.b16 %v320
      %v1476 = vunpack.c.h.b16 %v320
      %v1477 = vunpack.c.l.b16 %v321
      %v1478 = vunpack.c.h.b16 %v321
      %v1479 = vunpack.c.l.b16 %v322
      %v1480 = vunpack.c.h.b16 %v322
      %v1481 = vunpack.c.l.b16 %v323
      %v1482 = vunpack.c.h.b16 %v323
      %v1483 = vunpack.c.l.b16 %v324
      %v1484 = vunpack.c.h.b16 %v324
      %v1485 = vunpack.c.l.b16 %v325
      %v1486 = vunpack.c.h.b16 %v325
      %v1487 = vunpack.c.l.b16 %v326
      %v1488 = vunpack.c.h.b16 %v326
      %v1489 = vunpack.c.l.b16 %v327
      %v1490 = vunpack.c.h.b16 %v327
      %v1491 = vunpack.c.l.b16 %v328
      %v1492 = vunpack.c.h.b16 %v328
      %v1493 = vunpack.c.l.b16 %v329
      %v1494 = vunpack.c.h.b16 %v329
      %v1495 = vunpack.c.l.b16 %v330
      %v1496 = vunpack.c.h.b16 %v330
      %v1497 = vunpack.c.l.b16 %v331
      %v1498 = vunpack.c.h.b16 %v331
      %v1499 = vunpack.c.l.b16 %v332
      %v1500 = vunpack.c.h.b16 %v332
      %v1501 = vunpack.c.l.b16 %v333
      %v1502 = vunpack.c.h.b16 %v333
      %v1503 = vunpack.c.l.b16 %v334
      %v1504 = vunpack.c.h.b16 %v334
      %v1505 = vunpack.c.l.b16 %v335
      %v1506 = vunpack.c.h.b16 %v335
      %v1507 = vunpack.c.l.b16 %v336
      %v1508 = vunpack.c.h.b16 %v336
      %v1509 = vunpack.c.l.b16 %v337
      %v1510 = vunpack.c.h.b16 %v337
      %v1511 = vunpack.c.l.b16 %v338
      %v1512 = vunpack.c.h.b16 %v338
      %v1513 = vunpack.c.l.b16 %v339
      %v1514 = vunpack.c.h.b16 %v339
      %v1515 = vunpack.c.l.b16 %v340
      %v1516 = vunpack.c.h.b16 %v340
      %v1517 = vunpack.c.l.b16 %v341
      %v1518 = vunpack.c.h.b16 %v341
      %v1519 = vunpack.c.l.b16 %v342
      %v1520 = vunpack.c.h.b16 %v342
      %v1521 = vunpack.c.l.b16 %v343
      %v1522 = vunpack.c.h.b16 %v343
      %v1523 = vunpack.c.l.b16 %v344
      %v1524 = vunpack.c.h.b16 %v344
      %v1525 = vunpack.c.l.b16 %v345
      %v1526 = vunpack.c.h.b16 %v345
      %v1527 = vunpack.c.l.b16 %v346
      %v1528 = vunpack.c.h.b16 %v346
      %v1529 = vunpack.c.l.b16 %v347
      %v1530 = vunpack.c.h.b16 %v347
      %v1531 = vunpack.c.l.b16 %v348
      %v1532 = vunpack.c.h.b16 %v348
      %v1533 = vunpack.c.l.b16 %v349
      %v1534 = vunpack.c.h.b16 %v349
      %v1535 = vunpack.c.l.b16 %v350
      %v1536 = vunpack.c.h.b16 %v350
      %v1537 = vunpack.c.l.b16 %v351
      %v1538 = vunpack.c.h.b16 %v351
      %v1539 = vunpack.c.l.b16 %v352
      %v1540 = vunpack.c.h.b16 %v352
      %v1541 = vunpack.c.l.b16 %v353
      %v1542 = vunpack.c.h.b16 %v353
      %v1543 = vunpack.c.l.b16 %v354
      %v1544 = vunpack.c.h.b16 %v354
      %v1545 = vunpack.c.l.b16 %v355
      %v1546 = vunpack.c.h.b16 %v355
      %v1547 = vunpack.c.l.b16 %v356
      %v1548 = vunpack.c.h.b16 %v356
      %v1549 = vunpack.c.l.b16 %v357
      %v1550 = vunpack.c.h.b16 %v357
      %v1551 = vunpack.c.l.b16 %v358
      %v1552 = vunpack.c.h.b16 %v358
      %v1553 = vunpack.c.l.b16 %v359
      %v1554 = vunpack.c.h.b16 %v359
      %v1555 = vunpack.c.l.b16 %v360
      %v1556 = vunpack.c.h.b16 %v360
      %v1557 = vunpack.c.l.b16 %v361
      %v1558 = vunpack.c.h.b16 %v361
      %v1559 = vunpack.c.l.b16 %v362
      %v1560 = vunpack.c.h.b16 %v362
      %v1561 = vunpack.c.l.b16 %v363
      %v1562 = vunpack.c.h.b16 %v363
      %v1563 = vunpack.c.l.b16 %v364
      %v1564 = vunpack.c.h.b16 %v364
      %v1565 = vunpack.c.l.b16 %v365
      %v1566 = vunpack.c.h.b16 %v365
      %v1567 = vunpack.c.l.b16 %v366
      %v1568 = vunpack.c.h.b16 %v366
      %v1569 = vunpack.c.l.b16 %v367
      %v1570 = vunpack.c.h.b16 %v367
      %v1571 = vunpack.c.l.b16 %v368
      %v1572 = vunpack.c.h.b16 %v368
      %v1573 = vunpack.c.l.b16 %v369
      %v1574 = vunpack.c.h.b16 %v369
      %v1575 = vunpack.c.l.b16 %v370
      %v1576 = vunpack.c.h.b16 %v370
      %v1577 = vunpack.c.l.b16 %v371
      %v1578 = vunpack.c.h.b16 %v371
      %v1579 = vunpack.c.l.b16 %v372
      %v1580 = vunpack.c.h.b16 %v372
      %v1581 = vunpack.c.l.b16 %v373
      %v1582 = vunpack.c.h.b16 %v373
      %v1583 = vunpack.c.l.b16 %v374
      %v1584 = vunpack.c.h.b16 %v374
      %v1585 = vunpack.c.l.b16 %v375
      %v1586 = vunpack.c.h.b16 %v375
      %v1587 = vunpack.c.l.b16 %v376
      %v1588 = vunpack.c.h.b16 %v376
      %v1589 = vunpack.c.l.b16 %v377
      %v1590 = vunpack.c.h.b16 %v377
      %v1591 = vunpack.c.l.b16 %v378
      %v1592 = vunpack.c.h.b16 %v378
      %v1593 = vunpack.c.l.b16 %v379
      %v1594 = vunpack.c.h.b16 %v379
      %v1595 = vunpack.c.l.b16 %v380
      %v1596 = vunpack.c.h.b16 %v380
      %v1597 = vunpack.c.l.b16 %v381
      %v1598 = vunpack.c.h.b16 %v381
      %v1599 = vunpack.c.l.b16 %v382
      %v1600 = vunpack.c.h.b16 %v382
      %v1601 = vunpack.c.l.b16 %v383
      %v1602 = vunpack.c.h.b16 %v383
      %v1603 = vunpack.c.l.b16 %v384
      %v1604 = vunpack.c.h.b16 %v384
      %v1605 = vunpack.c.l.b16 %v385
      %v1606 = vunpack.c.h.b16 %v385
      %v1607 = vpack.c.b16 %v1399, %v1347
      %v1608 = vpack.c.b16 %v1400, %v1348
      %v1609 = vpack.c.b16 %v1401, %v1349
      %v1610 = vpack.c.b16 %v1402, %v1350
      %v1611 = vpack.c.b16 %v1403, %v1351
      %v1612 = vpack.c.b16 %v1404, %v1352
      %v1613 = vpack.c.b16 %v1405, %v1353
      %v1614 = vpack.c.b16 %v1406, %v1354
      %v1615 = vpack.c.b16 %v1407, %v1355
      %v1616 = vpack.c.b16 %v1408, %v1356
      %v1617 = vpack.c.b16 %v1409, %v1357
      %v1618 = vpack.c.b16 %v1410, %v1358
      %v1619 = vpack.c.b16 %v1411, %v1359
      %v1620 = vpack.c.b16 %v1412, %v1360
      %v1621 = vpack.c.b16 %v1413, %v1361
      %v1622 = vpack.c.b16 %v1414, %v1362
      %v1623 = vpack.c.b16 %v1415, %v1363
      %v1624 = vpack.c.b16 %v1416, %v1364
      %v1625 = vpack.c.b16 %v1417, %v1365
      %v1626 = vpack.c.b16 %v1418, %v1366
      %v1627 = vpack.c.b16 %v1419, %v1367
      %v1628 = vpack.c.b16 %v1420, %v1368
      %v1629 = vpack.c.b16 %v1421, %v1369
      %v1630 = vpack.c.b16 %v1422, %v1370
      %v1631 = vpack.c.b16 %v1423, %v1371
      %v1632 = vpack.c.b16 %v1424, %v1372
      %v1633 = vpack.c.b16 %v1425, %v1373
      %v1634 = vpack.c.b16 %v1426, %v1374
      %v1635 = vpack.c.b16 %v1427, %v1375
      %v1636 = vpack.c.b16 %v1428, %v1376
      %v1637 = vpack.c.b16 %v1429, %v1377
      %v1638 = vpack.c.b16 %v1430, %v1378
      %v1639 = vpack.c.b16 %v1431, %v1379
      %v1640 = vpack.c.b16 %v1432, %v1380
      %v1641 = vpack.c.b16 %v1433, %v1381
      %v1642 = vpack.c.b16 %v1434, %v1382
      %v1643 = vpack.c.b16 %v1435, %v1383
      %v1644 = vpack.c.b16 %v1436, %v1384
      %v1645 = vpack.c.b16 %v1437, %v1385
      %v1646 = vpack.c.b16 %v1438, %v1386
      %v1647 = vpack.c.b16 %v1439, %v1387
      %v1648 = vpack.c.b16 %v1440, %v1388
      %v1649 = vpack.c.b16 %v1441, %v1389
      %v1650 = vpack.c.b16 %v1442, %v1390
      %v1651 = vpack.c.b16 %v1443, %v1391
      %v1652 = vpack.c.b16 %v1444, %v1392
      %v1653 = vpack.c.b16 %v1445, %v1393
      %v1654 = vpack.c.b16 %v1446, %v1394
      %v1655 = vpack.c.b16 %v1447, %v1395
      %v1656 = vpack.c.b16 %v1448, %v1396
      %v1657 = vpack.c.b16 %v1449, %v1397
      %v1658 = vpack.c.b16 %v1450, %v1398
      %v1659 = vpack.c.b16 %v1503, %v1451
      %v1660 = vpack.c.b16 %v1504, %v1452
      %v1661 = vpack.c.b16 %v1505, %v1453
      %v1662 = vpack.c.b16 %v1506, %v1454
      %v1663 = vpack.c.b16 %v1507, %v1455
      %v1664 = vpack.c.b16 %v1508, %v1456
      %v1665 = vpack.c.b16 %v1509, %v1457
      %v1666 = vpack.c.b16 %v1510, %v1458
      %v1667 = vpack.c.b16 %v1511, %v1459
      %v1668 = vpack.c.b16 %v1512, %v1460
      %v1669 = vpack.c.b16 %v1513, %v1461
      %v1670 = vpack.c.b16 %v1514, %v1462
      %v1671 = vpack.c.b16 %v1515, %v1463
      %v1672 = vpack.c.b16 %v1516, %v1464
      %v1673 = vpack.c.b16 %v1517, %v1465
      %v1674 = vpack.c.b16 %v1518, %v1466
      %v1675 = vpack.c.b16 %v1519, %v1467
      %v1676 = vpack.c.b16 %v1520, %v1468
      %v1677 = vpack.c.b16 %v1521, %v1469
      %v1678 = vpack.c.b16 %v1522, %v1470
      %v1679 = vpack.c.b16 %v1523, %v1471
      %v1680 = vpack.c.b16 %v1524, %v1472
      %v1681 = vpack.c.b16 %v1525, %v1473
      %v1682 = vpack.c.b16 %v1526, %v1474
      %v1683 = vpack.c.b16 %v1527, %v1475
      %v1684 = vpack.c.b16 %v1528, %v1476
      %v1685 = vpack.c.b16 %v1529, %v1477
      %v1686 = vpack.c.b16 %v1530, %v1478
      %v1687 = vpack.c.b16 %v1531, %v1479
      %v1688 = vpack.c.b16 %v1532, %v1480
      %v1689 = vpack.c.b16 %v1533, %v1481
      %v1690 = vpack.c.b16 %v1534, %v1482
      %v1691 = vpack.c.b16 %v1535, %v1483
      %v1692 = vpack.c.b16 %v1536, %v1484
      %v1693 = vpack.c.b16 %v1537, %v1485
      %v1694 = vpack.c.b16 %v1538, %v1486
      %v1695 = vpack.c.b16 %v1539, %v1487
      %v1696 = vpack.c.b16 %v1540, %v1488
      %v1697 = vpack.c.b16 %v1541, %v1489
      %v1698 = vpack.c.b16 %v1542, %v1490
      %v1699 = vpack.c.b16 %v1543, %v1491
      %v1700 = vpack.c.b16 %v1544, %v1492
      %v1701 = vpack.c.b16 %v1545, %v1493
      %v1702 = vpack.c.b16 %v1546, %v1494
      %v1703 = vpack.c.b16 %v1547, %v1495
      %v1704 = vpack.c.b16 %v1548, %v1496
      %v1705 = vpack.c.b16 %v1549, %v1497
      %v1706 = vpack.c.b16 %v1550, %v1498
      %v1707 = vpack.c.b16 %v1551, %v1499
      %v1708 = vpack.c.b16 %v1552, %v1500
      %v1709 = vpack.c.b16 %v1553, %v1501
      %v1710 = vpack.c.b16 %v1554, %v1502
      %v1711 = vpack.c.b16 %v1555, %v1555
      %v1712 = vpack.c.b16 %v1556, %v1556
      %v1713 = vpack.c.b16 %v1557, %v1557
      %v1714 = vpack.c.b16 %v1558, %v1558
      %v1715 = vpack.c.b16 %v1559, %v1559
      %v1716 = vpack.c.b16 %v1560, %v1560
      %v1717 = vpack.c.b16 %v1561, %v1561
      %v1718 = vpack.c.b16 %v1562, %v1562
      %v1719 = vpack.c.b16 %v1563, %v1563
      %v1720 = vpack.c.b16 %v1564, %v1564
      %v1721 = vpack.c.b16 %v1565, %v1565
      %v1722 = vpack.c.b16 %v1566, %v1566
      %v1723 = vpack.c.b16 %v1567, %v1567
      %v1724 = vpack.c.b16 %v1568, %v1568
      %v1725 = vpack.c.b16 %v1569, %v1569
      %v1726 = vpack.c.b16 %v1570, %v1570
      %v1727 = vpack.c.b16 %v1571, %v1571
      %v1728 = vpack.c.b16 %v1572, %v1572
      %v1729 = vpack.c.b16 %v1573, %v1573
      %v1730 = vpack.c.b16 %v1574, %v1574
      %v1731 = vpack.c.b16 %v1575, %v1575
      %v1732 = vpack.c.b16 %v1576, %v1576
      %v1733 = vpack.c.b16 %v1577, %v1577
      %v1734 = vpack.c.b16 %v1578, %v1578
      %v1735 = vpack.c.b16 %v1579, %v1579
      %v1736 = vpack.c.b16 %v1580, %v1580
      %v1737 = vpack.c.b16 %v1581, %v1581
      %v1738 = vpack.c.b16 %v1582, %v1582
      %v1739 = vpack.c.b16 %v1583, %v1583
      %v1740 = vpack.c.b16 %v1584, %v1584
      %v1741 = vpack.c.b16 %v1585, %v1585
      %v1742 = vpack.c.b16 %v1586, %v1586
      %v1743 = vpack.c.b16 %v1587, %v1587
      %v1744 = vpack.c.b16 %v1588, %v1588
      %v1745 = vpack.c.b16 %v1589, %v1589
      %v1746 = vpack.c.b16 %v1590, %v1590
      %v1747 = vpack.c.b16 %v1591, %v1591
      %v1748 = vpack.c.b16 %v1592, %v1592
      %v1749 = vpack.c.b16 %v1593, %v1593
      %v1750 = vpack.c.b16 %v1594, %v1594
      %v1751 = vpack.c.b16 %v1595, %v1595
      %v1752 = vpack.c.b16 %v1596, %v1596
      %v1753 = vpack.c.b16 %v1597, %v1597
      %v1754 = vpack.c.b16 %v1598, %v1598
      %v1755 = vpack.c.b16 %v1599, %v1599
      %v1756 = vpack.c.b16 %v1600, %v1600
      %v1757 = vpack.c.b16 %v1601, %v1601
      %v1758 = vpack.c.b16 %v1602, %v1602
      %v1759 = vpack.c.b16 %v1603, %v1603
      %v1760 = vpack.c.b16 %v1604, %v1604
      %v1761 = vpack.c.b16 %v1605, %v1605
      %v1762 = vpack.c.b16 %v1606, %v1606
      %v2740 = vunpack.c.l.b16 %v386
      %v2741 = vunpack.c.l.b16 %v387
      %v2742 = vunpack.c.l.b16 %v388
      %v2743 = vunpack.c.l.b16 %v389
      %v2744 = vunpack.c.l.b16 %v390
      %v2745 = vunpack.c.l.b16 %v391
      %v2746 = vunpack.c.l.b16 %v392
      %v2747 = vunpack.c.l.b16 %v393
      %v2748 = vunpack.c.l.b16 %v394
      %v2749 = vunpack.c.l.b16 %v395
      %v2750 = vunpack.c.l.b16 %v396
      %v2751 = vunpack.c.l.b16 %v397
      %v2752 = vunpack.c.l.b16 %v398
      %v2753 = vunpack.c.l.b16 %v399
      %v2754 = vunpack.c.l.b16 %v400
      %v2755 = vunpack.c.l.b16 %v401
      %v2756 = vunpack.c.l.b16 %v402
      %v2757 = vunpack.c.l.b16 %v403
      %v2758 = vunpack.c.l.b16 %v404
      %v2759 = vunpack.c.l.b16 %v405
      %v2760 = vunpack.c.l.b16 %v406
      %v2761 = vunpack.c.l.b16 %v407
      %v2762 = vunpack.c.l.b16 %v408
      %v2763 = vunpack.c.l.b16 %v409
      %v2764 = vunpack.c.l.b16 %v410
      %v2765 = vunpack.c.l.b16 %v411
      %v2766 = vunpack.c.l.b16 %v412
      %v2767 = vunpack.c.l.b16 %v413
      %v2768 = vunpack.c.l.b16 %v414
      %v2769 = vunpack.c.l.b16 %v415
      %v2770 = vunpack.c.l.b16 %v416
      %v2771 = vunpack.c.l.b16 %v417
      %v2772 = vunpack.c.l.b16 %v418
      %v2773 = vunpack.c.l.b16 %v419
      %v2774 = vunpack.c.l.b16 %v420
      %v2775 = vunpack.c.l.b16 %v421
      %v2776 = vunpack.c.l.b16 %v422
      %v2777 = vunpack.c.l.b16 %v423
      %v2778 = vunpack.c.l.b16 %v424
      %v2779 = vunpack.c.l.b16 %v425
      %v2780 = vunpack.c.l.b16 %v426
      %v2781 = vunpack.c.l.b16 %v427
      %v2782 = vunpack.c.l.b16 %v428
      %v2783 = vunpack.c.l.b16 %v429
      %v2784 = vunpack.c.l.b16 %v430
      %v2785 = vunpack.c.l.b16 %v431
      %v2786 = vunpack.c.l.b16 %v432
      %v2787 = vunpack.c.l.b16 %v433
      %v2788 = vunpack.c.l.b16 %v434
      %v2789 = vunpack.c.l.b16 %v435
      %v2790 = vunpack.c.l.b16 %v436
      %v2791 = vunpack.c.l.b16 %v437
      %v2792 = vunpack.c.l.b16 %v438
      %v2793 = vunpack.c.l.b16 %v439
      %v2794 = vunpack.c.l.b16 %v440
      %v2795 = vunpack.c.l.b16 %v441
      %v2796 = vunpack.c.l.b16 %v442
      %v2797 = vunpack.c.l.b16 %v443
      %v2798 = vunpack.c.l.b16 %v444
      %v2799 = vunpack.c.l.b16 %v445
      %v2800 = vunpack.c.l.b16 %v446
      %v2801 = vunpack.c.l.b16 %v447
      %v2802 = vunpack.c.l.b16 %v448
      %v2803 = vunpack.c.l.b16 %v449
      %v2804 = vunpack.c.l.b16 %v450
      %v2805 = vunpack.c.l.b16 %v451
      %v2806 = vunpack.c.l.b16 %v452
      %v2807 = vunpack.c.l.b16 %v453
      %v2808 = vunpack.c.l.b16 %v454
      %v2809 = vunpack.c.l.b16 %v455
      %v2810 = vunpack.c.l.b16 %v456
      %v2811 = vunpack.c.l.b16 %v457
      %v2812 = vunpack.c.l.b16 %v458
      %v2813 = vunpack.c.l.b16 %v459
      %v2814 = vunpack.c.l.b16 %v460
      %v2815 = vunpack.c.l.b16 %v461
      %v2816 = vunpack.c.l.b16 %v462
      %v2817 = vunpack.c.l.b16 %v463
      %v2818 = vunpack.c.l.b16 %v464
      %v2819 = vunpack.c.l.b16 %v465
      %v2820 = vunpack.c.l.b16 %v466
      %v2821 = vunpack.c.l.b16 %v467
      %v2822 = vunpack.c.l.b16 %v468
      %v2823 = vunpack.c.l.b16 %v469
      %v2824 = vunpack.c.l.b16 %v470
      %v2825 = vunpack.c.l.b16 %v471
      %v2826 = vunpack.c.l.b16 %v472
      %v2827 = vunpack.c.l.b16 %v473
      %v2828 = vunpack.c.l.b16 %v474
      %v2829 = vunpack.c.l.b16 %v475
      %v2830 = vunpack.c.l.b16 %v476
      %v2831 = vunpack.c.l.b16 %v477
      %v2832 = vunpack.c.l.b16 %v478
      %v2833 = vunpack.c.l.b16 %v479
      %v2834 = vunpack.c.l.b16 %v480
      %v2835 = vunpack.c.l.b16 %v481
      %v2836 = vunpack.c.l.b16 %v482
      %v2837 = vunpack.c.l.b16 %v483
      %v2838 = vunpack.c.l.b16 %v484
      %v2839 = vunpack.c.l.b16 %v485
      %v2840 = vunpack.c.l.b16 %v486
      %v2841 = vunpack.c.l.b16 %v487
      %v2842 = vunpack.c.l.b16 %v488
      %v2843 = vunpack.c.l.b16 %v489
      %v2844 = vunpack.c.l.b16 %v490
      %v2845 = vunpack.c.l.b16 %v491
      %v2846 = vunpack.c.l.b16 %v492
      %v2847 = vunpack.c.l.b16 %v493
      %v2848 = vunpack.c.l.b16 %v494
      %v2849 = vunpack.c.l.b16 %v495
      %v2850 = vunpack.c.l.b16 %v496
      %v2851 = vunpack.c.l.b16 %v497
      %v2852 = vunpack.c.l.b16 %v498
      %v2853 = vunpack.c.l.b16 %v499
      %v2854 = vunpack.c.l.b16 %v500
      %v2855 = vunpack.c.l.b16 %v501
      %v2856 = vunpack.c.l.b16 %v502
      %v2857 = vunpack.c.l.b16 %v503
      %v2858 = vunpack.c.l.b16 %v504
      %v2859 = vunpack.c.l.b16 %v505
      %v2860 = vunpack.c.l.b16 %v506
      %v2861 = vunpack.c.l.b16 %v507
      %v2862 = vunpack.c.l.b16 %v508
      %v2863 = vunpack.c.l.b16 %v509
      %v2864 = vunpack.c.l.b16 %v510
      %v2865 = vunpack.c.l.b16 %v511
      %v2866 = vunpack.c.l.b16 %v512
      %v2867 = vunpack.c.l.b16 %v513
      %v2868 = vunpack.c.l.b16 %v514
      %v2869 = vunpack.c.l.b16 %v515
      %v2870 = vunpack.c.l.b16 %v516
      %v2871 = vunpack.c.l.b16 %v517
      %v2872 = vunpack.c.l.b16 %v518
      %v2873 = vunpack.c.l.b16 %v519
      %v2874 = vunpack.c.l.b16 %v520
      %v2875 = vunpack.c.l.b16 %v521
      %v2876 = vunpack.c.l.b16 %v522
      %v2877 = vunpack.c.l.b16 %v523
      %v2878 = vunpack.c.l.b16 %v524
      %v2879 = vunpack.c.l.b16 %v525
      %v2880 = vunpack.c.l.b16 %v526
      %v2881 = vunpack.c.l.b16 %v527
      %v2882 = vunpack.c.l.b16 %v528
      %v2883 = vunpack.c.l.b16 %v529
      %v2884 = vunpack.c.l.b16 %v530
      %v2885 = vunpack.c.l.b16 %v531
      %v2886 = vunpack.c.l.b16 %v532
      %v2887 = vunpack.c.l.b16 %v533
      %v2888 = vunpack.c.l.b16 %v534
      %v2889 = vunpack.c.l.b16 %v535
      %v2890 = vunpack.c.l.b16 %v536
      %v2891 = vunpack.c.l.b16 %v537
      %v2892 = vunpack.c.l.b16 %v538
      %v2893 = vunpack.c.l.b16 %v539
      %v2894 = vunpack.c.l.b16 %v540
      %v2895 = vunpack.c.l.b16 %v541
      %v2896 = vunpack.c.l.b16 %v542
      %v2897 = vunpack.c.l.b16 %v543
      %v2898 = vunpack.c.l.b16 %v544
      %v2899 = vunpack.c.l.b16 %v545
      %v2900 = vunpack.c.l.b16 %v546
      %v2901 = vunpack.c.l.b16 %v547
      %v2902 = vunpack.c.l.b16 %v548
      %v2903 = vunpack.c.l.b16 %v549
      %v2904 = vunpack.c.l.b16 %v550
      %v2905 = vunpack.c.l.b16 %v551
      %v2906 = vunpack.c.l.b16 %v552
      %v2907 = vunpack.c.l.b16 %v553
      %v2908 = vunpack.c.l.b16 %v554
      %v2909 = vunpack.c.l.b16 %v555
      %v2910 = vunpack.c.l.b16 %v556
      %v2911 = vunpack.c.l.b16 %v557
      %v2912 = vunpack.c.l.b16 %v558
      %v2913 = vunpack.c.l.b16 %v559
      %v2914 = vunpack.c.l.b16 %v560
      %v2915 = vunpack.c.l.b16 %v561
      %v2916 = vunpack.c.l.b16 %v562
      %v2917 = vunpack.c.l.b16 %v563
      %v2918 = vunpack.c.l.b16 %v564
      %v2919 = vunpack.c.l.b16 %v565
      %v2920 = vunpack.c.l.b16 %v566
      %v2921 = vunpack.c.l.b16 %v567
      %v2922 = vunpack.c.l.b16 %v568
      %v2923 = vunpack.c.l.b16 %v569
      %v2924 = vunpack.c.l.b16 %v570
      %v2925 = vunpack.c.l.b16 %v571
      %v2926 = vunpack.c.l.b16 %v572
      %v2927 = vunpack.c.l.b16 %v573
      %v2928 = vunpack.c.l.b16 %v574
      %v2929 = vunpack.c.l.b16 %v575
      %v2930 = vunpack.c.l.b16 %v576
      %v2931 = vunpack.c.l.b16 %v577
      %v2932 = vunpack.c.l.b16 %v578
      %v2933 = vunpack.c.l.b16 %v579
      %v2934 = vunpack.c.l.b16 %v580
      %v2935 = vunpack.c.l.b16 %v581
      %v2936 = vunpack.c.l.b16 %v582
      %v2937 = vunpack.c.l.b16 %v583
      %v2938 = vunpack.c.l.b16 %v584
      %v2939 = vunpack.c.l.b16 %v585
      %v2940 = vunpack.c.l.b16 %v586
      %v2941 = vunpack.c.l.b16 %v587
      %v2942 = vunpack.c.l.b16 %v588
      %v2943 = vunpack.c.l.b16 %v589
      %v2944 = vunpack.c.l.b16 %v590
      %v2945 = vunpack.c.l.b16 %v591
      %v2946 = vunpack.c.l.b16 %v592
      %v2947 = vunpack.c.l.b16 %v593
      %v2948 = vunpack.c.l.b16 %v594
      %v2949 = vunpack.c.l.b16 %v595
      %v2950 = vunpack.c.l.b16 %v596
      %v2951 = vunpack.c.l.b16 %v597
      %v2952 = vunpack.c.l.b16 %v598
      %v2953 = vunpack.c.l.b16 %v599
      %v2954 = vunpack.c.l.b16 %v600
      %v2955 = vunpack.c.l.b16 %v601
      %v2956 = vunpack.c.l.b16 %v602
      %v2957 = vunpack.c.l.b16 %v603
      %v2958 = vunpack.c.l.b16 %v604
      %v2959 = vunpack.c.l.b16 %v605
      %v2960 = vunpack.c.l.b16 %v606
      %v2961 = vunpack.c.l.b16 %v607
      %v2962 = vunpack.c.l.b16 %v608
      %v2963 = vunpack.c.l.b16 %v609
      %v2964 = vunpack.c.l.b16 %v610
      %v2965 = vunpack.c.l.b16 %v611
      %v2966 = vunpack.c.l.b16 %v612
      %v2967 = vunpack.c.l.b16 %v613
      %v2968 = vunpack.c.l.b16 %v614
      %v2969 = vunpack.c.l.b16 %v615
      %v2970 = vunpack.c.l.b16 %v616
      %v2971 = vunpack.c.l.b16 %v617
      %v2972 = vunpack.c.l.b16 %v618
      %v2973 = vunpack.c.l.b16 %v619
      %v2974 = vunpack.c.l.b16 %v620
      %v2975 = vunpack.c.l.b16 %v621
      %v2976 = vunpack.c.l.b16 %v622
      %v2977 = vunpack.c.l.b16 %v623
      %v2978 = vunpack.c.l.b16 %v624
      %v2979 = vunpack.c.l.b16 %v625
      %v2980 = vunpack.c.l.b16 %v626
      %v2981 = vunpack.c.l.b16 %v627
      %v2982 = vunpack.c.l.b16 %v628
      %v2983 = vunpack.c.l.b16 %v629
      %v2984 = vunpack.c.l.b16 %v630
      %v2985 = vunpack.c.l.b16 %v631
      %v2986 = vunpack.c.l.b16 %v632
      %v2987 = vunpack.c.l.b16 %v633
      %v2988 = vunpack.c.l.b16 %v634
      %v2989 = vunpack.c.l.b16 %v635
      %v2990 = vunpack.c.l.b16 %v636
      %v2991 = vunpack.c.l.b16 %v637
      %v2992 = vunpack.c.l.b16 %v638
      %v2993 = vunpack.c.l.b16 %v639
      %v2994 = vunpack.c.l.b16 %v640
      %v2995 = vunpack.c.l.b16 %v641
      %v2996 = vunpack.c.l.b16 %v642
      %v2997 = vunpack.c.l.b16 %v643
      %v2998 = vunpack.c.l.b16 %v644
      %v2999 = vunpack.c.l.b16 %v645
      %v3000 = vunpack.c.l.b16 %v646
      %v3001 = vunpack.c.l.b16 %v647
      %v3002 = vunpack.c.l.b16 %v648
      %v3003 = vunpack.c.l.b16 %v649
      %v3004 = vunpack.c.l.b16 %v650
      %v3005 = vunpack.c.l.b16 %v651
      %v3006 = vunpack.c.l.b16 %v652
      %v3007 = vunpack.c.l.b16 %v653
      %v3008 = vunpack.c.l.b16 %v654
      %v3009 = vunpack.c.l.b16 %v655
      %v3010 = vunpack.c.l.b16 %v656
      %v3011 = vunpack.c.l.b16 %v657
      %v3012 = vunpack.c.l.b16 %v658
      %v3013 = vunpack.c.l.b16 %v659
      %v3014 = vunpack.c.l.b16 %v660
      %v3015 = vunpack.c.l.b16 %v661
      %v3016 = vunpack.c.l.b16 %v662
      %v3017 = vunpack.c.l.b16 %v663
      %v3018 = vunpack.c.l.b16 %v664
      %v3019 = vunpack.c.l.b16 %v665
      %v3020 = vunpack.c.l.b16 %v666
      %v3021 = vunpack.c.l.b16 %v667
      %v3022 = vunpack.c.l.b16 %v668
      %v3023 = vunpack.c.l.b16 %v669
      %v3024 = vunpack.c.l.b16 %v670
      %v3025 = vunpack.c.l.b16 %v671
      %v3026 = vunpack.c.l.b16 %v672
      %v3027 = vunpack.c.l.b16 %v673
      %v3028 = vunpack.c.l.b16 %v674
      %v3029 = vunpack.c.l.b16 %v675
      %v3030 = vunpack.c.l.b16 %v676
      %v3031 = vunpack.c.l.b16 %v677
      %v3032 = vunpack.c.l.b16 %v678
      %v3033 = vunpack.c.l.b16 %v679
      %v3034 = vunpack.c.l.b16 %v680
      %v3035 = vunpack.c.l.b16 %v681
      %v3036 = vunpack.c.l.b16 %v682
      %v3037 = vunpack.c.l.b16 %v683
      %v3038 = vunpack.c.l.b16 %v684
      %v3039 = vunpack.c.l.b16 %v685
      %v3040 = vunpack.c.l.b16 %v686
      %v3041 = vunpack.c.l.b16 %v687
      %v3042 = vunpack.c.l.b16 %v688
      %v3043 = vunpack.c.l.b16 %v689
      %v3044 = vunpack.c.l.b16 %v690
      %v3045 = vunpack.c.l.b16 %v691
      %v3046 = vunpack.c.l.b16 %v692
      %v3047 = vunpack.c.l.b16 %v693
      %v3048 = vunpack.c.l.b16 %v694
      %v3049 = vunpack.c.l.b16 %v695
      %v3050 = vunpack.c.l.b16 %v696
      %v3051 = vunpack.c.l.b16 %v697
      %v3052 = vunpack.c.l.b16 %v698
      %v3053 = vunpack.c.l.b16 %v699
      %v3054 = vunpack.c.l.b16 %v700
      %v3055 = vunpack.c.l.b16 %v701
      %v3056 = vunpack.c.l.b16 %v702
      %v3057 = vunpack.c.l.b16 %v703
      %v3058 = vunpack.c.l.b16 %v704
      %v3059 = vunpack.c.l.b16 %v705
      %v3060 = vunpack.c.l.b16 %v706
      %v3061 = vunpack.c.l.b16 %v707
      %v3062 = vunpack.c.l.b16 %v708
      %v3063 = vunpack.c.l.b16 %v709
      %v3064 = vunpack.c.l.b16 %v710
      %v3065 = vunpack.c.l.b16 %v711
      %v3066 = vunpack.c.l.b16 %v712
      %v3067 = vunpack.c.l.b16 %v713
      %v3068 = vunpack.c.l.b16 %v714
      %v3069 = vunpack.c.l.b16 %v715
      %v3070 = vunpack.c.l.b16 %v716
      %v3071 = vunpack.c.l.b16 %v717
      %v3072 = vunpack.c.l.b16 %v718
      %v3073 = vunpack.c.l.b16 %v719
      %v3074 = vunpack.c.l.b16 %v720
      %v3075 = vunpack.c.l.b16 %v721
      %v3076 = vunpack.c.l.b16 %v722
      %v3077 = vunpack.c.l.b16 %v723
      %v3078 = vunpack.c.l.b16 %v724
      %v3079 = vunpack.c.l.b16 %v725
      %v3080 = vunpack.c.l.b16 %v726
      %v3081 = vunpack.c.l.b16 %v727
      %v3082 = vunpack.c.l.b16 %v728
      %v3083 = vunpack.c.l.b16 %v729
      %v3084 = vunpack.c.l.b16 %v730
      %v3085 = vunpack.c.l.b16 %v731
      %v3086 = vunpack.c.l.b16 %v732
      %v3087 = vunpack.c.l.b16 %v733
      %v3088 = vunpack.c.l.b16 %v734
      %v3089 = vunpack.c.l.b16 %v735
      %v3090 = vunpack.c.l.b16 %v736
      %v3091 = vunpack.c.l.b16 %v737
      %v3092 = vunpack.c.l.b16 %v738
      %v3093 = vunpack.c.l.b16 %v739
      %v3094 = vunpack.c.l.b16 %v740
      %v3095 = vunpack.c.l.b16 %v741
      %v3096 = vunpack.c.l.b16 %v742
      %v3097 = vunpack.c.l.b16 %v743
      %v3098 = vunpack.c.l.b16 %v744
      %v3099 = vunpack.c.l.b16 %v745
      %v3100 = vunpack.c.l.b16 %v746
      %v3101 = vunpack.c.l.b16 %v747
      %v3102 = vunpack.c.l.b16 %v748
      %v3103 = vunpack.c.l.b16 %v749
      %v3104 = vunpack.c.l.b16 %v750
      %v3105 = vunpack.c.l.b16 %v751
      %v3106 = vunpack.c.l.b16 %v752
      %v3107 = vunpack.c.l.b16 %v753
      %v3108 = vunpack.c.l.b16 %v754
      %v3109 = vunpack.c.l.b16 %v755
      %v3110 = vunpack.c.l.b16 %v756
      %v3111 = vunpack.c.l.b16 %v757
      %v3112 = vunpack.c.l.b16 %v758
      %v3113 = vunpack.c.l.b16 %v759
      %v3114 = vunpack.c.l.b16 %v760
      %v3115 = vunpack.c.l.b16 %v761
      %v3116 = vunpack.c.l.b16 %v762
      %v3117 = vunpack.c.l.b16 %v763
      %v3118 = vunpack.c.l.b16 %v764
      %v3119 = vunpack.c.l.b16 %v765
      %v3120 = vunpack.c.l.b16 %v766
      %v3121 = vunpack.c.l.b16 %v767
      %v3122 = vunpack.c.l.b16 %v768
      %v3123 = vunpack.c.l.b16 %v769
      %v3124 = vunpack.c.l.b16 %v770
      %v3125 = vunpack.c.l.b16 %v771
      %v3126 = vunpack.c.l.b16 %v772
      %v3127 = vunpack.c.l.b16 %v773
      %v3128 = vunpack.c.l.b16 %v774
      %v3129 = vunpack.c.l.b16 %v775
      %v3130 = vunpack.c.l.b16 %v776
      %v3131 = vunpack.c.l.b16 %v777
      %v3132 = vunpack.c.l.b16 %v778
      %v3133 = vunpack.c.l.b16 %v779
      %v3134 = vunpack.c.l.b16 %v780
      %v3135 = vunpack.c.l.b16 %v781
      %v3136 = vunpack.c.l.b16 %v782
      %v3137 = vunpack.c.l.b16 %v783
      %v3138 = vunpack.c.l.b16 %v784
      %v3139 = vunpack.c.l.b16 %v785
      %v3140 = vunpack.c.l.b16 %v786
      %v3141 = vunpack.c.l.b16 %v787
      %v3142 = vunpack.c.l.b16 %v788
      %v3143 = vunpack.c.l.b16 %v789
      %v3144 = vunpack.c.l.b16 %v790
      %v3145 = vunpack.c.l.b16 %v791
      %v3146 = vunpack.c.l.b16 %v792
      %v3147 = vunpack.c.l.b16 %v793
      %v3148 = vunpack.c.l.b16 %v794
      %v3149 = vunpack.c.l.b16 %v795
      %v3150 = vunpack.c.l.b16 %v796
      %v3151 = vunpack.c.l.b16 %v797
      %v3152 = vunpack.c.l.b16 %v798
      %v3153 = vunpack.c.l.b16 %v799
      %v3154 = vunpack.c.l.b16 %v800
      %v3155 = vunpack.c.l.b16 %v801
      %v3156 = vunpack.c.l.b16 %v802
      %v3157 = vunpack.c.l.b16 %v803
      %v3158 = vunpack.c.l.b16 %v804
      %v3159 = vunpack.c.l.b16 %v805
      %v3160 = vunpack.c.l.b16 %v806
      %v3161 = vunpack.c.l.b16 %v807
      %v3162 = vunpack.c.l.b16 %v808
      %v3163 = vunpack.c.l.b16 %v809
      %v3164 = vunpack.c.l.b16 %v810
      %v3165 = vunpack.c.l.b16 %v811
      %v3166 = vunpack.c.l.b16 %v812
      %v3167 = vunpack.c.l.b16 %v813
      %v3168 = vunpack.c.l.b16 %v814
      %v3169 = vunpack.c.l.b16 %v815
      %v3170 = vunpack.c.l.b16 %v816
      %v3171 = vunpack.c.l.b16 %v817
      %v3172 = vunpack.c.l.b16 %v818
      %v3173 = vunpack.c.l.b16 %v819
      %v3174 = vunpack.c.l.b16 %v820
      %v3175 = vunpack.c.l.b16 %v821
      %v3176 = vunpack.c.l.b16 %v822
      %v3177 = vunpack.c.l.b16 %v823
      %v3178 = vunpack.c.l.b16 %v824
      %v3179 = vunpack.c.l.b16 %v825
      %v3180 = vunpack.c.l.b16 %v826
      %v3181 = vunpack.c.l.b16 %v827
      %v3182 = vunpack.c.l.b16 %v828
      %v3183 = vunpack.c.l.b16 %v829
      %v3184 = vunpack.c.l.b16 %v830
      %v3185 = vunpack.c.l.b16 %v831
      %v3186 = vunpack.c.l.b16 %v832
      %v3187 = vunpack.c.l.b16 %v833
      %v3188 = vunpack.c.l.b16 %v834
      %v3189 = vunpack.c.l.b16 %v835
      %v3190 = vunpack.c.l.b16 %v836
      %v3191 = vunpack.c.l.b16 %v837
      %v3192 = vunpack.c.l.b16 %v838
      %v3193 = vunpack.c.l.b16 %v839
      %v3194 = vunpack.c.l.b16 %v840
      %v3195 = vunpack.c.l.b16 %v841
      %v3196 = vunpack.c.l.b16 %v842
      %v3197 = vunpack.c.l.b16 %v843
      %v3198 = vunpack.c.l.b16 %v844
      %v3199 = vunpack.c.l.b16 %v845
      %v3200 = vunpack.c.l.b16 %v846
      %v3201 = vunpack.c.l.b16 %v847
      %v3202 = vunpack.c.l.b16 %v848
      %v3203 = vunpack.c.l.b16 %v849
      %v3204 = vunpack.c.l.b16 %v850
      %v3205 = vunpack.c.l.b16 %v851
      %v3206 = vunpack.c.l.b16 %v852
      %v3207 = vunpack.c.l.b16 %v853
      %v3208 = vunpack.c.l.b16 %v854
      %v3209 = vunpack.c.l.b16 %v855
      %v3210 = vunpack.c.l.b16 %v856
      %v3211 = vunpack.c.l.b16 %v857
      %v3212 = vunpack.c.l.b16 %v858
      %v3213 = vunpack.c.l.b16 %v859
      %v3214 = vunpack.c.l.b16 %v860
      %v3215 = vunpack.c.l.b16 %v861
      %v3216 = vunpack.c.l.b16 %v862
      %v3217 = vunpack.c.l.b16 %v863
      %v3218 = vunpack.c.l.b16 %v864
      %v3219 = vunpack.c.l.b16 %v865
      %v3220 = vunpack.c.l.b16 %v866
      %v3221 = vunpack.c.l.b16 %v867
      %v3222 = vunpack.c.l.b16 %v868
      %v3223 = vunpack.c.l.b16 %v869
      %v3224 = vunpack.c.l.b16 %v870
      %v3225 = vunpack.c.l.b16 %v871
      %v3226 = vunpack.c.l.b16 %v872
      %v3227 = vunpack.c.l.b16 %v873
      %v3228 = vunpack.c.l.b16 %v874
      %v3229 = vunpack.c.l.b16 %v875
      %v3230 = vunpack.c.l.b16 %v876
      %v3231 = vunpack.c.l.b16 %v877
      %v3232 = vunpack.c.l.b16 %v878
      %v3233 = vunpack.c.l.b16 %v879
      %v3234 = vunpack.c.l.b16 %v880
      %v3235 = vunpack.c.l.b16 %v881
      %v3236 = vunpack.c.l.b16 %v882
      %v3237 = vunpack.c.l.b16 %v883
      %v3238 = vunpack.c.l.b16 %v884
      %v3239 = vunpack.c.l.b16 %v885
      %v3240 = vunpack.c.l.b16 %v886
      %v3241 = vunpack.c.l.b16 %v887
      %v3242 = vunpack.c.l.b16 %v888
      %v3243 = vunpack.c.l.b16 %v889
      %v3244 = vunpack.c.l.b16 %v890
      %v3245 = vunpack.c.l.b16 %v891
      %v3246 = vunpack.c.l.b16 %v892
      %v3247 = vunpack.c.l.b16 %v893
      %v3248 = vunpack.c.l.b16 %v894
      %v3249 = vunpack.c.l.b16 %v895
      %v3250 = vunpack.c.l.b16 %v896
      %v3251 = vunpack.c.l.b16 %v897
      %v3252 = vunpack.c.l.b16 %v898
      %v3253 = vunpack.c.l.b16 %v899
      %v3254 = vunpack.c.l.b16 %v900
      %v3255 = vunpack.c.l.b16 %v901
      %v3256 = vunpack.c.l.b16 %v902
      %v3257 = vunpack.c.l.b16 %v903
      %v3258 = vunpack.c.l.b16 %v904
      %v3259 = vunpack.c.l.b16 %v905
      %v3260 = vunpack.c.l.b16 %v906
      %v3261 = vunpack.c.l.b16 %v907
      %v3262 = vunpack.c.l.b16 %v908
      %v3263 = vunpack.c.l.b16 %v909
      %v3264 = vunpack.c.l.b16 %v910
      %v3265 = vunpack.c.l.b16 %v911
      %v3266 = vunpack.c.l.b16 %v912
      %v3267 = vunpack.c.l.b16 %v913
      %v3268 = vunpack.c.l.b16 %v914
      %v3269 = vunpack.c.l.b16 %v915
      %v3270 = vunpack.c.l.b16 %v916
      %v3271 = vunpack.c.l.b16 %v917
      %v3272 = vunpack.c.l.b16 %v918
      %v3273 = vunpack.c.l.b16 %v919
      %v3274 = vunpack.c.l.b16 %v920
      %v3275 = vunpack.c.l.b16 %v921
      %v3276 = vunpack.c.l.b16 %v922
      %v3277 = vunpack.c.l.b16 %v923
      %v3278 = vunpack.c.l.b16 %v924
      %v3279 = vunpack.c.l.b16 %v925
      %v3280 = vunpack.c.l.b16 %v926
      %v3281 = vunpack.c.l.b16 %v927
      %v3282 = vunpack.c.l.b16 %v928
      %v3283 = vunpack.c.l.b16 %v929
      %v3284 = vunpack.c.l.b16 %v930
      %v3285 = vunpack.c.l.b16 %v931
      %v3286 = vunpack.c.l.b16 %v932
      %v3287 = vunpack.c.l.b16 %v933
      %v3288 = vunpack.c.l.b16 %v934
      %v3289 = vunpack.c.l.b16 %v935
      %v3290 = vunpack.c.l.b16 %v936
      %v3291 = vunpack.c.l.b16 %v937
      %v3292 = vunpack.c.l.b16 %v938
      %v3293 = vunpack.c.l.b16 %v939
      %v3294 = vunpack.c.l.b16 %v940
      %v3295 = vunpack.c.l.b16 %v941
      %v3296 = vunpack.c.l.b16 %v942
      %v3297 = vunpack.c.l.b16 %v943
      %v3298 = vunpack.c.l.b16 %v944
      %v3299 = vunpack.c.l.b16 %v945
      %v3300 = vunpack.c.l.b16 %v946
      %v3301 = vunpack.c.l.b16 %v947
      %v3302 = vunpack.c.l.b16 %v948
      %v3303 = vunpack.c.l.b16 %v949
      %v3304 = vunpack.c.l.b16 %v950
      %v3305 = vunpack.c.l.b16 %v951
      %v3306 = vunpack.c.l.b16 %v952
      %v3307 = vunpack.c.l.b16 %v953
      %v3308 = vunpack.c.l.b16 %v954
      %v3309 = vunpack.c.l.b16 %v955
      %v3310 = vunpack.c.l.b16 %v956
      %v3311 = vunpack.c.l.b16 %v957
      %v3312 = vunpack.c.l.b16 %v958
      %v3313 = vunpack.c.l.b16 %v959
      %v3314 = vunpack.c.l.b16 %v960
      %v3315 = vunpack.c.l.b16 %v961
      %v3316 = vunpack.c.l.b16 %v962
      %v3317 = vunpack.c.l.b16 %v963
      %v3318 = vunpack.c.l.b16 %v964
      %v3319 = vunpack.c.l.b16 %v965
      %v3320 = vunpack.c.l.b16 %v966
      %v3321 = vunpack.c.l.b16 %v967
      %v3322 = vunpack.c.l.b16 %v968
      %v3323 = vunpack.c.l.b16 %v969
      %v3324 = vunpack.c.l.b16 %v970
      %v3325 = vunpack.c.l.b16 %v971
      %v3326 = vunpack.c.l.b16 %v972
      %v3327 = vunpack.c.l.b16 %v973
      %v3328 = vunpack.c.l.b16 %v974
      %v3329 = vunpack.c.l.b16 %v975
      %v3330 = vunpack.c.l.b16 %v976
      %v3331 = vunpack.c.l.b16 %v977
      %v3332 = vunpack.c.l.b16 %v978
      %v3333 = vunpack.c.l.b16 %v979
      %v3334 = vunpack.c.l.b16 %v980
      %v3335 = vunpack.c.l.b16 %v981
      %v3336 = vunpack.c.l.b16 %v982
      %v3337 = vunpack.c.l.b16 %v983
      %v3338 = vunpack.c.l.b16 %v984
      %v3339 = vunpack.c.l.b16 %v985
      %v3340 = vunpack.c.l.b16 %v986
      %v3341 = vunpack.c.l.b16 %v987
      %v3342 = vunpack.c.l.b16 %v988
      %v3343 = vunpack.c.l.b16 %v989
      %v3344 = vunpack.c.l.b16 %v990
      %v3345 = vunpack.c.l.b16 %v991
      %v3346 = vunpack.c.l.b16 %v992
      %v3347 = vunpack.c.l.b16 %v993
      %v3348 = vunpack.c.l.b16 %v994
      %v3349 = vunpack.c.l.b16 %v995
      %v3350 = vunpack.c.l.b16 %v996
      %v3351 = vunpack.c.l.b16 %v997
      %v3352 = vunpack.c.l.b16 %v998
      %v3353 = vunpack.c.l.b16 %v999
      %v3354 = vunpack.c.l.b16 %v1000
      %v3355 = vunpack.c.l.b16 %v1001
      %v3356 = vunpack.c.l.b16 %v1002
      %v3357 = vunpack.c.l.b16 %v1003
      %v3358 = vunpack.c.l.b16 %v1004
      %v3359 = vunpack.c.l.b16 %v1005
      %v3360 = vunpack.c.l.b16 %v1006
      %v3361 = vunpack.c.l.b16 %v1007
      %v3362 = vunpack.c.l.b16 %v1008
      %v3363 = vunpack.c.l.b16 %v1009
      %v3364 = vunpack.c.l.b16 %v1010
      %v3365 = vunpack.c.l.b16 %v1011
      %v3366 = vunpack.c.l.b16 %v1012
      %v3367 = vunpack.c.l.b16 %v1013
      %v3368 = vunpack.c.l.b16 %v1014
      %v3369 = vunpack.c.l.b16 %v1015
      %v3370 = vunpack.c.l.b16 %v1016
      %v3371 = vunpack.c.l.b16 %v1017
      %v3372 = vunpack.c.l.b16 %v1018
      %v3373 = vunpack.c.l.b16 %v1019
      %v3374 = vunpack.c.l.b16 %v1020
      %v3375 = vunpack.c.l.b16 %v1021
      %v3376 = vunpack.c.l.b16 %v1022
      %v3377 = vunpack.c.l.b16 %v1023
      %v3378 = vunpack.c.l.b16 %v1024
      %v3379 = vunpack.c.l.b16 %v1025
      %v3380 = vunpack.c.l.b16 %v1026
      %v3381 = vunpack.c.l.b16 %v1027
      %v3382 = vunpack.c.l.b16 %v1028
      %v3383 = vunpack.c.l.b16 %v1029
      %v3384 = vunpack.c.l.b16 %v1030
      %v3385 = vunpack.c.l.b16 %v1031
      %v3386 = vunpack.c.l.b16 %v1032
      %v3387 = vunpack.c.l.b16 %v1033
      %v3388 = vunpack.c.l.b16 %v1034
      %v3389 = vunpack.c.l.b16 %v1035
      %v3390 = vunpack.c.l.b16 %v1036
      %v3391 = vunpack.c.l.b16 %v1037
      %v3392 = vunpack.c.l.b16 %v1038
      %v3393 = vunpack.c.l.b16 %v1039
      %v3394 = vunpack.c.l.b16 %v1040
      %v3395 = vunpack.c.l.b16 %v1041
      %v3396 = vunpack.c.l.b16 %v1042
      %v3397 = vunpack.c.l.b16 %v1043
      %v3398 = vunpack.c.l.b16 %v1044
      %v3399 = vunpack.c.l.b16 %v1045
      %v3400 = vunpack.c.l.b16 %v1046
      %v3401 = vunpack.c.l.b16 %v1047
      %v3402 = vunpack.c.l.b16 %v1048
      %v3403 = vunpack.c.l.b16 %v1049
      %v3404 = vunpack.c.l.b16 %v1050
      %v3405 = vunpack.c.l.b16 %v1051
      %v3406 = vunpack.c.l.b16 %v1052
      %v3407 = vunpack.c.l.b16 %v1053
      %v3408 = vunpack.c.l.b16 %v1054
      %v3409 = vunpack.c.l.b16 %v1055
      %v3410 = vunpack.c.l.b16 %v1056
      %v3411 = vunpack.c.l.b16 %v1057
      %v3412 = vunpack.c.l.b16 %v1058
      %v3413 = vunpack.c.l.b16 %v1059
      %v3414 = vunpack.c.l.b16 %v1060
      %v3415 = vunpack.c.l.b16 %v1061
      %v3416 = vunpack.c.l.b16 %v1062
      %v3417 = vunpack.c.l.b16 %v1063
      %v3418 = vunpack.c.l.b16 %v1064
      %v3419 = vunpack.c.l.b16 %v1065
      %v3420 = vunpack.c.l.b16 %v1066
      %v3421 = vunpack.c.l.b16 %v1067
      %v3422 = vunpack.c.l.b16 %v1068
      %v3423 = vunpack.c.l.b16 %v1069
      %v3424 = vunpack.c.l.b16 %v1070
      %v3425 = vunpack.c.l.b16 %v1071
      %v3426 = vunpack.c.l.b16 %v1072
      %v3427 = vunpack.c.l.b16 %v1073
      %v3428 = vunpack.c.l.b16 %v1074
      %v3429 = vunpack.c.l.b16 %v1075
      %v3430 = vunpack.c.l.b16 %v1076
      %v3431 = vunpack.c.l.b16 %v1077
      %v3432 = vunpack.c.l.b16 %v1078
      %v3433 = vunpack.c.l.b16 %v1079
      %v3434 = vunpack.c.l.b16 %v1080
      %v3435 = vunpack.c.l.b16 %v1081
      %v3436 = vunpack.c.l.b16 %v1082
      %v3437 = vunpack.c.l.b16 %v1083
      %v3438 = vunpack.c.l.b16 %v1084
      %v3439 = vunpack.c.l.b16 %v1085
      %v3440 = vunpack.c.l.b16 %v1086
      %v3441 = vunpack.c.l.b16 %v1087
      %v3442 = vunpack.c.l.b16 %v1088
      %v3443 = vunpack.c.l.b16 %v1089
      %v3444 = vunpack.c.l.b16 %v1090
      %v3445 = vunpack.c.l.b16 %v1091
      %v3446 = vunpack.c.l.b16 %v1092
      %v3447 = vunpack.c.l.b16 %v1093
      %v3448 = vunpack.c.l.b16 %v1094
      %v3449 = vunpack.c.l.b16 %v1095
      %v3450 = vunpack.c.l.b16 %v1096
      %v3451 = vunpack.c.l.b16 %v1097
      %v3452 = vunpack.c.l.b16 %v1098
      %v3453 = vunpack.c.l.b16 %v1099
      %v3454 = vunpack.c.l.b16 %v1100
      %v3455 = vunpack.c.l.b16 %v1101
      %v3456 = vunpack.c.l.b16 %v1102
      %v3457 = vunpack.c.l.b16 %v1103
      %v3458 = vunpack.c.l.b16 %v1104
      %v3459 = vunpack.c.l.b16 %v1105
      %v3460 = vunpack.c.l.b16 %v1106
      %v3461 = vunpack.c.l.b16 %v1107
      %v3462 = vunpack.c.l.b16 %v1108
      %v3463 = vunpack.c.l.b16 %v1109
      %v3464 = vunpack.c.l.b16 %v1110
      %v3465 = vunpack.c.l.b16 %v1111
      %v3466 = vunpack.c.l.b16 %v1112
      %v3467 = vunpack.c.l.b16 %v1113
      %v3468 = vunpack.c.l.b16 %v1114
      %v3469 = vunpack.c.l.b16 %v1115
      %v3470 = vunpack.c.l.b16 %v1116
      %v3471 = vunpack.c.l.b16 %v1117
      %v3472 = vunpack.c.l.b16 %v1118
      %v3473 = vunpack.c.l.b16 %v1119
      %v3474 = vunpack.c.l.b16 %v1120
      %v3475 = vunpack.c.l.b16 %v1121
      %v3476 = vunpack.c.l.b16 %v1122
      %v3477 = vunpack.c.l.b16 %v1123
      %v3478 = vunpack.c.l.b16 %v1124
      %v3479 = vunpack.c.l.b16 %v1125
      %v3480 = vunpack.c.l.b16 %v1126
      %v3481 = vunpack.c.l.b16 %v1127
      %v3482 = vunpack.c.l.b16 %v1128
      %v3483 = vunpack.c.l.b16 %v1129
      %v3484 = vunpack.c.l.b16 %v1130
      %v3485 = vunpack.c.l.b16 %v1131
      %v3486 = vunpack.c.l.b16 %v1132
      %v3487 = vunpack.c.l.b16 %v1133
      %v3488 = vunpack.c.l.b16 %v1134
      %v3489 = vunpack.c.l.b16 %v1135
      %v3490 = vunpack.c.l.b16 %v1136
      %v3491 = vunpack.c.l.b16 %v1137
      %v3492 = vunpack.c.l.b16 %v1138
      %v3493 = vunpack.c.l.b16 %v1139
      %v3494 = vunpack.c.l.b16 %v1140
      %v3495 = vunpack.c.l.b16 %v1141
      %v3496 = vunpack.c.l.b16 %v1142
      %v3497 = vunpack.c.l.b16 %v1143
      %v3498 = vunpack.c.l.b16 %v1144
      %v3499 = vunpack.c.l.b16 %v1145
      %v3500 = vunpack.c.l.b16 %v1146
      %v3501 = vunpack.c.l.b16 %v1147
      %v3502 = vunpack.c.l.b16 %v1148
      %v3503 = vunpack.c.l.b16 %v1149
      %v3504 = vunpack.c.l.b16 %v1150
      %v3505 = vunpack.c.l.b16 %v1151
      %v3506 = vunpack.c.l.b16 %v1152
      %v3507 = vunpack.c.l.b16 %v1153
      %v3508 = vunpack.c.l.b16 %v1154
      %v3509 = vunpack.c.l.b16 %v1155
      %v3510 = vunpack.c.l.b16 %v1156
      %v3511 = vunpack.c.l.b16 %v1157
      %v3512 = vunpack.c.l.b16 %v1158
      %v3513 = vunpack.c.l.b16 %v1159
      %v3514 = vunpack.c.l.b16 %v1160
      %v3515 = vunpack.c.l.b16 %v1161
      %v3516 = vunpack.c.l.b16 %v1162
      %v3517 = vunpack.c.l.b16 %v1163
      %v3518 = vunpack.c.l.b16 %v1164
      %v3519 = vunpack.c.l.b16 %v1165
      %v3520 = vunpack.c.l.b16 %v1166
      %v3521 = vunpack.c.l.b16 %v1167
      %v3522 = vunpack.c.l.b16 %v1168
      %v3523 = vunpack.c.l.b16 %v1169
      %v3524 = vunpack.c.l.b16 %v1170
      %v3525 = vunpack.c.l.b16 %v1171
      %v3526 = vunpack.c.l.b16 %v1172
      %v3527 = vunpack.c.l.b16 %v1173
      %v3528 = vunpack.c.l.b16 %v1174
      %v3529 = vunpack.c.l.b16 %v1175
      %v3530 = vunpack.c.l.b16 %v1176
      %v3531 = vunpack.c.l.b16 %v1177
      %v3532 = vunpack.c.l.b16 %v1178
      %v3533 = vunpack.c.l.b16 %v1179
      %v3534 = vunpack.c.l.b16 %v1180
      %v3535 = vunpack.c.l.b16 %v1181
      %v3536 = vunpack.c.l.b16 %v1182
      %v3537 = vunpack.c.l.b16 %v1183
      %v3538 = vunpack.c.l.b16 %v1184
      %v3539 = vunpack.c.l.b16 %v1185
      %v3540 = vunpack.c.l.b16 %v1186
      %v3541 = vunpack.c.l.b16 %v1187
      %v3542 = vunpack.c.l.b16 %v1188
      %v3543 = vunpack.c.l.b16 %v1189
      %v3544 = vunpack.c.l.b16 %v1190
      %v3545 = vunpack.c.l.b16 %v1191
      %v3546 = vunpack.c.l.b16 %v1192
      %v3547 = vunpack.c.l.b16 %v1193
      %v3548 = vunpack.c.l.b16 %v1194
      %v3549 = vunpack.c.l.b16 %v1195
      %v3550 = vunpack.c.l.b16 %v1196
      %v3551 = vunpack.c.l.b16 %v1197
      %v3552 = vunpack.c.l.b16 %v1198
      %v3553 = vunpack.c.l.b16 %v1199
      %v3554 = vunpack.c.l.b16 %v1200
      %v3555 = vunpack.c.l.b16 %v1201
      %v3556 = vunpack.c.l.b16 %v1202
      %v3557 = vunpack.c.l.b16 %v1203
      %v3558 = vunpack.c.l.b16 %v1204
      %v3559 = vunpack.c.l.b16 %v1205
      %v3560 = vunpack.c.l.b16 %v1206
      %v3561 = vunpack.c.l.b16 %v1207
      %v3562 = vunpack.c.l.b16 %v1208
      %v3563 = vunpack.c.l.b16 %v1209
      %v3564 = vpack.c.b16 %v2741, %v2740
      %v3565 = vpack.c.b16 %v2743, %v2742
      %v3566 = vpack.c.b16 %v2745, %v2744
      %v3567 = vpack.c.b16 %v2747, %v2746
      %v3568 = vpack.c.b16 %v2749, %v2748
      %v3569 = vpack.c.b16 %v2751, %v2750
      %v3570 = vpack.c.b16 %v2753, %v2752
      %v3571 = vpack.c.b16 %v2755, %v2754
      %v3572 = vpack.c.b16 %v2757, %v2756
      %v3573 = vpack.c.b16 %v2759, %v2758
      %v3574 = vpack.c.b16 %v2761, %v2760
      %v3575 = vpack.c.b16 %v2763, %v2762
      %v3576 = vpack.c.b16 %v2765, %v2764
      %v3577 = vpack.c.b16 %v2767, %v2766
      %v3578 = vpack.c.b16 %v2769, %v2768
      %v3579 = vpack.c.b16 %v2771, %v2770
      %v3580 = vpack.c.b16 %v2773, %v2772
      %v3581 = vpack.c.b16 %v2775, %v2774
      %v3582 = vpack.c.b16 %v2777, %v2776
      %v3583 = vpack.c.b16 %v2779, %v2778
      %v3584 = vpack.c.b16 %v2781, %v2780
      %v3585 = vpack.c.b16 %v2783, %v2782
      %v3586 = vpack.c.b16 %v2785, %v2784
      %v3587 = vpack.c.b16 %v2787, %v2786
      %v3588 = vpack.c.b16 %v2789, %v2788
      %v3589 = vpack.c.b16 %v2791, %v2790
      %v3590 = vpack.c.b16 %v2793, %v2792
      %v3591 = vpack.c.b16 %v2795, %v2794
      %v3592 = vpack.c.b16 %v2797, %v2796
      %v3593 = vpack.c.b16 %v2799, %v2798
      %v3594 = vpack.c.b16 %v2801, %v2800
      %v3595 = vpack.c.b16 %v2803, %v2802
      %v3596 = vpack.c.b16 %v2805, %v2804
      %v3597 = vpack.c.b16 %v2807, %v2806
      %v3598 = vpack.c.b16 %v2809, %v2808
      %v3599 = vpack.c.b16 %v2811, %v2810
      %v3600 = vpack.c.b16 %v2813, %v2812
      %v3601 = vpack.c.b16 %v2815, %v2814
      %v3602 = vpack.c.b16 %v2817, %v2816
      %v3603 = vpack.c.b16 %v2819, %v2818
      %v3604 = vpack.c.b16 %v2821, %v2820
      %v3605 = vpack.c.b16 %v2823, %v2822
      %v3606 = vpack.c.b16 %v2825, %v2824
      %v3607 = vpack.c.b16 %v2827, %v2826
      %v3608 = vpack.c.b16 %v2829, %v2828
      %v3609 = vpack.c.b16 %v2831, %v2830
      %v3610 = vpack.c.b16 %v2833, %v2832
      %v3611 = vpack.c.b16 %v2835, %v2834
      %v3612 = vpack.c.b16 %v2837, %v2836
      %v3613 = vpack.c.b16 %v2839, %v2838
      %v3614 = vpack.c.b16 %v2841, %v2840
      %v3615 = vpack.c.b16 %v2843, %v2842
      %v3616 = vpack.c.b16 %v2845, %v2844
      %v3617 = vpack.c.b16 %v2847, %v2846
      %v3618 = vpack.c.b16 %v2849, %v2848
      %v3619 = vpack.c.b16 %v2851, %v2850
      %v3620 = vpack.c.b16 %v2853, %v2852
      %v3621 = vpack.c.b16 %v2855, %v2854
      %v3622 = vpack.c.b16 %v2857, %v2856
      %v3623 = vpack.c.b16 %v2859, %v2858
      %v3624 = vpack.c.b16 %v2861, %v2860
      %v3625 = vpack.c.b16 %v2863, %v2862
      %v3626 = vpack.c.b16 %v2865, %v2864
      %v3627 = vpack.c.b16 %v2867, %v2866
      %v3628 = vpack.c.b16 %v2869, %v2868
      %v3629 = vpack.c.b16 %v2871, %v2870
      %v3630 = vpack.c.b16 %v2873, %v2872
      %v3631 = vpack.c.b16 %v2875, %v2874
      %v3632 = vpack.c.b16 %v2877, %v2876
      %v3633 = vpack.c.b16 %v2879, %v2878
      %v3634 = vpack.c.b16 %v2881, %v2880
      %v3635 = vpack.c.b16 %v2883, %v2882
      %v3636 = vpack.c.b16 %v2885, %v2884
      %v3637 = vpack.c.b16 %v2887, %v2886
      %v3638 = vpack.c.b16 %v2889, %v2888
      %v3639 = vpack.c.b16 %v2891, %v2890
      %v3640 = vpack.c.b16 %v2893, %v2892
      %v3641 = vpack.c.b16 %v2895, %v2894
      %v3642 = vpack.c.b16 %v2897, %v2896
      %v3643 = vpack.c.b16 %v2899, %v2898
      %v3644 = vpack.c.b16 %v2901, %v2900
      %v3645 = vpack.c.b16 %v2903, %v2902
      %v3646 = vpack.c.b16 %v2905, %v2904
      %v3647 = vpack.c.b16 %v2907, %v2906
      %v3648 = vpack.c.b16 %v2909, %v2908
      %v3649 = vpack.c.b16 %v2911, %v2910
      %v3650 = vpack.c.b16 %v2913, %v2912
      %v3651 = vpack.c.b16 %v2915, %v2914
      %v3652 = vpack.c.b16 %v2917, %v2916
      %v3653 = vpack.c.b16 %v2919, %v2918
      %v3654 = vpack.c.b16 %v2921, %v2920
      %v3655 = vpack.c.b16 %v2923, %v2922
      %v3656 = vpack.c.b16 %v2925, %v2924
      %v3657 = vpack.c.b16 %v2927, %v2926
      %v3658 = vpack.c.b16 %v2929, %v2928
      %v3659 = vpack.c.b16 %v2931, %v2930
      %v3660 = vpack.c.b16 %v2933, %v2932
      %v3661 = vpack.c.b16 %v2935, %v2934
      %v3662 = vpack.c.b16 %v2937, %v2936
      %v3663 = vpack.c.b16 %v2939, %v2938
      %v3664 = vpack.c.b16 %v2941, %v2940
      %v3665 = vpack.c.b16 %v2943, %v2942
      %v3666 = vpack.c.b16 %v2945, %v2944
      %v3667 = vpack.c.b16 %v2947, %v2946
      %v3668 = vpack.c.b16 %v2949, %v2948
      %v3669 = vpack.c.b16 %v2951, %v2950
      %v3670 = vpack.c.b16 %v2953, %v2952
      %v3671 = vpack.c.b16 %v2955, %v2954
      %v3672 = vpack.c.b16 %v2957, %v2956
      %v3673 = vpack.c.b16 %v2959, %v2958
      %v3674 = vpack.c.b16 %v2961, %v2960
      %v3675 = vpack.c.b16 %v2963, %v2962
      %v3676 = vpack.c.b16 %v2965, %v2964
      %v3677 = vpack.c.b16 %v2967, %v2966
      %v3678 = vpack.c.b16 %v2969, %v2968
      %v3679 = vpack.c.b16 %v2971, %v2970
      %v3680 = vpack.c.b16 %v2973, %v2972
      %v3681 = vpack.c.b16 %v2975, %v2974
      %v3682 = vpack.c.b16 %v2977, %v2976
      %v3683 = vpack.c.b16 %v2979, %v2978
      %v3684 = vpack.c.b16 %v2981, %v2980
      %v3685 = vpack.c.b16 %v2983, %v2982
      %v3686 = vpack.c.b16 %v2985, %v2984
      %v3687 = vpack.c.b16 %v2987, %v2986
      %v3688 = vpack.c.b16 %v2989, %v2988
      %v3689 = vpack.c.b16 %v2991, %v2990
      %v3690 = vpack.c.b16 %v2993, %v2992
      %v3691 = vpack.c.b16 %v2995, %v2994
      %v3692 = vpack.c.b16 %v2997, %v2996
      %v3693 = vpack.c.b16 %v2999, %v2998
      %v3694 = vpack.c.b16 %v3001, %v3000
      %v3695 = vpack.c.b16 %v3003, %v3002
      %v3696 = vpack.c.b16 %v3005, %v3004
      %v3697 = vpack.c.b16 %v3007, %v3006
      %v3698 = vpack.c.b16 %v3009, %v3008
      %v3699 = vpack.c.b16 %v3011, %v3010
      %v3700 = vpack.c.b16 %v3013, %v3012
      %v3701 = vpack.c.b16 %v3015, %v3014
      %v3702 = vpack.c.b16 %v3017, %v3016
      %v3703 = vpack.c.b16 %v3019, %v3018
      %v3704 = vpack.c.b16 %v3021, %v3020
      %v3705 = vpack.c.b16 %v3023, %v3022
      %v3706 = vpack.c.b16 %v3025, %v3024
      %v3707 = vpack.c.b16 %v3027, %v3026
      %v3708 = vpack.c.b16 %v3029, %v3028
      %v3709 = vpack.c.b16 %v3031, %v3030
      %v3710 = vpack.c.b16 %v3033, %v3032
      %v3711 = vpack.c.b16 %v3035, %v3034
      %v3712 = vpack.c.b16 %v3037, %v3036
      %v3713 = vpack.c.b16 %v3039, %v3038
      %v3714 = vpack.c.b16 %v3041, %v3040
      %v3715 = vpack.c.b16 %v3043, %v3042
      %v3716 = vpack.c.b16 %v3045, %v3044
      %v3717 = vpack.c.b16 %v3047, %v3046
      %v3718 = vpack.c.b16 %v3049, %v3048
      %v3719 = vpack.c.b16 %v3051, %v3050
      %v3720 = vpack.c.b16 %v3053, %v3052
      %v3721 = vpack.c.b16 %v3055, %v3054
      %v3722 = vpack.c.b16 %v3057, %v3056
      %v3723 = vpack.c.b16 %v3059, %v3058
      %v3724 = vpack.c.b16 %v3061, %v3060
      %v3725 = vpack.c.b16 %v3063, %v3062
      %v3726 = vpack.c.b16 %v3065, %v3064
      %v3727 = vpack.c.b16 %v3067, %v3066
      %v3728 = vpack.c.b16 %v3069, %v3068
      %v3729 = vpack.c.b16 %v3071, %v3070
      %v3730 = vpack.c.b16 %v3073, %v3072
      %v3731 = vpack.c.b16 %v3075, %v3074
      %v3732 = vpack.c.b16 %v3077, %v3076
      %v3733 = vpack.c.b16 %v3079, %v3078
      %v3734 = vpack.c.b16 %v3081, %v3080
      %v3735 = vpack.c.b16 %v3083, %v3082
      %v3736 = vpack.c.b16 %v3085, %v3084
      %v3737 = vpack.c.b16 %v3087, %v3086
      %v3738 = vpack.c.b16 %v3089, %v3088
      %v3739 = vpack.c.b16 %v3091, %v3090
      %v3740 = vpack.c.b16 %v3093, %v3092
      %v3741 = vpack.c.b16 %v3095, %v3094
      %v3742 = vpack.c.b16 %v3097, %v3096
      %v3743 = vpack.c.b16 %v3099, %v3098
      %v3744 = vpack.c.b16 %v3101, %v3100
      %v3745 = vpack.c.b16 %v3103, %v3102
      %v3746 = vpack.c.b16 %v3105, %v3104
      %v3747 = vpack.c.b16 %v3107, %v3106
      %v3748 = vpack.c.b16 %v3109, %v3108
      %v3749 = vpack.c.b16 %v3111, %v3110
      %v3750 = vpack.c.b16 %v3113, %v3112
      %v3751 = vpack.c.b16 %v3115, %v3114
      %v3752 = vpack.c.b16 %v3117, %v3116
      %v3753 = vpack.c.b16 %v3119, %v3118
      %v3754 = vpack.c.b16 %v3121, %v3120
      %v3755 = vpack.c.b16 %v3123, %v3122
      %v3756 = vpack.c.b16 %v3125, %v3124
      %v3757 = vpack.c.b16 %v3127, %v3126
      %v3758 = vpack.c.b16 %v3129, %v3128
      %v3759 = vpack.c.b16 %v3131, %v3130
      %v3760 = vpack.c.b16 %v3133, %v3132
      %v3761 = vpack.c.b16 %v3135, %v3134
      %v3762 = vpack.c.b16 %v3137, %v3136
      %v3763 = vpack.c.b16 %v3139, %v3138
      %v3764 = vpack.c.b16 %v3141, %v3140
      %v3765 = vpack.c.b16 %v3143, %v3142
      %v3766 = vpack.c.b16 %v3145, %v3144
      %v3767 = vpack.c.b16 %v3147, %v3146
      %v3768 = vpack.c.b16 %v3149, %v3148
      %v3769 = vpack.c.b16 %v3151, %v3150
      %v3770 = vpack.c.b16 %v3153, %v3152
      %v3771 = vpack.c.b16 %v3155, %v3154
      %v3772 = vpack.c.b16 %v3157, %v3156
      %v3773 = vpack.c.b16 %v3159, %v3158
      %v3774 = vpack.c.b16 %v3161, %v3160
      %v3775 = vpack.c.b16 %v3163, %v3162
      %v3776 = vpack.c.b16 %v3165, %v3164
      %v3777 = vpack.c.b16 %v3167, %v3166
      %v3778 = vpack.c.b16 %v3169, %v3168
      %v3779 = vpack.c.b16 %v3171, %v3170
      %v3780 = vpack.c.b16 %v3173, %v3172
      %v3781 = vpack.c.b16 %v3175, %v3174
      %v3782 = vpack.c.b16 %v3177, %v3176
      %v3783 = vpack.c.b16 %v3179, %v3178
      %v3784 = vpack.c.b16 %v3181, %v3180
      %v3785 = vpack.c.b16 %v3183, %v3182
      %v3786 = vpack.c.b16 %v3185, %v3184
      %v3787 = vpack.c.b16 %v3187, %v3186
      %v3788 = vpack.c.b16 %v3189, %v3188
      %v3789 = vpack.c.b16 %v3191, %v3190
      %v3790 = vpack.c.b16 %v3193, %v3192
      %v3791 = vpack.c.b16 %v3195, %v3194
      %v3792 = vpack.c.b16 %v3197, %v3196
      %v3793 = vpack.c.b16 %v3199, %v3198
      %v3794 = vpack.c.b16 %v3201, %v3200
      %v3795 = vpack.c.b16 %v3203, %v3202
      %v3796 = vpack.c.b16 %v3205, %v3204
      %v3797 = vpack.c.b16 %v3207, %v3206
      %v3798 = vpack.c.b16 %v3209, %v3208
      %v3799 = vpack.c.b16 %v3211, %v3210
      %v3800 = vpack.c.b16 %v3213, %v3212
      %v3801 = vpack.c.b16 %v3215, %v3214
      %v3802 = vpack.c.b16 %v3217, %v3216
      %v3803 = vpack.c.b16 %v3219, %v3218
      %v3804 = vpack.c.b16 %v3221, %v3220
      %v3805 = vpack.c.b16 %v3223, %v3222
      %v3806 = vpack.c.b16 %v3225, %v3224
      %v3807 = vpack.c.b16 %v3227, %v3226
      %v3808 = vpack.c.b16 %v3229, %v3228
      %v3809 = vpack.c.b16 %v3231, %v3230
      %v3810 = vpack.c.b16 %v3233, %v3232
      %v3811 = vpack.c.b16 %v3235, %v3234
      %v3812 = vpack.c.b16 %v3237, %v3236
      %v3813 = vpack.c.b16 %v3239, %v3238
      %v3814 = vpack.c.b16 %v3241, %v3240
      %v3815 = vpack.c.b16 %v3243, %v3242
      %v3816 = vpack.c.b16 %v3245, %v3244
      %v3817 = vpack.c.b16 %v3247, %v3246
      %v3818 = vpack.c.b16 %v3249, %v3248
      %v3819 = vpack.c.b16 %v3251, %v3250
      %v3820 = vpack.c.b16 %v3253, %v3252
      %v3821 = vpack.c.b16 %v3255, %v3254
      %v3822 = vpack.c.b16 %v3257, %v3256
      %v3823 = vpack.c.b16 %v3259, %v3258
      %v3824 = vpack.c.b16 %v3261, %v3260
      %v3825 = vpack.c.b16 %v3263, %v3262
      %v3826 = vpack.c.b16 %v3265, %v3264
      %v3827 = vpack.c.b16 %v3267, %v3266
      %v3828 = vpack.c.b16 %v3269, %v3268
      %v3829 = vpack.c.b16 %v3271, %v3270
      %v3830 = vpack.c.b16 %v3273, %v3272
      %v3831 = vpack.c.b16 %v3275, %v3274
      %v3832 = vpack.c.b16 %v3277, %v3276
      %v3833 = vpack.c.b16 %v3279, %v3278
      %v3834 = vpack.c.b16 %v3281, %v3280
      %v3835 = vpack.c.b16 %v3283, %v3282
      %v3836 = vpack.c.b16 %v3285, %v3284
      %v3837 = vpack.c.b16 %v3287, %v3286
      %v3838 = vpack.c.b16 %v3289, %v3288
      %v3839 = vpack.c.b16 %v3291, %v3290
      %v3840 = vpack.c.b16 %v3293, %v3292
      %v3841 = vpack.c.b16 %v3295, %v3294
      %v3842 = vpack.c.b16 %v3297, %v3296
      %v3843 = vpack.c.b16 %v3299, %v3298
      %v3844 = vpack.c.b16 %v3301, %v3300
      %v3845 = vpack.c.b16 %v3303, %v3302
      %v3846 = vpack.c.b16 %v3305, %v3304
      %v3847 = vpack.c.b16 %v3307, %v3306
      %v3848 = vpack.c.b16 %v3309, %v3308
      %v3849 = vpack.c.b16 %v3311, %v3310
      %v3850 = vpack.c.b16 %v3313, %v3312
      %v3851 = vpack.c.b16 %v3315, %v3314
      %v3852 = vpack.c.b16 %v3317, %v3316
      %v3853 = vpack.c.b16 %v3319, %v3318
      %v3854 = vpack.c.b16 %v3321, %v3320
      %v3855 = vpack.c.b16 %v3323, %v3322
      %v3856 = vpack.c.b16 %v3325, %v3324
      %v3857 = vpack.c.b16 %v3327, %v3326
      %v3858 = vpack.c.b16 %v3329, %v3328
      %v3859 = vpack.c.b16 %v3331, %v3330
      %v3860 = vpack.c.b16 %v3333, %v3332
      %v3861 = vpack.c.b16 %v3335, %v3334
      %v3862 = vpack.c.b16 %v3337, %v3336
      %v3863 = vpack.c.b16 %v3339, %v3338
      %v3864 = vpack.c.b16 %v3341, %v3340
      %v3865 = vpack.c.b16 %v3343, %v3342
      %v3866 = vpack.c.b16 %v3345, %v3344
      %v3867 = vpack.c.b16 %v3347, %v3346
      %v3868 = vpack.c.b16 %v3349, %v3348
      %v3869 = vpack.c.b16 %v3351, %v3350
      %v3870 = vpack.c.b16 %v3353, %v3352
      %v3871 = vpack.c.b16 %v3355, %v3354
      %v3872 = vpack.c.b16 %v3357, %v3356
      %v3873 = vpack.c.b16 %v3359, %v3358
      %v3874 = vpack.c.b16 %v3361, %v3360
      %v3875 = vpack.c.b16 %v3363, %v3362
      %v3876 = vpack.c.b16 %v3365, %v3364
      %v3877 = vpack.c.b16 %v3367, %v3366
      %v3878 = vpack.c.b16 %v3369, %v3368
      %v3879 = vpack.c.b16 %v3371, %v3370
      %v3880 = vpack.c.b16 %v3373, %v3372
      %v3881 = vpack.c.b16 %v3375, %v3374
      %v3882 = vpack.c.b16 %v3377, %v3376
      %v3883 = vpack.c.b16 %v3379, %v3378
      %v3884 = vpack.c.b16 %v3381, %v3380
      %v3885 = vpack.c.b16 %v3383, %v3382
      %v3886 = vpack.c.b16 %v3385, %v3384
      %v3887 = vpack.c.b16 %v3387, %v3386
      %v3888 = vpack.c.b16 %v3389, %v3388
      %v3889 = vpack.c.b16 %v3391, %v3390
      %v3890 = vpack.c.b16 %v3393, %v3392
      %v3891 = vpack.c.b16 %v3395, %v3394
      %v3892 = vpack.c.b16 %v3397, %v3396
      %v3893 = vpack.c.b16 %v3399, %v3398
      %v3894 = vpack.c.b16 %v3401, %v3400
      %v3895 = vpack.c.b16 %v3403, %v3402
      %v3896 = vpack.c.b16 %v3405, %v3404
      %v3897 = vpack.c.b16 %v3407, %v3406
      %v3898 = vpack.c.b16 %v3409, %v3408
      %v3899 = vpack.c.b16 %v3411, %v3410
      %v3900 = vpack.c.b16 %v3413, %v3412
      %v3901 = vpack.c.b16 %v3415, %v3414
      %v3902 = vpack.c.b16 %v3417, %v3416
      %v3903 = vpack.c.b16 %v3419, %v3418
      %v3904 = vpack.c.b16 %v3421, %v3420
      %v3905 = vpack.c.b16 %v3423, %v3422
      %v3906 = vpack.c.b16 %v3425, %v3424
      %v3907 = vpack.c.b16 %v3427, %v3426
      %v3908 = vpack.c.b16 %v3429, %v3428
      %v3909 = vpack.c.b16 %v3431, %v3430
      %v3910 = vpack.c.b16 %v3433, %v3432
      %v3911 = vpack.c.b16 %v3435, %v3434
      %v3912 = vpack.c.b16 %v3437, %v3436
      %v3913 = vpack.c.b16 %v3439, %v3438
      %v3914 = vpack.c.b16 %v3441, %v3440
      %v3915 = vpack.c.b16 %v3443, %v3442
      %v3916 = vpack.c.b16 %v3445, %v3444
      %v3917 = vpack.c.b16 %v3447, %v3446
      %v3918 = vpack.c.b16 %v3449, %v3448
      %v3919 = vpack.c.b16 %v3451, %v3450
      %v3920 = vpack.c.b16 %v3453, %v3452
      %v3921 = vpack.c.b16 %v3455, %v3454
      %v3922 = vpack.c.b16 %v3457, %v3456
      %v3923 = vpack.c.b16 %v3459, %v3458
      %v3924 = vpack.c.b16 %v3461, %v3460
      %v3925 = vpack.c.b16 %v3463, %v3462
      %v3926 = vpack.c.b16 %v3465, %v3464
      %v3927 = vpack.c.b16 %v3467, %v3466
      %v3928 = vpack.c.b16 %v3469, %v3468
      %v3929 = vpack.c.b16 %v3471, %v3470
      %v3930 = vpack.c.b16 %v3473, %v3472
      %v3931 = vpack.c.b16 %v3475, %v3474
      %v3932 = vpack.c.b16 %v3477, %v3476
      %v3933 = vpack.c.b16 %v3479, %v3478
      %v3934 = vpack.c.b16 %v3481, %v3480
      %v3935 = vpack.c.b16 %v3483, %v3482
      %v3936 = vpack.c.b16 %v3485, %v3484
      %v3937 = vpack.c.b16 %v3487, %v3486
      %v3938 = vpack.c.b16 %v3489, %v3488
      %v3939 = vpack.c.b16 %v3491, %v3490
      %v3940 = vpack.c.b16 %v3493, %v3492
      %v3941 = vpack.c.b16 %v3495, %v3494
      %v3942 = vpack.c.b16 %v3497, %v3496
      %v3943 = vpack.c.b16 %v3499, %v3498
      %v3944 = vpack.c.b16 %v3501, %v3500
      %v3945 = vpack.c.b16 %v3503, %v3502
      %v3946 = vpack.c.b16 %v3505, %v3504
      %v3947 = vpack.c.b16 %v3507, %v3506
      %v3948 = vpack.c.b16 %v3509, %v3508
      %v3949 = vpack.c.b16 %v3511, %v3510
      %v3950 = vpack.c.b16 %v3513, %v3512
      %v3951 = vpack.c.b16 %v3515, %v3514
      %v3952 = vpack.c.b16 %v3517, %v3516
      %v3953 = vpack.c.b16 %v3519, %v3518
      %v3954 = vpack.c.b16 %v3521, %v3520
      %v3955 = vpack.c.b16 %v3523, %v3522
      %v3956 = vpack.c.b16 %v3525, %v3524
      %v3957 = vpack.c.b16 %v3527, %v3526
      %v3958 = vpack.c.b16 %v3529, %v3528
      %v3959 = vpack.c.b16 %v3531, %v3530
      %v3960 = vpack.c.b16 %v3533, %v3532
      %v3961 = vpack.c.b16 %v3535, %v3534
      %v3962 = vpack.c.b16 %v3537, %v3536
      %v3963 = vpack.c.b16 %v3539, %v3538
      %v3964 = vpack.c.b16 %v3541, %v3540
      %v3965 = vpack.c.b16 %v3543, %v3542
      %v3966 = vpack.c.b16 %v3545, %v3544
      %v3967 = vpack.c.b16 %v3547, %v3546
      %v3968 = vpack.c.b16 %v3549, %v3548
      %v3969 = vpack.c.b16 %v3551, %v3550
      %v3970 = vpack.c.b16 %v3553, %v3552
      %v3971 = vpack.c.b16 %v3555, %v3554
      %v3972 = vpack.c.b16 %v3557, %v3556
      %v3973 = vpack.c.b16 %v3559, %v3558
      %v3974 = vpack.c.b16 %v3561, %v3560
      %v3975 = vpack.c.b16 %v3563, %v3562
      %vm4388 = vcmask 523264
      %v4390 = vsel %vm4388, %v1658, 0
      %v4393 = vsel %vm4388, %v1710, 0
      %v4396 = vsel %vm4388, %v1762, 0
      %4398 = vmatprep.subr.bf16.mxu0 0
      %4399 = vmatpush1.bf16.msra.mxu0 %v3564
      %4400 = vmatprep.subr.bf16.mxu0 0
      %4401 = vmatpush1.bf16.msra.mxu0 %v3565
      %4402 = vmatprep.subr.bf16.mxu0 0
      %4403 = vmatpush1.bf16.msra.mxu0 %v3566
      %4404 = vmatprep.subr.bf16.mxu0 0
      %4405 = vmatpush1.bf16.msra.mxu0 %v3567
      %4406 = vmatprep.subr.bf16.mxu0 0
      %4407 = vmatpush1.bf16.msra.mxu0 %v3568
      %4408 = vmatprep.subr.bf16.mxu0 0
      %4409 = vmatpush1.bf16.msra.mxu0 %v3569
      %4410 = vmatprep.subr.bf16.mxu0 0
      %4411 = vmatpush1.bf16.msra.mxu0 %v3570
      %4412 = vmatprep.subr.bf16.mxu0 0
      %4413 = vmatpush1.bf16.msra.mxu0 %v3571
      %4414 = vmatprep.subr.bf16.mxu0 0
      %4415 = vmatpush1.bf16.msra.mxu0 %v3572
      %4416 = vmatprep.subr.bf16.mxu0 0
      %4417 = vmatpush1.bf16.msra.mxu0 %v3573
      %4418 = vmatprep.subr.bf16.mxu0 0
      %4419 = vmatpush1.bf16.msra.mxu0 %v3574
      %4420 = vmatprep.subr.bf16.mxu0 0
      %4421 = vmatpush1.bf16.msra.mxu0 %v3575
      %4422 = vmatprep.subr.bf16.mxu0 0
      %4423 = vmatpush1.bf16.msra.mxu0 %v3576
      %4424 = vmatprep.subr.bf16.mxu0 0
      %4425 = vmatpush1.bf16.msra.mxu0 %v3577
      %4426 = vmatprep.subr.bf16.mxu0 0
      %4427 = vmatpush1.bf16.msra.mxu0 %v3578
      %4428 = vmatprep.subr.bf16.mxu0 0
      %4429 = vmatpush1.bf16.msra.mxu0 %v3579
      %4430 = vmatprep.mubr.bf16.mxu0 %v1608
      %4431 = vmatmul.mubr.bf16.gmra.mrb[0].mxu0 %v1607
      %v4432 = vpop.f32.mrb[0].mxu0
      %v4433 = vadd.f32 %v1215, %v4432
      %v4434 = vpop.f32.mrb[0].mxu0
      %v4435 = vpop.f32.mrb[0].mxu0
      %v4436 = vadd.f32 %v1215, %v4435
      %v4437 = vpop.f32.mrb[0].mxu0
      %4438 = vmatprep.mubr.bf16.mxu0 %v1660
      %4439 = vmatmul.mubr.bf16.gmra.mrb[0].mxu0 %v1659
      %v4440 = vpop.f32.mrb[0].mxu0
      %v4441 = vadd.f32 %v1215, %v4440
      %v4442 = vpop.f32.mrb[0].mxu0
      %v4443 = vpop.f32.mrb[0].mxu0
      %v4444 = vadd.f32 %v1215, %v4443
      %v4445 = vpop.f32.mrb[0].mxu0
      %4446 = vmatprep.mubr.bf16.mxu0 %v1712
      %4447 = vmatmul.mubr.bf16.gmra.mrb[0].mxu0 %v1711
      %v4448 = vpop.f32.mrb[0].mxu0
      %v4449 = vadd.f32 %v1215, %v4448
      %v4450 = vpop.f32.mrb[0].mxu0
      %v4451 = vpop.f32.mrb[0].mxu0
      %v4452 = vpop.f32.mrb[0].mxu0
      %4453 = vdwg.mxu0
      %4454 = vmatprep.subr.bf16.mxu0 0
      %4455 = vmatpush1.bf16.msra.mxu0 %v3580
      %4456 = vmatprep.subr.bf16.mxu0 0
      %4457 = vmatpush1.bf16.msra.mxu0 %v3581
      %4458 = vmatprep.subr.bf16.mxu0 0
      %4459 = vmatpush1.bf16.msra.mxu0 %v3582
      %4460 = vmatprep.subr.bf16.mxu0 0
      %4461 = vmatpush1.bf16.msra.mxu0 %v3583
      %4462 = vmatprep.subr.bf16.mxu0 0
      %4463 = vmatpush1.bf16.msra.mxu0 %v3584
      %4464 = vmatprep.subr.bf16.mxu0 0
      %4465 = vmatpush1.bf16.msra.mxu0 %v3585
      %4466 = vmatprep.subr.bf16.mxu0 0
      %4467 = vmatpush1.bf16.msra.mxu0 %v3586
      %4468 = vmatprep.subr.bf16.mxu0 0
      %4469 = vmatpush1.bf16.msra.mxu0 %v3587
      %4470 = vmatprep.subr.bf16.mxu0 0
      %4471 = vmatpush1.bf16.msra.mxu0 %v3588
      %4472 = vmatprep.subr.bf16.mxu0 0
      %4473 = vmatpush1.bf16.msra.mxu0 %v3589
      %4474 = vmatprep.subr.bf16.mxu0 0
      %4475 = vmatpush1.bf16.msra.mxu0 %v3590
      %4476 = vmatprep.subr.bf16.mxu0 0
      %4477 = vmatpush1.bf16.msra.mxu0 %v3591
      %4478 = vmatprep.subr.bf16.mxu0 0
      %4479 = vmatpush1.bf16.msra.mxu0 %v3592
      %4480 = vmatprep.subr.bf16.mxu0 0
      %4481 = vmatpush1.bf16.msra.mxu0 %v3593
      %4482 = vmatprep.subr.bf16.mxu0 0
      %4483 = vmatpush1.bf16.msra.mxu0 %v3594
      %4484 = vmatprep.subr.bf16.mxu0 0
      %4485 = vmatpush1.bf16.msra.mxu0 %v3595
      %4486 = vmatprep.mubr.bf16.mxu0 %v1610
      %4487 = vmatmul.mubr.bf16.gmra.mrb[0].mxu0 %v1609
      %v4488 = vpop.f32.mrb[0].mxu0
      %v4489 = vadd.f32 %v4433, %v4488
      %v4490 = vpop.f32.mrb[0].mxu0
      %v4491 = vpop.f32.mrb[0].mxu0
      %v4492 = vadd.f32 %v4436, %v4491
      %v4493 = vpop.f32.mrb[0].mxu0
      %4494 = vmatprep.mubr.bf16.mxu0 %v1662
      %4495 = vmatmul.mubr.bf16.gmra.mrb[0].mxu0 %v1661
      %v4496 = vpop.f32.mrb[0].mxu0
      %v4497 = vadd.f32 %v4441, %v4496
      %v4498 = vpop.f32.mrb[0].mxu0
      %v4499 = vpop.f32.mrb[0].mxu0
      %v4500 = vadd.f32 %v4444, %v4499
      %v4501 = vpop.f32.mrb[0].mxu0
      %4502 = vmatprep.mubr.bf16.mxu0 %v1714
      %4503 = vmatmul.mubr.bf16.gmra.mrb[0].mxu0 %v1713
      %v4504 = vpop.f32.mrb[0].mxu0
      %v4505 = vadd.f32 %v4449, %v4504
      %v4506 = vpop.f32.mrb[0].mxu0
      %v4507 = vpop.f32.mrb[0].mxu0
      %v4508 = vpop.f32.mrb[0].mxu0
      %4509 = vdwg.mxu0
      %4510 = vmatprep.subr.bf16.mxu0 0
      %4511 = vmatpush1.bf16.msra.mxu0 %v3596
      %4512 = vmatprep.subr.bf16.mxu0 0
      %4513 = vmatpush1.bf16.msra.mxu0 %v3597
      %4514 = vmatprep.subr.bf16.mxu0 0
      %4515 = vmatpush1.bf16.msra.mxu0 %v3598
      %4516 = vmatprep.subr.bf16.mxu0 0
      %4517 = vmatpush1.bf16.msra.mxu0 %v3599
      %4518 = vmatprep.subr.bf16.mxu0 0
      %4519 = vmatpush1.bf16.msra.mxu0 %v3600
      %4520 = vmatprep.subr.bf16.mxu0 0
      %4521 = vmatpush1.bf16.msra.mxu0 %v3601
      %4522 = vmatprep.subr.bf16.mxu0 0
      %4523 = vmatpush1.bf16.msra.mxu0 %v3602
      %4524 = vmatprep.subr.bf16.mxu0 0
      %4525 = vmatpush1.bf16.msra.mxu0 %v3603
      %4526 = vmatprep.subr.bf16.mxu0 0
      %4527 = vmatpush1.bf16.msra.mxu0 %v3604
      %4528 = vmatprep.subr.bf16.mxu0 0
      %4529 = vmatpush1.bf16.msra.mxu0 %v3605
      %4530 = vmatprep.subr.bf16.mxu0 0
      %4531 = vmatpush1.bf16.msra.mxu0 %v3606
      %4532 = vmatprep.subr.bf16.mxu0 0
      %4533 = vmatpush1.bf16.msra.mxu0 %v3607
      %4534 = vmatprep.subr.bf16.mxu0 0
      %4535 = vmatpush1.bf16.msra.mxu0 %v3608
      %4536 = vmatprep.subr.bf16.mxu0 0
      %4537 = vmatpush1.bf16.msra.mxu0 %v3609
      %4538 = vmatprep.subr.bf16.mxu0 0
      %4539 = vmatpush1.bf16.msra.mxu0 %v3610
      %4540 = vmatprep.subr.bf16.mxu0 0
      %4541 = vmatpush1.bf16.msra.mxu0 %v3611
      %4542 = vmatprep.mubr.bf16.mxu0 %v1612
      %4543 = vmatmul.mubr.bf16.gmra.mrb[0].mxu0 %v1611
      %v4544 = vpop.f32.mrb[0].mxu0
      %v4545 = vadd.f32 %v4489, %v4544
      %v4546 = vpop.f32.mrb[0].mxu0
      %v4547 = vpop.f32.mrb[0].mxu0
      %v4548 = vadd.f32 %v4492, %v4547
      %v4549 = vpop.f32.mrb[0].mxu0
      %4550 = vmatprep.mubr.bf16.mxu0 %v1664
      %4551 = vmatmul.mubr.bf16.gmra.mrb[0].mxu0 %v1663
      %v4552 = vpop.f32.mrb[0].mxu0
      %v4553 = vadd.f32 %v4497, %v4552
      %v4554 = vpop.f32.mrb[0].mxu0
      %v4555 = vpop.f32.mrb[0].mxu0
      %v4556 = vadd.f32 %v4500, %v4555
      %v4557 = vpop.f32.mrb[0].mxu0
      %4558 = vmatprep.mubr.bf16.mxu0 %v1716
      %4559 = vmatmul.mubr.bf16.gmra.mrb[0].mxu0 %v1715
      %v4560 = vpop.f32.mrb[0].mxu0
      %v4561 = vadd.f32 %v4505, %v4560
      %v4562 = vpop.f32.mrb[0].mxu0
      %v4563 = vpop.f32.mrb[0].mxu0
      %v4564 = vpop.f32.mrb[0].mxu0
      %4565 = vdwg.mxu0
      %4566 = vmatprep.subr.bf16.mxu0 0
      %4567 = vmatpush1.bf16.msra.mxu0 %v3612
      %4568 = vmatprep.subr.bf16.mxu0 0
      %4569 = vmatpush1.bf16.msra.mxu0 %v3613
      %4570 = vmatprep.subr.bf16.mxu0 0
      %4571 = vmatpush1.bf16.msra.mxu0 %v3614
      %4572 = vmatprep.subr.bf16.mxu0 0
      %4573 = vmatpush1.bf16.msra.mxu0 %v3615
      %4574 = vmatprep.subr.bf16.mxu0 0
      %4575 = vmatpush1.bf16.msra.mxu0 %v3616
      %4576 = vmatprep.subr.bf16.mxu0 0
      %4577 = vmatpush1.bf16.msra.mxu0 %v3617
      %4578 = vmatprep.subr.bf16.mxu0 0
      %4579 = vmatpush1.bf16.msra.mxu0 %v3618
      %4580 = vmatprep.subr.bf16.mxu0 0
      %4581 = vmatpush1.bf16.msra.mxu0 %v3619
      %4582 = vmatprep.subr.bf16.mxu0 0
      %4583 = vmatpush1.bf16.msra.mxu0 %v3620
      %4584 = vmatprep.subr.bf16.mxu0 0
      %4585 = vmatpush1.bf16.msra.mxu0 %v3621
      %4586 = vmatprep.subr.bf16.mxu0 0
      %4587 = vmatpush1.bf16.msra.mxu0 %v3622
      %4588 = vmatprep.subr.bf16.mxu0 0
      %4589 = vmatpush1.bf16.msra.mxu0 %v3623
      %4590 = vmatprep.subr.bf16.mxu0 0
      %4591 = vmatpush1.bf16.msra.mxu0 %v3624
      %4592 = vmatprep.subr.bf16.mxu0 0
      %4593 = vmatpush1.bf16.msra.mxu0 %v3625
      %4594 = vmatprep.subr.bf16.mxu0 0
      %4595 = vmatpush1.bf16.msra.mxu0 %v3626
      %4596 = vmatprep.subr.bf16.mxu0 0
      %4597 = vmatpush1.bf16.msra.mxu0 %v3627
      %4598 = vmatprep.mubr.bf16.mxu0 %v1614
      %4599 = vmatmul.mubr.bf16.gmra.mrb[0].mxu0 %v1613
      %v4600 = vpop.f32.mrb[0].mxu0
      %v4601 = vadd.f32 %v4545, %v4600
      %v4602 = vpop.f32.mrb[0].mxu0
      %v4603 = vpop.f32.mrb[0].mxu0
      %v4604 = vadd.f32 %v4548, %v4603
      %v4605 = vpop.f32.mrb[0].mxu0
      %4606 = vmatprep.mubr.bf16.mxu0 %v1666
      %4607 = vmatmul.mubr.bf16.gmra.mrb[0].mxu0 %v1665
      %v4608 = vpop.f32.mrb[0].mxu0
      %v4609 = vadd.f32 %v4553, %v4608
      %v4610 = vpop.f32.mrb[0].mxu0
      %v4611 = vpop.f32.mrb[0].mxu0
      %v4612 = vadd.f32 %v4556, %v4611
      %v4613 = vpop.f32.mrb[0].mxu0
      %4614 = vmatprep.mubr.bf16.mxu0 %v1718
      %4615 = vmatmul.mubr.bf16.gmra.mrb[0].mxu0 %v1717
      %v4616 = vpop.f32.mrb[0].mxu0
      %v4617 = vadd.f32 %v4561, %v4616
      %v4618 = vpop.f32.mrb[0].mxu0
      %v4619 = vpop.f32.mrb[0].mxu0
      %v4620 = vpop.f32.mrb[0].mxu0
      %4621 = vdwg.mxu0
      %4622 = vmatprep.subr.bf16.mxu0 0
      %4623 = vmatpush1.bf16.msra.mxu0 %v3628
      %4624 = vmatprep.subr.bf16.mxu0 0
      %4625 = vmatpush1.bf16.msra.mxu0 %v3629
      %4626 = vmatprep.subr.bf16.mxu0 0
      %4627 = vmatpush1.bf16.msra.mxu0 %v3630
      %4628 = vmatprep.subr.bf16.mxu0 0
      %4629 = vmatpush1.bf16.msra.mxu0 %v3631
      %4630 = vmatprep.subr.bf16.mxu0 0
      %4631 = vmatpush1.bf16.msra.mxu0 %v3632
      %4632 = vmatprep.subr.bf16.mxu0 0
      %4633 = vmatpush1.bf16.msra.mxu0 %v3633
      %4634 = vmatprep.subr.bf16.mxu0 0
      %4635 = vmatpush1.bf16.msra.mxu0 %v3634
      %4636 = vmatprep.subr.bf16.mxu0 0
      %4637 = vmatpush1.bf16.msra.mxu0 %v3635
      %4638 = vmatprep.subr.bf16.mxu0 0
      %4639 = vmatpush1.bf16.msra.mxu0 %v3636
      %4640 = vmatprep.subr.bf16.mxu0 0
      %4641 = vmatpush1.bf16.msra.mxu0 %v3637
      %4642 = vmatprep.subr.bf16.mxu0 0
      %4643 = vmatpush1.bf16.msra.mxu0 %v3638
      %4644 = vmatprep.subr.bf16.mxu0 0
      %4645 = vmatpush1.bf16.msra.mxu0 %v3639
      %4646 = vmatprep.subr.bf16.mxu0 0
      %4647 = vmatpush1.bf16.msra.mxu0 %v3640
      %4648 = vmatprep.subr.bf16.mxu0 0
      %4649 = vmatpush1.bf16.msra.mxu0 %v3641
      %4650 = vmatprep.subr.bf16.mxu0 0
      %4651 = vmatpush1.bf16.msra.mxu0 %v3642
      %4652 = vmatprep.subr.bf16.mxu0 0
      %4653 = vmatpush1.bf16.msra.mxu0 %v3643
      %4654 = vmatprep.mubr.bf16.mxu0 %v1616
      %4655 = vmatmul.mubr.bf16.gmra.mrb[0].mxu0 %v1615
      %v4656 = vpop.f32.mrb[0].mxu0
      %v4657 = vadd.f32 %v4601, %v4656
      %v4658 = vpop.f32.mrb[0].mxu0
      %v4659 = vpop.f32.mrb[0].mxu0
      %v4660 = vadd.f32 %v4604, %v4659
      %v4661 = vpop.f32.mrb[0].mxu0
      %4662 = vmatprep.mubr.bf16.mxu0 %v1668
      %4663 = vmatmul.mubr.bf16.gmra.mrb[0].mxu0 %v1667
      %v4664 = vpop.f32.mrb[0].mxu0
      %v4665 = vadd.f32 %v4609, %v4664
      %v4666 = vpop.f32.mrb[0].mxu0
      %v4667 = vpop.f32.mrb[0].mxu0
      %v4668 = vadd.f32 %v4612, %v4667
      %v4669 = vpop.f32.mrb[0].mxu0
      %4670 = vmatprep.mubr.bf16.mxu0 %v1720
      %4671 = vmatmul.mubr.bf16.gmra.mrb[0].mxu0 %v1719
      %v4672 = vpop.f32.mrb[0].mxu0
      %v4673 = vadd.f32 %v4617, %v4672
      %v4674 = vpop.f32.mrb[0].mxu0
      %v4675 = vpop.f32.mrb[0].mxu0
      %v4676 = vpop.f32.mrb[0].mxu0
      %4677 = vdwg.mxu0
      %4678 = vmatprep.subr.bf16.mxu0 0
      %4679 = vmatpush1.bf16.msra.mxu0 %v3644
      %4680 = vmatprep.subr.bf16.mxu0 0
      %4681 = vmatpush1.bf16.msra.mxu0 %v3645
      %4682 = vmatprep.subr.bf16.mxu0 0
      %4683 = vmatpush1.bf16.msra.mxu0 %v3646
      %4684 = vmatprep.subr.bf16.mxu0 0
      %4685 = vmatpush1.bf16.msra.mxu0 %v3647
      %4686 = vmatprep.subr.bf16.mxu0 0
      %4687 = vmatpush1.bf16.msra.mxu0 %v3648
      %4688 = vmatprep.subr.bf16.mxu0 0
      %4689 = vmatpush1.bf16.msra.mxu0 %v3649
      %4690 = vmatprep.subr.bf16.mxu0 0
      %4691 = vmatpush1.bf16.msra.mxu0 %v3650
      %4692 = vmatprep.subr.bf16.mxu0 0
      %4693 = vmatpush1.bf16.msra.mxu0 %v3651
      %4694 = vmatprep.subr.bf16.mxu0 0
      %4695 = vmatpush1.bf16.msra.mxu0 %v3652
      %4696 = vmatprep.subr.bf16.mxu0 0
      %4697 = vmatpush1.bf16.msra.mxu0 %v3653
      %4698 = vmatprep.subr.bf16.mxu0 0
      %4699 = vmatpush1.bf16.msra.mxu0 %v3654
      %4700 = vmatprep.subr.bf16.mxu0 0
      %4701 = vmatpush1.bf16.msra.mxu0 %v3655
      %4702 = vmatprep.subr.bf16.mxu0 0
      %4703 = vmatpush1.bf16.msra.mxu0 %v3656
      %4704 = vmatprep.subr.bf16.mxu0 0
      %4705 = vmatpush1.bf16.msra.mxu0 %v3657
      %4706 = vmatprep.subr.bf16.mxu0 0
      %4707 = vmatpush1.bf16.msra.mxu0 %v3658
      %4708 = vmatprep.subr.bf16.mxu0 0
      %4709 = vmatpush1.bf16.msra.mxu0 %v3659
      %4710 = vmatprep.mubr.bf16.mxu0 %v1618
      %4711 = vmatmul.mubr.bf16.gmra.mrb[0].mxu0 %v1617
      %v4712 = vpop.f32.mrb[0].mxu0
      %v4713 = vadd.f32 %v4657, %v4712
      %v4714 = vpop.f32.mrb[0].mxu0
      %v4715 = vpop.f32.mrb[0].mxu0
      %v4716 = vadd.f32 %v4660, %v4715
      %v4717 = vpop.f32.mrb[0].mxu0
      %4718 = vmatprep.mubr.bf16.mxu0 %v1670
      %4719 = vmatmul.mubr.bf16.gmra.mrb[0].mxu0 %v1669
      %v4720 = vpop.f32.mrb[0].mxu0
      %v4721 = vadd.f32 %v4665, %v4720
      %v4722 = vpop.f32.mrb[0].mxu0
      %v4723 = vpop.f32.mrb[0].mxu0
      %v4724 = vadd.f32 %v4668, %v4723
      %v4725 = vpop.f32.mrb[0].mxu0
      %4726 = vmatprep.mubr.bf16.mxu0 %v1722
      %4727 = vmatmul.mubr.bf16.gmra.mrb[0].mxu0 %v1721
      %v4728 = vpop.f32.mrb[0].mxu0
      %v4729 = vadd.f32 %v4673, %v4728
      %v4730 = vpop.f32.mrb[0].mxu0
      %v4731 = vpop.f32.mrb[0].mxu0
      %v4732 = vpop.f32.mrb[0].mxu0
      %4733 = vdwg.mxu0
      %4734 = vmatprep.subr.bf16.mxu0 0
      %4735 = vmatpush1.bf16.msra.mxu0 %v3660
      %4736 = vmatprep.subr.bf16.mxu0 0
      %4737 = vmatpush1.bf16.msra.mxu0 %v3661
      %4738 = vmatprep.subr.bf16.mxu0 0
      %4739 = vmatpush1.bf16.msra.mxu0 %v3662
      %4740 = vmatprep.subr.bf16.mxu0 0
      %4741 = vmatpush1.bf16.msra.mxu0 %v3663
      %4742 = vmatprep.subr.bf16.mxu0 0
      %4743 = vmatpush1.bf16.msra.mxu0 %v3664
      %4744 = vmatprep.subr.bf16.mxu0 0
      %4745 = vmatpush1.bf16.msra.mxu0 %v3665
      %4746 = vmatprep.subr.bf16.mxu0 0
      %4747 = vmatpush1.bf16.msra.mxu0 %v3666
      %4748 = vmatprep.subr.bf16.mxu0 0
      %4749 = vmatpush1.bf16.msra.mxu0 %v3667
      %4750 = vmatprep.subr.bf16.mxu0 0
      %4751 = vmatpush1.bf16.msra.mxu0 %v3668
      %4752 = vmatprep.subr.bf16.mxu0 0
      %4753 = vmatpush1.bf16.msra.mxu0 %v3669
      %4754 = vmatprep.subr.bf16.mxu0 0
      %4755 = vmatpush1.bf16.msra.mxu0 %v3670
      %4756 = vmatprep.subr.bf16.mxu0 0
      %4757 = vmatpush1.bf16.msra.mxu0 %v3671
      %4758 = vmatprep.subr.bf16.mxu0 0
      %4759 = vmatpush1.bf16.msra.mxu0 %v3672
      %4760 = vmatprep.subr.bf16.mxu0 0
      %4761 = vmatpush1.bf16.msra.mxu0 %v3673
      %4762 = vmatprep.subr.bf16.mxu0 0
      %4763 = vmatpush1.bf16.msra.mxu0 %v3674
      %4764 = vmatprep.subr.bf16.mxu0 0
      %4765 = vmatpush1.bf16.msra.mxu0 %v3675
      %4766 = vmatprep.mubr.bf16.mxu0 %v1620
      %4767 = vmatmul.mubr.bf16.gmra.mrb[0].mxu0 %v1619
      %v4768 = vpop.f32.mrb[0].mxu0
      %v4769 = vadd.f32 %v4713, %v4768
      %v4770 = vpop.f32.mrb[0].mxu0
      %v4771 = vpop.f32.mrb[0].mxu0
      %v4772 = vadd.f32 %v4716, %v4771
      %v4773 = vpop.f32.mrb[0].mxu0
      %4774 = vmatprep.mubr.bf16.mxu0 %v1672
      %4775 = vmatmul.mubr.bf16.gmra.mrb[0].mxu0 %v1671
      %v4776 = vpop.f32.mrb[0].mxu0
      %v4777 = vadd.f32 %v4721, %v4776
      %v4778 = vpop.f32.mrb[0].mxu0
      %v4779 = vpop.f32.mrb[0].mxu0
      %v4780 = vadd.f32 %v4724, %v4779
      %v4781 = vpop.f32.mrb[0].mxu0
      %4782 = vmatprep.mubr.bf16.mxu0 %v1724
      %4783 = vmatmul.mubr.bf16.gmra.mrb[0].mxu0 %v1723
      %v4784 = vpop.f32.mrb[0].mxu0
      %v4785 = vadd.f32 %v4729, %v4784
      %v4786 = vpop.f32.mrb[0].mxu0
      %v4787 = vpop.f32.mrb[0].mxu0
      %v4788 = vpop.f32.mrb[0].mxu0
      %4789 = vdwg.mxu0
      %4790 = vmatprep.subr.bf16.mxu0 0
      %4791 = vmatpush1.bf16.msra.mxu0 %v3676
      %4792 = vmatprep.subr.bf16.mxu0 0
      %4793 = vmatpush1.bf16.msra.mxu0 %v3677
      %4794 = vmatprep.subr.bf16.mxu0 0
      %4795 = vmatpush1.bf16.msra.mxu0 %v3678
      %4796 = vmatprep.subr.bf16.mxu0 0
      %4797 = vmatpush1.bf16.msra.mxu0 %v3679
      %4798 = vmatprep.subr.bf16.mxu0 0
      %4799 = vmatpush1.bf16.msra.mxu0 %v3680
      %4800 = vmatprep.subr.bf16.mxu0 0
      %4801 = vmatpush1.bf16.msra.mxu0 %v3681
      %4802 = vmatprep.subr.bf16.mxu0 0
      %4803 = vmatpush1.bf16.msra.mxu0 %v3682
      %4804 = vmatprep.subr.bf16.mxu0 0
      %4805 = vmatpush1.bf16.msra.mxu0 %v3683
      %4806 = vmatprep.subr.bf16.mxu0 0
      %4807 = vmatpush1.bf16.msra.mxu0 %v3684
      %4808 = vmatprep.subr.bf16.mxu0 0
      %4809 = vmatpush1.bf16.msra.mxu0 %v3685
      %4810 = vmatprep.subr.bf16.mxu0 0
      %4811 = vmatpush1.bf16.msra.mxu0 %v3686
      %4812 = vmatprep.subr.bf16.mxu0 0
      %4813 = vmatpush1.bf16.msra.mxu0 %v3687
      %4814 = vmatprep.subr.bf16.mxu0 0
      %4815 = vmatpush1.bf16.msra.mxu0 %v3688
      %4816 = vmatprep.subr.bf16.mxu0 0
      %4817 = vmatpush1.bf16.msra.mxu0 %v3689
      %4818 = vmatprep.subr.bf16.mxu0 0
      %4819 = vmatpush1.bf16.msra.mxu0 %v3690
      %4820 = vmatprep.subr.bf16.mxu0 0
      %4821 = vmatpush1.bf16.msra.mxu0 %v3691
      %4822 = vmatprep.mubr.bf16.mxu0 %v1622
      %4823 = vmatmul.mubr.bf16.gmra.mrb[0].mxu0 %v1621
      %v4824 = vpop.f32.mrb[0].mxu0
      %v4825 = vadd.f32 %v4769, %v4824
      %v4826 = vpop.f32.mrb[0].mxu0
      %v4827 = vpop.f32.mrb[0].mxu0
      %v4828 = vadd.f32 %v4772, %v4827
      %v4829 = vpop.f32.mrb[0].mxu0
      %4830 = vmatprep.mubr.bf16.mxu0 %v1674
      %4831 = vmatmul.mubr.bf16.gmra.mrb[0].mxu0 %v1673
      %v4832 = vpop.f32.mrb[0].mxu0
      %v4833 = vadd.f32 %v4777, %v4832
      %v4834 = vpop.f32.mrb[0].mxu0
      %v4835 = vpop.f32.mrb[0].mxu0
      %v4836 = vadd.f32 %v4780, %v4835
      %v4837 = vpop.f32.mrb[0].mxu0
      %4838 = vmatprep.mubr.bf16.mxu0 %v1726
      %4839 = vmatmul.mubr.bf16.gmra.mrb[0].mxu0 %v1725
      %v4840 = vpop.f32.mrb[0].mxu0
      %v4841 = vadd.f32 %v4785, %v4840
      %v4842 = vpop.f32.mrb[0].mxu0
      %v4843 = vpop.f32.mrb[0].mxu0
      %v4844 = vpop.f32.mrb[0].mxu0
      %4845 = vdwg.mxu0
      %4846 = vmatprep.subr.bf16.mxu0 0
      %4847 = vmatpush1.bf16.msra.mxu0 %v3692
      %4848 = vmatprep.subr.bf16.mxu0 0
      %4849 = vmatpush1.bf16.msra.mxu0 %v3693
      %4850 = vmatprep.subr.bf16.mxu0 0
      %4851 = vmatpush1.bf16.msra.mxu0 %v3694
      %4852 = vmatprep.subr.bf16.mxu0 0
      %4853 = vmatpush1.bf16.msra.mxu0 %v3695
      %4854 = vmatprep.subr.bf16.mxu0 0
      %4855 = vmatpush1.bf16.msra.mxu0 %v3696
      %4856 = vmatprep.subr.bf16.mxu0 0
      %4857 = vmatpush1.bf16.msra.mxu0 %v3697
      %4858 = vmatprep.subr.bf16.mxu0 0
      %4859 = vmatpush1.bf16.msra.mxu0 %v3698
      %4860 = vmatprep.subr.bf16.mxu0 0
      %4861 = vmatpush1.bf16.msra.mxu0 %v3699
      %4862 = vmatprep.subr.bf16.mxu0 0
      %4863 = vmatpush1.bf16.msra.mxu0 %v3700
      %4864 = vmatprep.subr.bf16.mxu0 0
      %4865 = vmatpush1.bf16.msra.mxu0 %v3701
      %4866 = vmatprep.subr.bf16.mxu0 0
      %4867 = vmatpush1.bf16.msra.mxu0 %v3702
      %4868 = vmatprep.subr.bf16.mxu0 0
      %4869 = vmatpush1.bf16.msra.mxu0 %v3703
      %4870 = vmatprep.subr.bf16.mxu0 0
      %4871 = vmatpush1.bf16.msra.mxu0 %v3704
      %4872 = vmatprep.subr.bf16.mxu0 0
      %4873 = vmatpush1.bf16.msra.mxu0 %v3705
      %4874 = vmatprep.subr.bf16.mxu0 0
      %4875 = vmatpush1.bf16.msra.mxu0 %v3706
      %4876 = vmatprep.subr.bf16.mxu0 0
      %4877 = vmatpush1.bf16.msra.mxu0 %v3707
      %4878 = vmatprep.mubr.bf16.mxu0 %v1624
      %4879 = vmatmul.mubr.bf16.gmra.mrb[0].mxu0 %v1623
      %v4880 = vpop.f32.mrb[0].mxu0
      %v4881 = vadd.f32 %v4825, %v4880
      %v4882 = vpop.f32.mrb[0].mxu0
      %v4883 = vpop.f32.mrb[0].mxu0
      %v4884 = vadd.f32 %v4828, %v4883
      %v4885 = vpop.f32.mrb[0].mxu0
      %4886 = vmatprep.mubr.bf16.mxu0 %v1676
      %4887 = vmatmul.mubr.bf16.gmra.mrb[0].mxu0 %v1675
      %v4888 = vpop.f32.mrb[0].mxu0
      %v4889 = vadd.f32 %v4833, %v4888
      %v4890 = vpop.f32.mrb[0].mxu0
      %v4891 = vpop.f32.mrb[0].mxu0
      %v4892 = vadd.f32 %v4836, %v4891
      %v4893 = vpop.f32.mrb[0].mxu0
      %4894 = vmatprep.mubr.bf16.mxu0 %v1728
      %4895 = vmatmul.mubr.bf16.gmra.mrb[0].mxu0 %v1727
      %v4896 = vpop.f32.mrb[0].mxu0
      %v4897 = vadd.f32 %v4841, %v4896
      %v4898 = vpop.f32.mrb[0].mxu0
      %v4899 = vpop.f32.mrb[0].mxu0
      %v4900 = vpop.f32.mrb[0].mxu0
      %4901 = vdwg.mxu0
      %4902 = vmatprep.subr.bf16.mxu0 0
      %4903 = vmatpush1.bf16.msra.mxu0 %v3708
      %4904 = vmatprep.subr.bf16.mxu0 0
      %4905 = vmatpush1.bf16.msra.mxu0 %v3709
      %4906 = vmatprep.subr.bf16.mxu0 0
      %4907 = vmatpush1.bf16.msra.mxu0 %v3710
      %4908 = vmatprep.subr.bf16.mxu0 0
      %4909 = vmatpush1.bf16.msra.mxu0 %v3711
      %4910 = vmatprep.subr.bf16.mxu0 0
      %4911 = vmatpush1.bf16.msra.mxu0 %v3712
      %4912 = vmatprep.subr.bf16.mxu0 0
      %4913 = vmatpush1.bf16.msra.mxu0 %v3713
      %4914 = vmatprep.subr.bf16.mxu0 0
      %4915 = vmatpush1.bf16.msra.mxu0 %v3714
      %4916 = vmatprep.subr.bf16.mxu0 0
      %4917 = vmatpush1.bf16.msra.mxu0 %v3715
      %4918 = vmatprep.subr.bf16.mxu0 0
      %4919 = vmatpush1.bf16.msra.mxu0 %v3716
      %4920 = vmatprep.subr.bf16.mxu0 0
      %4921 = vmatpush1.bf16.msra.mxu0 %v3717
      %4922 = vmatprep.subr.bf16.mxu0 0
      %4923 = vmatpush1.bf16.msra.mxu0 %v3718
      %4924 = vmatprep.subr.bf16.mxu0 0
      %4925 = vmatpush1.bf16.msra.mxu0 %v3719
      %4926 = vmatprep.subr.bf16.mxu0 0
      %4927 = vmatpush1.bf16.msra.mxu0 %v3720
      %4928 = vmatprep.subr.bf16.mxu0 0
      %4929 = vmatpush1.bf16.msra.mxu0 %v3721
      %4930 = vmatprep.subr.bf16.mxu0 0
      %4931 = vmatpush1.bf16.msra.mxu0 %v3722
      %4932 = vmatprep.subr.bf16.mxu0 0
      %4933 = vmatpush1.bf16.msra.mxu0 %v3723
      %4934 = vmatprep.mubr.bf16.mxu0 %v1626
      %4935 = vmatmul.mubr.bf16.gmra.mrb[0].mxu0 %v1625
      %v4936 = vpop.f32.mrb[0].mxu0
      %v4937 = vadd.f32 %v4881, %v4936
      %v4938 = vpop.f32.mrb[0].mxu0
      %v4939 = vpop.f32.mrb[0].mxu0
      %v4940 = vadd.f32 %v4884, %v4939
      %v4941 = vpop.f32.mrb[0].mxu0
      %4942 = vmatprep.mubr.bf16.mxu0 %v1678
      %4943 = vmatmul.mubr.bf16.gmra.mrb[0].mxu0 %v1677
      %v4944 = vpop.f32.mrb[0].mxu0
      %v4945 = vadd.f32 %v4889, %v4944
      %v4946 = vpop.f32.mrb[0].mxu0
      %v4947 = vpop.f32.mrb[0].mxu0
      %v4948 = vadd.f32 %v4892, %v4947
      %v4949 = vpop.f32.mrb[0].mxu0
      %4950 = vmatprep.mubr.bf16.mxu0 %v1730
      %4951 = vmatmul.mubr.bf16.gmra.mrb[0].mxu0 %v1729
      %v4952 = vpop.f32.mrb[0].mxu0
      %v4953 = vadd.f32 %v4897, %v4952
      %v4954 = vpop.f32.mrb[0].mxu0
      %v4955 = vpop.f32.mrb[0].mxu0
      %v4956 = vpop.f32.mrb[0].mxu0
      %4957 = vdwg.mxu0
      %4958 = vmatprep.subr.bf16.mxu0 0
      %4959 = vmatpush1.bf16.msra.mxu0 %v3724
      %4960 = vmatprep.subr.bf16.mxu0 0
      %4961 = vmatpush1.bf16.msra.mxu0 %v3725
      %4962 = vmatprep.subr.bf16.mxu0 0
      %4963 = vmatpush1.bf16.msra.mxu0 %v3726
      %4964 = vmatprep.subr.bf16.mxu0 0
      %4965 = vmatpush1.bf16.msra.mxu0 %v3727
      %4966 = vmatprep.subr.bf16.mxu0 0
      %4967 = vmatpush1.bf16.msra.mxu0 %v3728
      %4968 = vmatprep.subr.bf16.mxu0 0
      %4969 = vmatpush1.bf16.msra.mxu0 %v3729
      %4970 = vmatprep.subr.bf16.mxu0 0
      %4971 = vmatpush1.bf16.msra.mxu0 %v3730
      %4972 = vmatprep.subr.bf16.mxu0 0
      %4973 = vmatpush1.bf16.msra.mxu0 %v3731
      %4974 = vmatprep.subr.bf16.mxu0 0
      %4975 = vmatpush1.bf16.msra.mxu0 %v3732
      %4976 = vmatprep.subr.bf16.mxu0 0
      %4977 = vmatpush1.bf16.msra.mxu0 %v3733
      %4978 = vmatprep.subr.bf16.mxu0 0
      %4979 = vmatpush1.bf16.msra.mxu0 %v3734
      %4980 = vmatprep.subr.bf16.mxu0 0
      %4981 = vmatpush1.bf16.msra.mxu0 %v3735
      %4982 = vmatprep.subr.bf16.mxu0 0
      %4983 = vmatpush1.bf16.msra.mxu0 %v3736
      %4984 = vmatprep.subr.bf16.mxu0 0
      %4985 = vmatpush1.bf16.msra.mxu0 %v3737
      %4986 = vmatprep.subr.bf16.mxu0 0
      %4987 = vmatpush1.bf16.msra.mxu0 %v3738
      %4988 = vmatprep.subr.bf16.mxu0 0
      %4989 = vmatpush1.bf16.msra.mxu0 %v3739
      %4990 = vmatprep.mubr.bf16.mxu0 %v1628
      %4991 = vmatmul.mubr.bf16.gmra.mrb[0].mxu0 %v1627
      %v4992 = vpop.f32.mrb[0].mxu0
      %v4993 = vadd.f32 %v4937, %v4992
      %v4994 = vpop.f32.mrb[0].mxu0
      %v4995 = vpop.f32.mrb[0].mxu0
      %v4996 = vadd.f32 %v4940, %v4995
      %v4997 = vpop.f32.mrb[0].mxu0
      %4998 = vmatprep.mubr.bf16.mxu0 %v1680
      %4999 = vmatmul.mubr.bf16.gmra.mrb[0].mxu0 %v1679
      %v5000 = vpop.f32.mrb[0].mxu0
      %v5001 = vadd.f32 %v4945, %v5000
      %v5002 = vpop.f32.mrb[0].mxu0
      %v5003 = vpop.f32.mrb[0].mxu0
      %v5004 = vadd.f32 %v4948, %v5003
      %v5005 = vpop.f32.mrb[0].mxu0
      %5006 = vmatprep.mubr.bf16.mxu0 %v1732
      %5007 = vmatmul.mubr.bf16.gmra.mrb[0].mxu0 %v1731
      %v5008 = vpop.f32.mrb[0].mxu0
      %v5009 = vadd.f32 %v4953, %v5008
      %v5010 = vpop.f32.mrb[0].mxu0
      %v5011 = vpop.f32.mrb[0].mxu0
      %v5012 = vpop.f32.mrb[0].mxu0
      %5013 = vdwg.mxu0
      %5014 = vmatprep.subr.bf16.mxu0 0
      %5015 = vmatpush1.bf16.msra.mxu0 %v3740
      %5016 = vmatprep.subr.bf16.mxu0 0
      %5017 = vmatpush1.bf16.msra.mxu0 %v3741
      %5018 = vmatprep.subr.bf16.mxu0 0
      %5019 = vmatpush1.bf16.msra.mxu0 %v3742
      %5020 = vmatprep.subr.bf16.mxu0 0
      %5021 = vmatpush1.bf16.msra.mxu0 %v3743
      %5022 = vmatprep.subr.bf16.mxu0 0
      %5023 = vmatpush1.bf16.msra.mxu0 %v3744
      %5024 = vmatprep.subr.bf16.mxu0 0
      %5025 = vmatpush1.bf16.msra.mxu0 %v3745
      %5026 = vmatprep.subr.bf16.mxu0 0
      %5027 = vmatpush1.bf16.msra.mxu0 %v3746
      %5028 = vmatprep.subr.bf16.mxu0 0
      %5029 = vmatpush1.bf16.msra.mxu0 %v3747
      %5030 = vmatprep.subr.bf16.mxu0 0
      %5031 = vmatpush1.bf16.msra.mxu0 %v3748
      %5032 = vmatprep.subr.bf16.mxu0 0
      %5033 = vmatpush1.bf16.msra.mxu0 %v3749
      %5034 = vmatprep.subr.bf16.mxu0 0
      %5035 = vmatpush1.bf16.msra.mxu0 %v3750
      %5036 = vmatprep.subr.bf16.mxu0 0
      %5037 = vmatpush1.bf16.msra.mxu0 %v3751
      %5038 = vmatprep.subr.bf16.mxu0 0
      %5039 = vmatpush1.bf16.msra.mxu0 %v3752
      %5040 = vmatprep.subr.bf16.mxu0 0
      %5041 = vmatpush1.bf16.msra.mxu0 %v3753
      %5042 = vmatprep.subr.bf16.mxu0 0
      %5043 = vmatpush1.bf16.msra.mxu0 %v3754
      %5044 = vmatprep.subr.bf16.mxu0 0
      %5045 = vmatpush1.bf16.msra.mxu0 %v3755
      %5046 = vmatprep.mubr.bf16.mxu0 %v1630
      %5047 = vmatmul.mubr.bf16.gmra.mrb[0].mxu0 %v1629
      %v5048 = vpop.f32.mrb[0].mxu0
      %v5049 = vadd.f32 %v4993, %v5048
      %v5050 = vpop.f32.mrb[0].mxu0
      %v5051 = vpop.f32.mrb[0].mxu0
      %v5052 = vadd.f32 %v4996, %v5051
      %v5053 = vpop.f32.mrb[0].mxu0
      %5054 = vmatprep.mubr.bf16.mxu0 %v1682
      %5055 = vmatmul.mubr.bf16.gmra.mrb[0].mxu0 %v1681
      %v5056 = vpop.f32.mrb[0].mxu0
      %v5057 = vadd.f32 %v5001, %v5056
      %v5058 = vpop.f32.mrb[0].mxu0
      %v5059 = vpop.f32.mrb[0].mxu0
      %v5060 = vadd.f32 %v5004, %v5059
      %v5061 = vpop.f32.mrb[0].mxu0
      %5062 = vmatprep.mubr.bf16.mxu0 %v1734
      %5063 = vmatmul.mubr.bf16.gmra.mrb[0].mxu0 %v1733
      %v5064 = vpop.f32.mrb[0].mxu0
      %v5065 = vadd.f32 %v5009, %v5064
      %v5066 = vpop.f32.mrb[0].mxu0
      %v5067 = vpop.f32.mrb[0].mxu0
      %v5068 = vpop.f32.mrb[0].mxu0
      %5069 = vdwg.mxu0
      %5070 = vmatprep.subr.bf16.mxu0 0
      %5071 = vmatpush1.bf16.msra.mxu0 %v3756
      %5072 = vmatprep.subr.bf16.mxu0 0
      %5073 = vmatpush1.bf16.msra.mxu0 %v3757
      %5074 = vmatprep.subr.bf16.mxu0 0
      %5075 = vmatpush1.bf16.msra.mxu0 %v3758
      %5076 = vmatprep.subr.bf16.mxu0 0
      %5077 = vmatpush1.bf16.msra.mxu0 %v3759
      %5078 = vmatprep.subr.bf16.mxu0 0
      %5079 = vmatpush1.bf16.msra.mxu0 %v3760
      %5080 = vmatprep.subr.bf16.mxu0 0
      %5081 = vmatpush1.bf16.msra.mxu0 %v3761
      %5082 = vmatprep.subr.bf16.mxu0 0
      %5083 = vmatpush1.bf16.msra.mxu0 %v3762
      %5084 = vmatprep.subr.bf16.mxu0 0
      %5085 = vmatpush1.bf16.msra.mxu0 %v3763
      %5086 = vmatprep.subr.bf16.mxu0 0
      %5087 = vmatpush1.bf16.msra.mxu0 %v3764
      %5088 = vmatprep.subr.bf16.mxu0 0
      %5089 = vmatpush1.bf16.msra.mxu0 %v3765
      %5090 = vmatprep.subr.bf16.mxu0 0
      %5091 = vmatpush1.bf16.msra.mxu0 %v3766
      %5092 = vmatprep.subr.bf16.mxu0 0
      %5093 = vmatpush1.bf16.msra.mxu0 %v3767
      %5094 = vmatprep.subr.bf16.mxu0 0
      %5095 = vmatpush1.bf16.msra.mxu0 %v3768
      %5096 = vmatprep.subr.bf16.mxu0 0
      %5097 = vmatpush1.bf16.msra.mxu0 %v3769
      %5098 = vmatprep.subr.bf16.mxu0 0
      %5099 = vmatpush1.bf16.msra.mxu0 %v3770
      %5100 = vmatprep.subr.bf16.mxu0 0
      %5101 = vmatpush1.bf16.msra.mxu0 %v3771
      %5102 = vmatprep.mubr.bf16.mxu0 %v1632
      %5103 = vmatmul.mubr.bf16.gmra.mrb[0].mxu0 %v1631
      %v5104 = vpop.f32.mrb[0].mxu0
      %v5105 = vadd.f32 %v5049, %v5104
      %v5106 = vpop.f32.mrb[0].mxu0
      %v5107 = vpop.f32.mrb[0].mxu0
      %v5108 = vadd.f32 %v5052, %v5107
      %v5109 = vpop.f32.mrb[0].mxu0
      %5110 = vmatprep.mubr.bf16.mxu0 %v1684
      %5111 = vmatmul.mubr.bf16.gmra.mrb[0].mxu0 %v1683
      %v5112 = vpop.f32.mrb[0].mxu0
      %v5113 = vadd.f32 %v5057, %v5112
      %v5114 = vpop.f32.mrb[0].mxu0
      %v5115 = vpop.f32.mrb[0].mxu0
      %v5116 = vadd.f32 %v5060, %v5115
      %v5117 = vpop.f32.mrb[0].mxu0
      %5118 = vmatprep.mubr.bf16.mxu0 %v1736
      %5119 = vmatmul.mubr.bf16.gmra.mrb[0].mxu0 %v1735
      %v5120 = vpop.f32.mrb[0].mxu0
      %v5121 = vadd.f32 %v5065, %v5120
      %v5122 = vpop.f32.mrb[0].mxu0
      %v5123 = vpop.f32.mrb[0].mxu0
      %v5124 = vpop.f32.mrb[0].mxu0
      %5125 = vdwg.mxu0
      %5126 = vmatprep.subr.bf16.mxu0 0
      %5127 = vmatpush1.bf16.msra.mxu0 %v3772
      %5128 = vmatprep.subr.bf16.mxu0 0
      %5129 = vmatpush1.bf16.msra.mxu0 %v3773
      %5130 = vmatprep.subr.bf16.mxu0 0
      %5131 = vmatpush1.bf16.msra.mxu0 %v3774
      %5132 = vmatprep.subr.bf16.mxu0 0
      %5133 = vmatpush1.bf16.msra.mxu0 %v3775
      %5134 = vmatprep.subr.bf16.mxu0 0
      %5135 = vmatpush1.bf16.msra.mxu0 %v3776
      %5136 = vmatprep.subr.bf16.mxu0 0
      %5137 = vmatpush1.bf16.msra.mxu0 %v3777
      %5138 = vmatprep.subr.bf16.mxu0 0
      %5139 = vmatpush1.bf16.msra.mxu0 %v3778
      %5140 = vmatprep.subr.bf16.mxu0 0
      %5141 = vmatpush1.bf16.msra.mxu0 %v3779
      %5142 = vmatprep.subr.bf16.mxu0 0
      %5143 = vmatpush1.bf16.msra.mxu0 %v3780
      %5144 = vmatprep.subr.bf16.mxu0 0
      %5145 = vmatpush1.bf16.msra.mxu0 %v3781
      %5146 = vmatprep.subr.bf16.mxu0 0
      %5147 = vmatpush1.bf16.msra.mxu0 %v3782
      %5148 = vmatprep.subr.bf16.mxu0 0
      %5149 = vmatpush1.bf16.msra.mxu0 %v3783
      %5150 = vmatprep.subr.bf16.mxu0 0
      %5151 = vmatpush1.bf16.msra.mxu0 %v3784
      %5152 = vmatprep.subr.bf16.mxu0 0
      %5153 = vmatpush1.bf16.msra.mxu0 %v3785
      %5154 = vmatprep.subr.bf16.mxu0 0
      %5155 = vmatpush1.bf16.msra.mxu0 %v3786
      %5156 = vmatprep.subr.bf16.mxu0 0
      %5157 = vmatpush1.bf16.msra.mxu0 %v3787
      %5158 = vmatprep.mubr.bf16.mxu0 %v1634
      %5159 = vmatmul.mubr.bf16.gmra.mrb[0].mxu0 %v1633
      %v5160 = vpop.f32.mrb[0].mxu0
      %v5161 = vadd.f32 %v5105, %v5160
      %v5162 = vpop.f32.mrb[0].mxu0
      %v5163 = vpop.f32.mrb[0].mxu0
      %v5164 = vadd.f32 %v5108, %v5163
      %v5165 = vpop.f32.mrb[0].mxu0
      %5166 = vmatprep.mubr.bf16.mxu0 %v1686
      %5167 = vmatmul.mubr.bf16.gmra.mrb[0].mxu0 %v1685
      %v5168 = vpop.f32.mrb[0].mxu0
      %v5169 = vadd.f32 %v5113, %v5168
      %v5170 = vpop.f32.mrb[0].mxu0
      %v5171 = vpop.f32.mrb[0].mxu0
      %v5172 = vadd.f32 %v5116, %v5171
      %v5173 = vpop.f32.mrb[0].mxu0
      %5174 = vmatprep.mubr.bf16.mxu0 %v1738
      %5175 = vmatmul.mubr.bf16.gmra.mrb[0].mxu0 %v1737
      %v5176 = vpop.f32.mrb[0].mxu0
      %v5177 = vadd.f32 %v5121, %v5176
      %v5178 = vpop.f32.mrb[0].mxu0
      %v5179 = vpop.f32.mrb[0].mxu0
      %v5180 = vpop.f32.mrb[0].mxu0
      %5181 = vdwg.mxu0
      %5182 = vmatprep.subr.bf16.mxu0 0
      %5183 = vmatpush1.bf16.msra.mxu0 %v3788
      %5184 = vmatprep.subr.bf16.mxu0 0
      %5185 = vmatpush1.bf16.msra.mxu0 %v3789
      %5186 = vmatprep.subr.bf16.mxu0 0
      %5187 = vmatpush1.bf16.msra.mxu0 %v3790
      %5188 = vmatprep.subr.bf16.mxu0 0
      %5189 = vmatpush1.bf16.msra.mxu0 %v3791
      %5190 = vmatprep.subr.bf16.mxu0 0
      %5191 = vmatpush1.bf16.msra.mxu0 %v3792
      %5192 = vmatprep.subr.bf16.mxu0 0
      %5193 = vmatpush1.bf16.msra.mxu0 %v3793
      %5194 = vmatprep.subr.bf16.mxu0 0
      %5195 = vmatpush1.bf16.msra.mxu0 %v3794
      %5196 = vmatprep.subr.bf16.mxu0 0
      %5197 = vmatpush1.bf16.msra.mxu0 %v3795
      %5198 = vmatprep.subr.bf16.mxu0 0
      %5199 = vmatpush1.bf16.msra.mxu0 %v3796
      %5200 = vmatprep.subr.bf16.mxu0 0
      %5201 = vmatpush1.bf16.msra.mxu0 %v3797
      %5202 = vmatprep.subr.bf16.mxu0 0
      %5203 = vmatpush1.bf16.msra.mxu0 %v3798
      %5204 = vmatprep.subr.bf16.mxu0 0
      %5205 = vmatpush1.bf16.msra.mxu0 %v3799
      %5206 = vmatprep.subr.bf16.mxu0 0
      %5207 = vmatpush1.bf16.msra.mxu0 %v3800
      %5208 = vmatprep.subr.bf16.mxu0 0
      %5209 = vmatpush1.bf16.msra.mxu0 %v3801
      %5210 = vmatprep.subr.bf16.mxu0 0
      %5211 = vmatpush1.bf16.msra.mxu0 %v3802
      %5212 = vmatprep.subr.bf16.mxu0 0
      %5213 = vmatpush1.bf16.msra.mxu0 %v3803
      %5214 = vmatprep.mubr.bf16.mxu0 %v1636
      %5215 = vmatmul.mubr.bf16.gmra.mrb[0].mxu0 %v1635
      %v5216 = vpop.f32.mrb[0].mxu0
      %v5217 = vadd.f32 %v5161, %v5216
      %v5218 = vpop.f32.mrb[0].mxu0
      %v5219 = vpop.f32.mrb[0].mxu0
      %v5220 = vadd.f32 %v5164, %v5219
      %v5221 = vpop.f32.mrb[0].mxu0
      %5222 = vmatprep.mubr.bf16.mxu0 %v1688
      %5223 = vmatmul.mubr.bf16.gmra.mrb[0].mxu0 %v1687
      %v5224 = vpop.f32.mrb[0].mxu0
      %v5225 = vadd.f32 %v5169, %v5224
      %v5226 = vpop.f32.mrb[0].mxu0
      %v5227 = vpop.f32.mrb[0].mxu0
      %v5228 = vadd.f32 %v5172, %v5227
      %v5229 = vpop.f32.mrb[0].mxu0
      %5230 = vmatprep.mubr.bf16.mxu0 %v1740
      %5231 = vmatmul.mubr.bf16.gmra.mrb[0].mxu0 %v1739
      %v5232 = vpop.f32.mrb[0].mxu0
      %v5233 = vadd.f32 %v5177, %v5232
      %v5234 = vpop.f32.mrb[0].mxu0
      %v5235 = vpop.f32.mrb[0].mxu0
      %v5236 = vpop.f32.mrb[0].mxu0
      %5237 = vdwg.mxu0
      %5238 = vmatprep.subr.bf16.mxu0 0
      %5239 = vmatpush1.bf16.msra.mxu0 %v3804
      %5240 = vmatprep.subr.bf16.mxu0 0
      %5241 = vmatpush1.bf16.msra.mxu0 %v3805
      %5242 = vmatprep.subr.bf16.mxu0 0
      %5243 = vmatpush1.bf16.msra.mxu0 %v3806
      %5244 = vmatprep.subr.bf16.mxu0 0
      %5245 = vmatpush1.bf16.msra.mxu0 %v3807
      %5246 = vmatprep.subr.bf16.mxu0 0
      %5247 = vmatpush1.bf16.msra.mxu0 %v3808
      %5248 = vmatprep.subr.bf16.mxu0 0
      %5249 = vmatpush1.bf16.msra.mxu0 %v3809
      %5250 = vmatprep.subr.bf16.mxu0 0
      %5251 = vmatpush1.bf16.msra.mxu0 %v3810
      %5252 = vmatprep.subr.bf16.mxu0 0
      %5253 = vmatpush1.bf16.msra.mxu0 %v3811
      %5254 = vmatprep.subr.bf16.mxu0 0
      %5255 = vmatpush1.bf16.msra.mxu0 %v3812
      %5256 = vmatprep.subr.bf16.mxu0 0
      %5257 = vmatpush1.bf16.msra.mxu0 %v3813
      %5258 = vmatprep.subr.bf16.mxu0 0
      %5259 = vmatpush1.bf16.msra.mxu0 %v3814
      %5260 = vmatprep.subr.bf16.mxu0 0
      %5261 = vmatpush1.bf16.msra.mxu0 %v3815
      %5262 = vmatprep.subr.bf16.mxu0 0
      %5263 = vmatpush1.bf16.msra.mxu0 %v3816
      %5264 = vmatprep.subr.bf16.mxu0 0
      %5265 = vmatpush1.bf16.msra.mxu0 %v3817
      %5266 = vmatprep.subr.bf16.mxu0 0
      %5267 = vmatpush1.bf16.msra.mxu0 %v3818
      %5268 = vmatprep.subr.bf16.mxu0 0
      %5269 = vmatpush1.bf16.msra.mxu0 %v3819
      %5270 = vmatprep.mubr.bf16.mxu0 %v1638
      %5271 = vmatmul.mubr.bf16.gmra.mrb[0].mxu0 %v1637
      %v5272 = vpop.f32.mrb[0].mxu0
      %v5273 = vadd.f32 %v5217, %v5272
      %v5274 = vpop.f32.mrb[0].mxu0
      %v5275 = vpop.f32.mrb[0].mxu0
      %v5276 = vadd.f32 %v5220, %v5275
      %v5277 = vpop.f32.mrb[0].mxu0
      %5278 = vmatprep.mubr.bf16.mxu0 %v1690
      %5279 = vmatmul.mubr.bf16.gmra.mrb[0].mxu0 %v1689
      %v5280 = vpop.f32.mrb[0].mxu0
      %v5281 = vadd.f32 %v5225, %v5280
      %v5282 = vpop.f32.mrb[0].mxu0
      %v5283 = vpop.f32.mrb[0].mxu0
      %v5284 = vadd.f32 %v5228, %v5283
      %v5285 = vpop.f32.mrb[0].mxu0
      %5286 = vmatprep.mubr.bf16.mxu0 %v1742
      %5287 = vmatmul.mubr.bf16.gmra.mrb[0].mxu0 %v1741
      %v5288 = vpop.f32.mrb[0].mxu0
      %v5289 = vadd.f32 %v5233, %v5288
      %v5290 = vpop.f32.mrb[0].mxu0
      %v5291 = vpop.f32.mrb[0].mxu0
      %v5292 = vpop.f32.mrb[0].mxu0
      %5293 = vdwg.mxu0
      %5294 = vmatprep.subr.bf16.mxu0 0
      %5295 = vmatpush1.bf16.msra.mxu0 %v3820
      %5296 = vmatprep.subr.bf16.mxu0 0
      %5297 = vmatpush1.bf16.msra.mxu0 %v3821
      %5298 = vmatprep.subr.bf16.mxu0 0
      %5299 = vmatpush1.bf16.msra.mxu0 %v3822
      %5300 = vmatprep.subr.bf16.mxu0 0
      %5301 = vmatpush1.bf16.msra.mxu0 %v3823
      %5302 = vmatprep.subr.bf16.mxu0 0
      %5303 = vmatpush1.bf16.msra.mxu0 %v3824
      %5304 = vmatprep.subr.bf16.mxu0 0
      %5305 = vmatpush1.bf16.msra.mxu0 %v3825
      %5306 = vmatprep.subr.bf16.mxu0 0
      %5307 = vmatpush1.bf16.msra.mxu0 %v3826
      %5308 = vmatprep.subr.bf16.mxu0 0
      %5309 = vmatpush1.bf16.msra.mxu0 %v3827
      %5310 = vmatprep.subr.bf16.mxu0 0
      %5311 = vmatpush1.bf16.msra.mxu0 %v3828
      %5312 = vmatprep.subr.bf16.mxu0 0
      %5313 = vmatpush1.bf16.msra.mxu0 %v3829
      %5314 = vmatprep.subr.bf16.mxu0 0
      %5315 = vmatpush1.bf16.msra.mxu0 %v3830
      %5316 = vmatprep.subr.bf16.mxu0 0
      %5317 = vmatpush1.bf16.msra.mxu0 %v3831
      %5318 = vmatprep.subr.bf16.mxu0 0
      %5319 = vmatpush1.bf16.msra.mxu0 %v3832
      %5320 = vmatprep.subr.bf16.mxu0 0
      %5321 = vmatpush1.bf16.msra.mxu0 %v3833
      %5322 = vmatprep.subr.bf16.mxu0 0
      %5323 = vmatpush1.bf16.msra.mxu0 %v3834
      %5324 = vmatprep.subr.bf16.mxu0 0
      %5325 = vmatpush1.bf16.msra.mxu0 %v3835
      %5326 = vmatprep.mubr.bf16.mxu0 %v1640
      %5327 = vmatmul.mubr.bf16.gmra.mrb[0].mxu0 %v1639
      %v5328 = vpop.f32.mrb[0].mxu0
      %v5329 = vadd.f32 %v5273, %v5328
      %v5330 = vpop.f32.mrb[0].mxu0
      %v5331 = vpop.f32.mrb[0].mxu0
      %v5332 = vadd.f32 %v5276, %v5331
      %v5333 = vpop.f32.mrb[0].mxu0
      %5334 = vmatprep.mubr.bf16.mxu0 %v1692
      %5335 = vmatmul.mubr.bf16.gmra.mrb[0].mxu0 %v1691
      %v5336 = vpop.f32.mrb[0].mxu0
      %v5337 = vadd.f32 %v5281, %v5336
      %v5338 = vpop.f32.mrb[0].mxu0
      %v5339 = vpop.f32.mrb[0].mxu0
      %v5340 = vadd.f32 %v5284, %v5339
      %v5341 = vpop.f32.mrb[0].mxu0
      %5342 = vmatprep.mubr.bf16.mxu0 %v1744
      %5343 = vmatmul.mubr.bf16.gmra.mrb[0].mxu0 %v1743
      %v5344 = vpop.f32.mrb[0].mxu0
      %v5345 = vadd.f32 %v5289, %v5344
      %v5346 = vpop.f32.mrb[0].mxu0
      %v5347 = vpop.f32.mrb[0].mxu0
      %v5348 = vpop.f32.mrb[0].mxu0
      %5349 = vdwg.mxu0
      %5350 = vmatprep.subr.bf16.mxu0 0
      %5351 = vmatpush1.bf16.msra.mxu0 %v3836
      %5352 = vmatprep.subr.bf16.mxu0 0
      %5353 = vmatpush1.bf16.msra.mxu0 %v3837
      %5354 = vmatprep.subr.bf16.mxu0 0
      %5355 = vmatpush1.bf16.msra.mxu0 %v3838
      %5356 = vmatprep.subr.bf16.mxu0 0
      %5357 = vmatpush1.bf16.msra.mxu0 %v3839
      %5358 = vmatprep.subr.bf16.mxu0 0
      %5359 = vmatpush1.bf16.msra.mxu0 %v3840
      %5360 = vmatprep.subr.bf16.mxu0 0
      %5361 = vmatpush1.bf16.msra.mxu0 %v3841
      %5362 = vmatprep.subr.bf16.mxu0 0
      %5363 = vmatpush1.bf16.msra.mxu0 %v3842
      %5364 = vmatprep.subr.bf16.mxu0 0
      %5365 = vmatpush1.bf16.msra.mxu0 %v3843
      %5366 = vmatprep.subr.bf16.mxu0 0
      %5367 = vmatpush1.bf16.msra.mxu0 %v3844
      %5368 = vmatprep.subr.bf16.mxu0 0
      %5369 = vmatpush1.bf16.msra.mxu0 %v3845
      %5370 = vmatprep.subr.bf16.mxu0 0
      %5371 = vmatpush1.bf16.msra.mxu0 %v3846
      %5372 = vmatprep.subr.bf16.mxu0 0
      %5373 = vmatpush1.bf16.msra.mxu0 %v3847
      %5374 = vmatprep.subr.bf16.mxu0 0
      %5375 = vmatpush1.bf16.msra.mxu0 %v3848
      %5376 = vmatprep.subr.bf16.mxu0 0
      %5377 = vmatpush1.bf16.msra.mxu0 %v3849
      %5378 = vmatprep.subr.bf16.mxu0 0
      %5379 = vmatpush1.bf16.msra.mxu0 %v3850
      %5380 = vmatprep.subr.bf16.mxu0 0
      %5381 = vmatpush1.bf16.msra.mxu0 %v3851
      %5382 = vmatprep.mubr.bf16.mxu0 %v1642
      %5383 = vmatmul.mubr.bf16.gmra.mrb[0].mxu0 %v1641
      %v5384 = vpop.f32.mrb[0].mxu0
      %v5385 = vadd.f32 %v5329, %v5384
      %v5386 = vpop.f32.mrb[0].mxu0
      %v5387 = vpop.f32.mrb[0].mxu0
      %v5388 = vadd.f32 %v5332, %v5387
      %v5389 = vpop.f32.mrb[0].mxu0
      %5390 = vmatprep.mubr.bf16.mxu0 %v1694
      %5391 = vmatmul.mubr.bf16.gmra.mrb[0].mxu0 %v1693
      %v5392 = vpop.f32.mrb[0].mxu0
      %v5393 = vadd.f32 %v5337, %v5392
      %v5394 = vpop.f32.mrb[0].mxu0
      %v5395 = vpop.f32.mrb[0].mxu0
      %v5396 = vadd.f32 %v5340, %v5395
      %v5397 = vpop.f32.mrb[0].mxu0
      %5398 = vmatprep.mubr.bf16.mxu0 %v1746
      %5399 = vmatmul.mubr.bf16.gmra.mrb[0].mxu0 %v1745
      %v5400 = vpop.f32.mrb[0].mxu0
      %v5401 = vadd.f32 %v5345, %v5400
      %v5402 = vpop.f32.mrb[0].mxu0
      %v5403 = vpop.f32.mrb[0].mxu0
      %v5404 = vpop.f32.mrb[0].mxu0
      %5405 = vdwg.mxu0
      %5406 = vmatprep.subr.bf16.mxu0 0
      %5407 = vmatpush1.bf16.msra.mxu0 %v3852
      %5408 = vmatprep.subr.bf16.mxu0 0
      %5409 = vmatpush1.bf16.msra.mxu0 %v3853
      %5410 = vmatprep.subr.bf16.mxu0 0
      %5411 = vmatpush1.bf16.msra.mxu0 %v3854
      %5412 = vmatprep.subr.bf16.mxu0 0
      %5413 = vmatpush1.bf16.msra.mxu0 %v3855
      %5414 = vmatprep.subr.bf16.mxu0 0
      %5415 = vmatpush1.bf16.msra.mxu0 %v3856
      %5416 = vmatprep.subr.bf16.mxu0 0
      %5417 = vmatpush1.bf16.msra.mxu0 %v3857
      %5418 = vmatprep.subr.bf16.mxu0 0
      %5419 = vmatpush1.bf16.msra.mxu0 %v3858
      %5420 = vmatprep.subr.bf16.mxu0 0
      %5421 = vmatpush1.bf16.msra.mxu0 %v3859
      %5422 = vmatprep.subr.bf16.mxu0 0
      %5423 = vmatpush1.bf16.msra.mxu0 %v3860
      %5424 = vmatprep.subr.bf16.mxu0 0
      %5425 = vmatpush1.bf16.msra.mxu0 %v3861
      %5426 = vmatprep.subr.bf16.mxu0 0
      %5427 = vmatpush1.bf16.msra.mxu0 %v3862
      %5428 = vmatprep.subr.bf16.mxu0 0
      %5429 = vmatpush1.bf16.msra.mxu0 %v3863
      %5430 = vmatprep.subr.bf16.mxu0 0
      %5431 = vmatpush1.bf16.msra.mxu0 %v3864
      %5432 = vmatprep.subr.bf16.mxu0 0
      %5433 = vmatpush1.bf16.msra.mxu0 %v3865
      %5434 = vmatprep.subr.bf16.mxu0 0
      %5435 = vmatpush1.bf16.msra.mxu0 %v3866
      %5436 = vmatprep.subr.bf16.mxu0 0
      %5437 = vmatpush1.bf16.msra.mxu0 %v3867
      %5438 = vmatprep.mubr.bf16.mxu0 %v1644
      %5439 = vmatmul.mubr.bf16.gmra.mrb[0].mxu0 %v1643
      %v5440 = vpop.f32.mrb[0].mxu0
      %v5441 = vadd.f32 %v5385, %v5440
      %v5442 = vpop.f32.mrb[0].mxu0
      %v5443 = vpop.f32.mrb[0].mxu0
      %v5444 = vadd.f32 %v5388, %v5443
      %v5445 = vpop.f32.mrb[0].mxu0
      %5446 = vmatprep.mubr.bf16.mxu0 %v1696
      %5447 = vmatmul.mubr.bf16.gmra.mrb[0].mxu0 %v1695
      %v5448 = vpop.f32.mrb[0].mxu0
      %v5449 = vadd.f32 %v5393, %v5448
      %v5450 = vpop.f32.mrb[0].mxu0
      %v5451 = vpop.f32.mrb[0].mxu0
      %v5452 = vadd.f32 %v5396, %v5451
      %v5453 = vpop.f32.mrb[0].mxu0
      %5454 = vmatprep.mubr.bf16.mxu0 %v1748
      %5455 = vmatmul.mubr.bf16.gmra.mrb[0].mxu0 %v1747
      %v5456 = vpop.f32.mrb[0].mxu0
      %v5457 = vadd.f32 %v5401, %v5456
      %v5458 = vpop.f32.mrb[0].mxu0
      %v5459 = vpop.f32.mrb[0].mxu0
      %v5460 = vpop.f32.mrb[0].mxu0
      %5461 = vdwg.mxu0
      %5462 = vmatprep.subr.bf16.mxu0 0
      %5463 = vmatpush1.bf16.msra.mxu0 %v3868
      %5464 = vmatprep.subr.bf16.mxu0 0
      %5465 = vmatpush1.bf16.msra.mxu0 %v3869
      %5466 = vmatprep.subr.bf16.mxu0 0
      %5467 = vmatpush1.bf16.msra.mxu0 %v3870
      %5468 = vmatprep.subr.bf16.mxu0 0
      %5469 = vmatpush1.bf16.msra.mxu0 %v3871
      %5470 = vmatprep.subr.bf16.mxu0 0
      %5471 = vmatpush1.bf16.msra.mxu0 %v3872
      %5472 = vmatprep.subr.bf16.mxu0 0
      %5473 = vmatpush1.bf16.msra.mxu0 %v3873
      %5474 = vmatprep.subr.bf16.mxu0 0
      %5475 = vmatpush1.bf16.msra.mxu0 %v3874
      %5476 = vmatprep.subr.bf16.mxu0 0
      %5477 = vmatpush1.bf16.msra.mxu0 %v3875
      %5478 = vmatprep.subr.bf16.mxu0 0
      %5479 = vmatpush1.bf16.msra.mxu0 %v3876
      %5480 = vmatprep.subr.bf16.mxu0 0
      %5481 = vmatpush1.bf16.msra.mxu0 %v3877
      %5482 = vmatprep.subr.bf16.mxu0 0
      %5483 = vmatpush1.bf16.msra.mxu0 %v3878
      %5484 = vmatprep.subr.bf16.mxu0 0
      %5485 = vmatpush1.bf16.msra.mxu0 %v3879
      %5486 = vmatprep.subr.bf16.mxu0 0
      %5487 = vmatpush1.bf16.msra.mxu0 %v3880
      %5488 = vmatprep.subr.bf16.mxu0 0
      %5489 = vmatpush1.bf16.msra.mxu0 %v3881
      %5490 = vmatprep.subr.bf16.mxu0 0
      %5491 = vmatpush1.bf16.msra.mxu0 %v3882
      %5492 = vmatprep.subr.bf16.mxu0 0
      %5493 = vmatpush1.bf16.msra.mxu0 %v3883
      %5494 = vmatprep.mubr.bf16.mxu0 %v1646
      %5495 = vmatmul.mubr.bf16.gmra.mrb[0].mxu0 %v1645
      %v5496 = vpop.f32.mrb[0].mxu0
      %v5497 = vadd.f32 %v5441, %v5496
      %v5498 = vpop.f32.mrb[0].mxu0
      %v5499 = vpop.f32.mrb[0].mxu0
      %v5500 = vadd.f32 %v5444, %v5499
      %v5501 = vpop.f32.mrb[0].mxu0
      %5502 = vmatprep.mubr.bf16.mxu0 %v1698
      %5503 = vmatmul.mubr.bf16.gmra.mrb[0].mxu0 %v1697
      %v5504 = vpop.f32.mrb[0].mxu0
      %v5505 = vadd.f32 %v5449, %v5504
      %v5506 = vpop.f32.mrb[0].mxu0
      %v5507 = vpop.f32.mrb[0].mxu0
      %v5508 = vadd.f32 %v5452, %v5507
      %v5509 = vpop.f32.mrb[0].mxu0
      %5510 = vmatprep.mubr.bf16.mxu0 %v1750
      %5511 = vmatmul.mubr.bf16.gmra.mrb[0].mxu0 %v1749
      %v5512 = vpop.f32.mrb[0].mxu0
      %v5513 = vadd.f32 %v5457, %v5512
      %v5514 = vpop.f32.mrb[0].mxu0
      %v5515 = vpop.f32.mrb[0].mxu0
      %v5516 = vpop.f32.mrb[0].mxu0
      %5517 = vdwg.mxu0
      %5518 = vmatprep.subr.bf16.mxu0 0
      %5519 = vmatpush1.bf16.msra.mxu0 %v3884
      %5520 = vmatprep.subr.bf16.mxu0 0
      %5521 = vmatpush1.bf16.msra.mxu0 %v3885
      %5522 = vmatprep.subr.bf16.mxu0 0
      %5523 = vmatpush1.bf16.msra.mxu0 %v3886
      %5524 = vmatprep.subr.bf16.mxu0 0
      %5525 = vmatpush1.bf16.msra.mxu0 %v3887
      %5526 = vmatprep.subr.bf16.mxu0 0
      %5527 = vmatpush1.bf16.msra.mxu0 %v3888
      %5528 = vmatprep.subr.bf16.mxu0 0
      %5529 = vmatpush1.bf16.msra.mxu0 %v3889
      %5530 = vmatprep.subr.bf16.mxu0 0
      %5531 = vmatpush1.bf16.msra.mxu0 %v3890
      %5532 = vmatprep.subr.bf16.mxu0 0
      %5533 = vmatpush1.bf16.msra.mxu0 %v3891
      %5534 = vmatprep.subr.bf16.mxu0 0
      %5535 = vmatpush1.bf16.msra.mxu0 %v3892
      %5536 = vmatprep.subr.bf16.mxu0 0
      %5537 = vmatpush1.bf16.msra.mxu0 %v3893
      %5538 = vmatprep.subr.bf16.mxu0 0
      %5539 = vmatpush1.bf16.msra.mxu0 %v3894
      %5540 = vmatprep.subr.bf16.mxu0 0
      %5541 = vmatpush1.bf16.msra.mxu0 %v3895
      %5542 = vmatprep.subr.bf16.mxu0 0
      %5543 = vmatpush1.bf16.msra.mxu0 %v3896
      %5544 = vmatprep.subr.bf16.mxu0 0
      %5545 = vmatpush1.bf16.msra.mxu0 %v3897
      %5546 = vmatprep.subr.bf16.mxu0 0
      %5547 = vmatpush1.bf16.msra.mxu0 %v3898
      %5548 = vmatprep.subr.bf16.mxu0 0
      %5549 = vmatpush1.bf16.msra.mxu0 %v3899
      %5550 = vmatprep.mubr.bf16.mxu0 %v1648
      %5551 = vmatmul.mubr.bf16.gmra.mrb[0].mxu0 %v1647
      %v5552 = vpop.f32.mrb[0].mxu0
      %v5553 = vadd.f32 %v5497, %v5552
      %v5554 = vpop.f32.mrb[0].mxu0
      %v5555 = vpop.f32.mrb[0].mxu0
      %v5556 = vadd.f32 %v5500, %v5555
      %v5557 = vpop.f32.mrb[0].mxu0
      %5558 = vmatprep.mubr.bf16.mxu0 %v1700
      %5559 = vmatmul.mubr.bf16.gmra.mrb[0].mxu0 %v1699
      %v5560 = vpop.f32.mrb[0].mxu0
      %v5561 = vadd.f32 %v5505, %v5560
      %v5562 = vpop.f32.mrb[0].mxu0
      %v5563 = vpop.f32.mrb[0].mxu0
      %v5564 = vadd.f32 %v5508, %v5563
      %v5565 = vpop.f32.mrb[0].mxu0
      %5566 = vmatprep.mubr.bf16.mxu0 %v1752
      %5567 = vmatmul.mubr.bf16.gmra.mrb[0].mxu0 %v1751
      %v5568 = vpop.f32.mrb[0].mxu0
      %v5569 = vadd.f32 %v5513, %v5568
      %v5570 = vpop.f32.mrb[0].mxu0
      %v5571 = vpop.f32.mrb[0].mxu0
      %v5572 = vpop.f32.mrb[0].mxu0
      %5573 = vdwg.mxu0
      %5574 = vmatprep.subr.bf16.mxu0 0
      %5575 = vmatpush1.bf16.msra.mxu0 %v3900
      %5576 = vmatprep.subr.bf16.mxu0 0
      %5577 = vmatpush1.bf16.msra.mxu0 %v3901
      %5578 = vmatprep.subr.bf16.mxu0 0
      %5579 = vmatpush1.bf16.msra.mxu0 %v3902
      %5580 = vmatprep.subr.bf16.mxu0 0
      %5581 = vmatpush1.bf16.msra.mxu0 %v3903
      %5582 = vmatprep.subr.bf16.mxu0 0
      %5583 = vmatpush1.bf16.msra.mxu0 %v3904
      %5584 = vmatprep.subr.bf16.mxu0 0
      %5585 = vmatpush1.bf16.msra.mxu0 %v3905
      %5586 = vmatprep.subr.bf16.mxu0 0
      %5587 = vmatpush1.bf16.msra.mxu0 %v3906
      %5588 = vmatprep.subr.bf16.mxu0 0
      %5589 = vmatpush1.bf16.msra.mxu0 %v3907
      %5590 = vmatprep.subr.bf16.mxu0 0
      %5591 = vmatpush1.bf16.msra.mxu0 %v3908
      %5592 = vmatprep.subr.bf16.mxu0 0
      %5593 = vmatpush1.bf16.msra.mxu0 %v3909
      %5594 = vmatprep.subr.bf16.mxu0 0
      %5595 = vmatpush1.bf16.msra.mxu0 %v3910
      %5596 = vmatprep.subr.bf16.mxu0 0
      %5597 = vmatpush1.bf16.msra.mxu0 %v3911
      %5598 = vmatprep.subr.bf16.mxu0 0
      %5599 = vmatpush1.bf16.msra.mxu0 %v3912
      %5600 = vmatprep.subr.bf16.mxu0 0
      %5601 = vmatpush1.bf16.msra.mxu0 %v3913
      %5602 = vmatprep.subr.bf16.mxu0 0
      %5603 = vmatpush1.bf16.msra.mxu0 %v3914
      %5604 = vmatprep.subr.bf16.mxu0 0
      %5605 = vmatpush1.bf16.msra.mxu0 %v3915
      %5606 = vmatprep.mubr.bf16.mxu0 %v1650
      %5607 = vmatmul.mubr.bf16.gmra.mrb[0].mxu0 %v1649
      %v5608 = vpop.f32.mrb[0].mxu0
      %v5609 = vadd.f32 %v5553, %v5608
      %v5610 = vpop.f32.mrb[0].mxu0
      %v5611 = vpop.f32.mrb[0].mxu0
      %v5612 = vadd.f32 %v5556, %v5611
      %v5613 = vpop.f32.mrb[0].mxu0
      %5614 = vmatprep.mubr.bf16.mxu0 %v1702
      %5615 = vmatmul.mubr.bf16.gmra.mrb[0].mxu0 %v1701
      %v5616 = vpop.f32.mrb[0].mxu0
      %v5617 = vadd.f32 %v5561, %v5616
      %v5618 = vpop.f32.mrb[0].mxu0
      %v5619 = vpop.f32.mrb[0].mxu0
      %v5620 = vadd.f32 %v5564, %v5619
      %v5621 = vpop.f32.mrb[0].mxu0
      %5622 = vmatprep.mubr.bf16.mxu0 %v1754
      %5623 = vmatmul.mubr.bf16.gmra.mrb[0].mxu0 %v1753
      %v5624 = vpop.f32.mrb[0].mxu0
      %v5625 = vadd.f32 %v5569, %v5624
      %v5626 = vpop.f32.mrb[0].mxu0
      %v5627 = vpop.f32.mrb[0].mxu0
      %v5628 = vpop.f32.mrb[0].mxu0
      %5629 = vdwg.mxu0
      %5630 = vmatprep.subr.bf16.mxu0 0
      %5631 = vmatpush1.bf16.msra.mxu0 %v3916
      %5632 = vmatprep.subr.bf16.mxu0 0
      %5633 = vmatpush1.bf16.msra.mxu0 %v3917
      %5634 = vmatprep.subr.bf16.mxu0 0
      %5635 = vmatpush1.bf16.msra.mxu0 %v3918
      %5636 = vmatprep.subr.bf16.mxu0 0
      %5637 = vmatpush1.bf16.msra.mxu0 %v3919
      %5638 = vmatprep.subr.bf16.mxu0 0
      %5639 = vmatpush1.bf16.msra.mxu0 %v3920
      %5640 = vmatprep.subr.bf16.mxu0 0
      %5641 = vmatpush1.bf16.msra.mxu0 %v3921
      %5642 = vmatprep.subr.bf16.mxu0 0
      %5643 = vmatpush1.bf16.msra.mxu0 %v3922
      %5644 = vmatprep.subr.bf16.mxu0 0
      %5645 = vmatpush1.bf16.msra.mxu0 %v3923
      %5646 = vmatprep.subr.bf16.mxu0 0
      %5647 = vmatpush1.bf16.msra.mxu0 %v3924
      %5648 = vmatprep.subr.bf16.mxu0 0
      %5649 = vmatpush1.bf16.msra.mxu0 %v3925
      %5650 = vmatprep.subr.bf16.mxu0 0
      %5651 = vmatpush1.bf16.msra.mxu0 %v3926
      %5652 = vmatprep.subr.bf16.mxu0 0
      %5653 = vmatpush1.bf16.msra.mxu0 %v3927
      %5654 = vmatprep.subr.bf16.mxu0 0
      %5655 = vmatpush1.bf16.msra.mxu0 %v3928
      %5656 = vmatprep.subr.bf16.mxu0 0
      %5657 = vmatpush1.bf16.msra.mxu0 %v3929
      %5658 = vmatprep.subr.bf16.mxu0 0
      %5659 = vmatpush1.bf16.msra.mxu0 %v3930
      %5660 = vmatprep.subr.bf16.mxu0 0
      %5661 = vmatpush1.bf16.msra.mxu0 %v3931
      %5662 = vmatprep.mubr.bf16.mxu0 %v1652
      %5663 = vmatmul.mubr.bf16.gmra.mrb[0].mxu0 %v1651
      %v5664 = vpop.f32.mrb[0].mxu0
      %v5665 = vadd.f32 %v5609, %v5664
      %v5666 = vpop.f32.mrb[0].mxu0
      %v5667 = vpop.f32.mrb[0].mxu0
      %v5668 = vadd.f32 %v5612, %v5667
      %v5669 = vpop.f32.mrb[0].mxu0
      %5670 = vmatprep.mubr.bf16.mxu0 %v1704
      %5671 = vmatmul.mubr.bf16.gmra.mrb[0].mxu0 %v1703
      %v5672 = vpop.f32.mrb[0].mxu0
      %v5673 = vadd.f32 %v5617, %v5672
      %v5674 = vpop.f32.mrb[0].mxu0
      %v5675 = vpop.f32.mrb[0].mxu0
      %v5676 = vadd.f32 %v5620, %v5675
      %v5677 = vpop.f32.mrb[0].mxu0
      %5678 = vmatprep.mubr.bf16.mxu0 %v1756
      %5679 = vmatmul.mubr.bf16.gmra.mrb[0].mxu0 %v1755
      %v5680 = vpop.f32.mrb[0].mxu0
      %v5681 = vadd.f32 %v5625, %v5680
      %v5682 = vpop.f32.mrb[0].mxu0
      %v5683 = vpop.f32.mrb[0].mxu0
      %v5684 = vpop.f32.mrb[0].mxu0
      %5685 = vdwg.mxu0
      %5686 = vmatprep.subr.bf16.mxu0 0
      %5687 = vmatpush1.bf16.msra.mxu0 %v3932
      %5688 = vmatprep.subr.bf16.mxu0 0
      %5689 = vmatpush1.bf16.msra.mxu0 %v3933
      %5690 = vmatprep.subr.bf16.mxu0 0
      %5691 = vmatpush1.bf16.msra.mxu0 %v3934
      %5692 = vmatprep.subr.bf16.mxu0 0
      %5693 = vmatpush1.bf16.msra.mxu0 %v3935
      %5694 = vmatprep.subr.bf16.mxu0 0
      %5695 = vmatpush1.bf16.msra.mxu0 %v3936
      %5696 = vmatprep.subr.bf16.mxu0 0
      %5697 = vmatpush1.bf16.msra.mxu0 %v3937
      %5698 = vmatprep.subr.bf16.mxu0 0
      %5699 = vmatpush1.bf16.msra.mxu0 %v3938
      %5700 = vmatprep.subr.bf16.mxu0 0
      %5701 = vmatpush1.bf16.msra.mxu0 %v3939
      %5702 = vmatprep.subr.bf16.mxu0 0
      %5703 = vmatpush1.bf16.msra.mxu0 %v3940
      %5704 = vmatprep.subr.bf16.mxu0 0
      %5705 = vmatpush1.bf16.msra.mxu0 %v3941
      %5706 = vmatprep.subr.bf16.mxu0 0
      %5707 = vmatpush1.bf16.msra.mxu0 %v3942
      %5708 = vmatprep.subr.bf16.mxu0 0
      %5709 = vmatpush1.bf16.msra.mxu0 %v3943
      %5710 = vmatprep.subr.bf16.mxu0 0
      %5711 = vmatpush1.bf16.msra.mxu0 %v3944
      %5712 = vmatprep.subr.bf16.mxu0 0
      %5713 = vmatpush1.bf16.msra.mxu0 %v3945
      %5714 = vmatprep.subr.bf16.mxu0 0
      %5715 = vmatpush1.bf16.msra.mxu0 %v3946
      %5716 = vmatprep.subr.bf16.mxu0 0
      %5717 = vmatpush1.bf16.msra.mxu0 %v3947
      %5718 = vmatprep.mubr.bf16.mxu0 %v1654
      %5719 = vmatmul.mubr.bf16.gmra.mrb[0].mxu0 %v1653
      %v5720 = vpop.f32.mrb[0].mxu0
      %v5721 = vadd.f32 %v5665, %v5720
      %v5722 = vpop.f32.mrb[0].mxu0
      %v5723 = vpop.f32.mrb[0].mxu0
      %v5724 = vadd.f32 %v5668, %v5723
      %v5725 = vpop.f32.mrb[0].mxu0
      %5726 = vmatprep.mubr.bf16.mxu0 %v1706
      %5727 = vmatmul.mubr.bf16.gmra.mrb[0].mxu0 %v1705
      %v5728 = vpop.f32.mrb[0].mxu0
      %v5729 = vadd.f32 %v5673, %v5728
      %v5730 = vpop.f32.mrb[0].mxu0
      %v5731 = vpop.f32.mrb[0].mxu0
      %v5732 = vadd.f32 %v5676, %v5731
      %v5733 = vpop.f32.mrb[0].mxu0
      %5734 = vmatprep.mubr.bf16.mxu0 %v1758
      %5735 = vmatmul.mubr.bf16.gmra.mrb[0].mxu0 %v1757
      %v5736 = vpop.f32.mrb[0].mxu0
      %v5737 = vadd.f32 %v5681, %v5736
      %v5738 = vpop.f32.mrb[0].mxu0
      %v5739 = vpop.f32.mrb[0].mxu0
      %v5740 = vpop.f32.mrb[0].mxu0
      %5741 = vdwg.mxu0
      %5742 = vmatprep.subr.bf16.mxu0 0
      %5743 = vmatpush1.bf16.msra.mxu0 %v3948
      %5744 = vmatprep.subr.bf16.mxu0 0
      %5745 = vmatpush1.bf16.msra.mxu0 %v3949
      %5746 = vmatprep.subr.bf16.mxu0 0
      %5747 = vmatpush1.bf16.msra.mxu0 %v3950
      %5748 = vmatprep.subr.bf16.mxu0 0
      %5749 = vmatpush1.bf16.msra.mxu0 %v3951
      %5750 = vmatprep.subr.bf16.mxu0 0
      %5751 = vmatpush1.bf16.msra.mxu0 %v3952
      %5752 = vmatprep.subr.bf16.mxu0 0
      %5753 = vmatpush1.bf16.msra.mxu0 %v3953
      %5754 = vmatprep.subr.bf16.mxu0 0
      %5755 = vmatpush1.bf16.msra.mxu0 %v3954
      %5756 = vmatprep.subr.bf16.mxu0 0
      %5757 = vmatpush1.bf16.msra.mxu0 %v3955
      %5758 = vmatprep.subr.bf16.mxu0 0
      %5759 = vmatpush1.bf16.msra.mxu0 %v3956
      %5760 = vmatprep.subr.bf16.mxu0 0
      %5761 = vmatpush1.bf16.msra.mxu0 %v3957
      %5762 = vmatprep.subr.bf16.mxu0 0
      %5763 = vmatpush1.bf16.msra.mxu0 %v3958
      %5764 = vmatprep.subr.bf16.mxu0 0
      %5765 = vmatpush1.bf16.msra.mxu0 %v3959
      %5766 = vmatprep.subr.bf16.mxu0 0
      %5767 = vmatpush1.bf16.msra.mxu0 %v3960
      %5768 = vmatprep.subr.bf16.mxu0 0
      %5769 = vmatpush1.bf16.msra.mxu0 %v3961
      %5770 = vmatprep.subr.bf16.mxu0 0
      %5771 = vmatpush1.bf16.msra.mxu0 %v3962
      %5772 = vmatprep.subr.bf16.mxu0 0
      %5773 = vmatpush1.bf16.msra.mxu0 %v3963
      %5774 = vmatprep.mubr.bf16.mxu0 %v1656
      %5775 = vmatmul.mubr.bf16.gmra.mrb[0].mxu0 %v1655
      %v5776 = vpop.f32.mrb[0].mxu0
      %v5777 = vadd.f32 %v5721, %v5776
      %v5778 = vpop.f32.mrb[0].mxu0
      %v5779 = vpop.f32.mrb[0].mxu0
      %v5780 = vadd.f32 %v5724, %v5779
      %v5781 = vpop.f32.mrb[0].mxu0
      %5782 = vmatprep.mubr.bf16.mxu0 %v1708
      %5783 = vmatmul.mubr.bf16.gmra.mrb[0].mxu0 %v1707
      %v5784 = vpop.f32.mrb[0].mxu0
      %v5785 = vadd.f32 %v5729, %v5784
      %v5786 = vpop.f32.mrb[0].mxu0
      %v5787 = vpop.f32.mrb[0].mxu0
      %v5788 = vadd.f32 %v5732, %v5787
      %v5789 = vpop.f32.mrb[0].mxu0
      %5790 = vmatprep.mubr.bf16.mxu0 %v1760
      %5791 = vmatmul.mubr.bf16.gmra.mrb[0].mxu0 %v1759
      %v5792 = vpop.f32.mrb[0].mxu0
      %v5793 = vadd.f32 %v5737, %v5792
      %v5794 = vpop.f32.mrb[0].mxu0
      %v5795 = vpop.f32.mrb[0].mxu0
      %v5796 = vpop.f32.mrb[0].mxu0
      %5797 = vdwg.mxu0
      %5798 = vmatprep.subr.bf16.mxu0 0
      %5799 = vmatpush1.bf16.msra.mxu0 %v3964
      %5800 = vmatprep.subr.bf16.mxu0 0
      %5801 = vmatpush1.bf16.msra.mxu0 %v3965
      %5802 = vmatprep.subr.bf16.mxu0 0
      %5803 = vmatpush1.bf16.msra.mxu0 %v3966
      %5804 = vmatprep.subr.bf16.mxu0 0
      %5805 = vmatpush1.bf16.msra.mxu0 %v3967
      %5806 = vmatprep.subr.bf16.mxu0 0
      %5807 = vmatpush1.bf16.msra.mxu0 %v3968
      %5808 = vmatprep.subr.bf16.mxu0 0
      %5809 = vmatpush1.bf16.msra.mxu0 %v3969
      %5810 = vmatprep.subr.bf16.mxu0 0
      %5811 = vmatpush1.bf16.msra.mxu0 %v3970
      %5812 = vmatprep.subr.bf16.mxu0 0
      %5813 = vmatpush1.bf16.msra.mxu0 %v3971
      %5814 = vmatprep.subr.bf16.mxu0 0
      %5815 = vmatpush1.bf16.msra.mxu0 %v3972
      %5816 = vmatprep.subr.bf16.mxu0 0
      %5817 = vmatpush1.bf16.msra.mxu0 %v3973
      %5818 = vmatprep.subr.bf16.mxu0 0
      %5819 = vmatpush1.bf16.msra.mxu0 %v3974
      %5820 = vmatprep.subr.bf16.mxu0 0
      %5821 = vmatpush1.bf16.msra.mxu0 %v3975
      %5822 = vmatprep.subr.bf16.mxu0 0
      %5823 = vmatpush1.bf16.msra.mxu0 0
      %5824 = vmatprep.subr.bf16.mxu0 0
      %5825 = vmatpush1.bf16.msra.mxu0 0
      %5826 = vmatprep.subr.bf16.mxu0 0
      %5827 = vmatpush1.bf16.msra.mxu0 0
      %5828 = vmatprep.subr.bf16.mxu0 0
      %5829 = vmatpush1.bf16.msra.mxu0 0
      %5830 = vmatprep.mubr.bf16.mxu0 %v4390
      %5831 = vmatmul.mubr.bf16.gmra.mrb[0].mxu0 %v1657
      %v5832 = vpop.f32.mrb[0].mxu0
      %v5833 = vadd.f32 %v5777, %v5832
      %v5834 = vpop.f32.mrb[0].mxu0
      %v5835 = vpop.f32.mrb[0].mxu0
      %v5836 = vadd.f32 %v5780, %v5835
      %v5837 = vpop.f32.mrb[0].mxu0
      %5838 = vmatprep.mubr.bf16.mxu0 %v4393
      %5839 = vmatmul.mubr.bf16.gmra.mrb[0].mxu0 %v1709
      %v5840 = vpop.f32.mrb[0].mxu0
      %v5841 = vadd.f32 %v5785, %v5840
      %v5842 = vpop.f32.mrb[0].mxu0
      %v5843 = vpop.f32.mrb[0].mxu0
      %v5844 = vadd.f32 %v5788, %v5843
      %v5845 = vpop.f32.mrb[0].mxu0
      %5846 = vmatprep.mubr.bf16.mxu0 %v4396
      %5847 = vmatmul.mubr.bf16.gmra.mrb[0].mxu0 %v1761
      %v5848 = vpop.f32.mrb[0].mxu0
      %v5849 = vadd.f32 %v5793, %v5848
      %v5850 = vpop.f32.mrb[0].mxu0
      %v5851 = vpop.f32.mrb[0].mxu0
      %v5852 = vpop.f32.mrb[0].mxu0
      %5853 = vdwg.mxu0
      %v5854 = vld [vmem:[%s3] sm:$0xff]
      %v5855 = vld [vmem:[%s3 + $0x8] sm:$0x3]
      %vm5856 = vcmask 80896
      %v5858 = vsel %vm5856, 0.0, 0
      %vm5860 = vcmask 1041408
      %v5862 = vsel %vm5860, %v5855, 0
      %5864 = vmatprep.subr.mxu0 0.0
      %5865 = vmatpush1.msra.mxu0 %v5854
      %5866 = vmatprep.subr.mxu0 0.0
      %5867 = vmatpush1.msra.mxu0 %v5862
      %5868 = vmatprep.subr.mxu0 0.0
      %5869 = vmatpush1.msra.mxu0 0.0
      %5870 = vmatprep.subr.mxu0 0.0
      %5871 = vmatpush1.msra.mxu0 0.0
      %5872 = vmatprep.subr.mxu0 0.0
      %5873 = vmatpush1.msra.mxu0 0.0
      %5874 = vmatprep.subr.mxu0 0.0
      %5875 = vmatpush1.msra.mxu0 0.0
      %5876 = vmatprep.subr.mxu0 0.0
      %5877 = vmatpush1.msra.mxu0 0.0
      %5878 = vmatprep.subr.mxu0 0.0
      %5879 = vmatpush1.msra.mxu0 0.0
      %5880 = vmatprep.subr.mxu0 0.0
      %5881 = vmatpush1.msra.mxu0 0.0
      %5882 = vmatprep.subr.mxu0 0.0
      %5883 = vmatpush1.msra.mxu0 0.0
      %5884 = vmatprep.subr.mxu0 0.0
      %5885 = vmatpush1.msra.mxu0 0.0
      %5886 = vmatprep.subr.mxu0 0.0
      %5887 = vmatpush1.msra.mxu0 0.0
      %5888 = vmatprep.subr.mxu0 0.0
      %5889 = vmatpush1.msra.mxu0 0.0
      %5890 = vmatprep.subr.mxu0 0.0
      %5891 = vmatpush1.msra.mxu0 0.0
      %5892 = vmatprep.subr.mxu0 0.0
      %5893 = vmatpush1.msra.mxu0 0.0
      %5894 = vmatprep.subr.mxu0 0.0
      %5895 = vmatpush1.msra.mxu0 0.0
      %5896 = vmatprep.subr.mxu0 0.0
      %5897 = vmatpush1.msra.mxu0 0.0
      %5898 = vmatprep.subr.mxu0 0.0
      %5899 = vmatpush1.msra.mxu0 0.0
      %5900 = vmatprep.subr.mxu0 0.0
      %5901 = vmatpush1.msra.mxu0 0.0
      %5902 = vmatprep.subr.mxu0 0.0
      %5903 = vmatpush1.msra.mxu0 0.0
      %5904 = vmatprep.subr.mxu0 0.0
      %5905 = vmatpush1.msra.mxu0 0.0
      %5906 = vmatprep.subr.mxu0 0.0
      %5907 = vmatpush1.msra.mxu0 0.0
      %5908 = vmatprep.subr.mxu0 0.0
      %5909 = vmatpush1.msra.mxu0 0.0
      %5910 = vmatprep.subr.mxu0 0.0
      %5911 = vmatpush1.msra.mxu0 0.0
      %5912 = vmatprep.subr.mxu0 0.0
      %5913 = vmatpush1.msra.mxu0 0.0
      %5914 = vmatprep.subr.mxu0 0.0
      %5915 = vmatpush1.msra.mxu0 0.0
      %5916 = vmatprep.subr.mxu0 0.0
      %5917 = vmatpush1.msra.mxu0 0.0
      %5918 = vmatprep.subr.mxu0 0.0
      %5919 = vmatpush1.msra.mxu0 0.0
      %5920 = vmatprep.subr.mxu0 0.0
      %5921 = vmatpush1.msra.mxu0 0.0
      %5922 = vmatprep.subr.mxu0 0.0
      %5923 = vmatpush1.msra.mxu0 0.0
      %5924 = vmatprep.subr.mxu0 0.0
      %5925 = vmatpush1.msra.mxu0 0.0
      %5926 = vmatprep.subr.mxu0 0.0
      %5927 = vmatpush1.msra.mxu0 0.0
      %5928 = vmatprep.mubr.f32.mxu0 0.0
      %5929 = vmatmul.mubr.f32.gmra.mrb[0].mxu0 %v5858
      %v5930 = vpop.f32.mrb[0].mxu0
      %v5931 = vadd.f32 0.0, %v5930
      %v5932 = vpop.f32.mrb[0].mxu0
      %5933 = vdwg.mxu0
      %v5934 = vadd.f32 %v5833, %v5931
      %v5935 = vxor.u32 %v5934, 2147483648
      %v5936 = vmul.f32 %v5935, 1.442695
      %v5937 = vpow.pop %v5936
      %v5938 = vadd.f32 %v5937, 1.0
      %v5939 = vrcp.pop %v5938
      %v5940 = vmul.f32 1.0, %v5939
      %v5941 = vtanh.pop %v5934
      %v5942 = vmul.f32 %v5940, 0.0
      %5944 = vrot.lane.b32.xlu0 %v5941, 108
      %v5945 = vpop.permute.xlu0 %5944
      %v5947 = vmul.f32 %v5940, %v5945
      %5949 = vrot.lane.b32.xlu0 %v5947, 10
      %v5950 = vpop.permute.xlu0 %5949
      %v5952 = vadd.f32 %v5942, %v5950
      %v5953 = vtanh.pop %v5952
      %5955 = vrot.lane.b32.xlu0 %v5953, 20
      %v5956 = vpop.permute.xlu0 %5955
      %v5958 = vmul.f32 %v5940, %v5956
      %5960 = vrot.lane.b32.xlu0 %v5958, 98
      %v5961 = vpop.permute.xlu0 %5960
      %v5962 = vsel %vm5856, %v5961, 0
      %5964 = vmatprep.subr.mxu0 0.0
      %5965 = vmatpush1.msra.mxu0 %v5854
      %5966 = vmatprep.subr.mxu0 0.0
      %5967 = vmatpush1.msra.mxu0 %v5862
      %5968 = vmatprep.subr.mxu0 0.0
      %5969 = vmatpush1.msra.mxu0 0.0
      %5970 = vmatprep.subr.mxu0 0.0
      %5971 = vmatpush1.msra.mxu0 0.0
      %5972 = vmatprep.subr.mxu0 0.0
      %5973 = vmatpush1.msra.mxu0 0.0
      %5974 = vmatprep.subr.mxu0 0.0
      %5975 = vmatpush1.msra.mxu0 0.0
      %5976 = vmatprep.subr.mxu0 0.0
      %5977 = vmatpush1.msra.mxu0 0.0
      %5978 = vmatprep.subr.mxu0 0.0
      %5979 = vmatpush1.msra.mxu0 0.0
      %5980 = vmatprep.subr.mxu0 0.0
      %5981 = vmatpush1.msra.mxu0 0.0
      %5982 = vmatprep.subr.mxu0 0.0
      %5983 = vmatpush1.msra.mxu0 0.0
      %5984 = vmatprep.subr.mxu0 0.0
      %5985 = vmatpush1.msra.mxu0 0.0
      %5986 = vmatprep.subr.mxu0 0.0
      %5987 = vmatpush1.msra.mxu0 0.0
      %5988 = vmatprep.subr.mxu0 0.0
      %5989 = vmatpush1.msra.mxu0 0.0
      %5990 = vmatprep.subr.mxu0 0.0
      %5991 = vmatpush1.msra.mxu0 0.0
      %5992 = vmatprep.subr.mxu0 0.0
      %5993 = vmatpush1.msra.mxu0 0.0
      %5994 = vmatprep.subr.mxu0 0.0
      %5995 = vmatpush1.msra.mxu0 0.0
      %5996 = vmatprep.subr.mxu0 0.0
      %5997 = vmatpush1.msra.mxu0 0.0
      %5998 = vmatprep.subr.mxu0 0.0
      %5999 = vmatpush1.msra.mxu0 0.0
      %6000 = vmatprep.subr.mxu0 0.0
      %6001 = vmatpush1.msra.mxu0 0.0
      %6002 = vmatprep.subr.mxu0 0.0
      %6003 = vmatpush1.msra.mxu0 0.0
      %6004 = vmatprep.subr.mxu0 0.0
      %6005 = vmatpush1.msra.mxu0 0.0
      %6006 = vmatprep.subr.mxu0 0.0
      %6007 = vmatpush1.msra.mxu0 0.0
      %6008 = vmatprep.subr.mxu0 0.0
      %6009 = vmatpush1.msra.mxu0 0.0
      %6010 = vmatprep.subr.mxu0 0.0
      %6011 = vmatpush1.msra.mxu0 0.0
      %6012 = vmatprep.subr.mxu0 0.0
      %6013 = vmatpush1.msra.mxu0 0.0
      %6014 = vmatprep.subr.mxu0 0.0
      %6015 = vmatpush1.msra.mxu0 0.0
      %6016 = vmatprep.subr.mxu0 0.0
      %6017 = vmatpush1.msra.mxu0 0.0
      %6018 = vmatprep.subr.mxu0 0.0
      %6019 = vmatpush1.msra.mxu0 0.0
      %6020 = vmatprep.subr.mxu0 0.0
      %6021 = vmatpush1.msra.mxu0 0.0
      %6022 = vmatprep.subr.mxu0 0.0
      %6023 = vmatpush1.msra.mxu0 0.0
      %6024 = vmatprep.subr.mxu0 0.0
      %6025 = vmatpush1.msra.mxu0 0.0
      %6026 = vmatprep.subr.mxu0 0.0
      %6027 = vmatpush1.msra.mxu0 0.0
      %6028 = vmatprep.mubr.f32.mxu0 0.0
      %6029 = vmatmul.mubr.f32.gmra.mrb[0].mxu0 %v5962
      %v6030 = vpop.f32.mrb[0].mxu0
      %v6031 = vadd.f32 0.0, %v6030
      %v6032 = vpop.f32.mrb[0].mxu0
      %6033 = vdwg.mxu0
      %v6034 = vadd.f32 %v5836, %v6031
      %v6035 = vxor.u32 %v6034, 2147483648
      %v6036 = vmul.f32 %v6035, 1.442695
      %v6037 = vpow.pop %v6036
      %v6038 = vadd.f32 %v6037, 1.0
      %v6039 = vrcp.pop %v6038
      %v6040 = vmul.f32 1.0, %v6039
      %v6041 = vtanh.pop %v6034
      %v6042 = vmul.f32 %v6040, %v5952
      %6044 = vrot.lane.b32.xlu0 %v6041, 108
      %v6045 = vpop.permute.xlu0 %6044
      %v6047 = vmul.f32 %v6040, %v6045
      %6049 = vrot.lane.b32.xlu0 %v6047, 10
      %v6050 = vpop.permute.xlu0 %6049
      %v6052 = vadd.f32 %v6042, %v6050
      %v6053 = vtanh.pop %v6052
      %6055 = vrot.lane.b32.xlu0 %v6053, 20
      %v6056 = vpop.permute.xlu0 %6055
      %v6058 = vmul.f32 %v6040, %v6056
      %6060 = vrot.lane.b32.xlu0 %v6058, 98
      %v6061 = vpop.permute.xlu0 %6060
      %v6062 = vsel %vm5856, %v6061, 0
      %6064 = vmatprep.subr.mxu0 0.0
      %6065 = vmatpush1.msra.mxu0 %v5854
      %6066 = vmatprep.subr.mxu0 0.0
      %6067 = vmatpush1.msra.mxu0 %v5862
      %6068 = vmatprep.subr.mxu0 0.0
      %6069 = vmatpush1.msra.mxu0 0.0
      %6070 = vmatprep.subr.mxu0 0.0
      %6071 = vmatpush1.msra.mxu0 0.0
      %6072 = vmatprep.subr.mxu0 0.0
      %6073 = vmatpush1.msra.mxu0 0.0
      %6074 = vmatprep.subr.mxu0 0.0
      %6075 = vmatpush1.msra.mxu0 0.0
      %6076 = vmatprep.subr.mxu0 0.0
      %6077 = vmatpush1.msra.mxu0 0.0
      %6078 = vmatprep.subr.mxu0 0.0
      %6079 = vmatpush1.msra.mxu0 0.0
      %6080 = vmatprep.subr.mxu0 0.0
      %6081 = vmatpush1.msra.mxu0 0.0
      %6082 = vmatprep.subr.mxu0 0.0
      %6083 = vmatpush1.msra.mxu0 0.0
      %6084 = vmatprep.subr.mxu0 0.0
      %6085 = vmatpush1.msra.mxu0 0.0
      %6086 = vmatprep.subr.mxu0 0.0
      %6087 = vmatpush1.msra.mxu0 0.0
      %6088 = vmatprep.subr.mxu0 0.0
      %6089 = vmatpush1.msra.mxu0 0.0
      %6090 = vmatprep.subr.mxu0 0.0
      %6091 = vmatpush1.msra.mxu0 0.0
      %6092 = vmatprep.subr.mxu0 0.0
      %6093 = vmatpush1.msra.mxu0 0.0
      %6094 = vmatprep.subr.mxu0 0.0
      %6095 = vmatpush1.msra.mxu0 0.0
      %6096 = vmatprep.subr.mxu0 0.0
      %6097 = vmatpush1.msra.mxu0 0.0
      %6098 = vmatprep.subr.mxu0 0.0
      %6099 = vmatpush1.msra.mxu0 0.0
      %6100 = vmatprep.subr.mxu0 0.0
      %6101 = vmatpush1.msra.mxu0 0.0
      %6102 = vmatprep.subr.mxu0 0.0
      %6103 = vmatpush1.msra.mxu0 0.0
      %6104 = vmatprep.subr.mxu0 0.0
      %6105 = vmatpush1.msra.mxu0 0.0
      %6106 = vmatprep.subr.mxu0 0.0
      %6107 = vmatpush1.msra.mxu0 0.0
      %6108 = vmatprep.subr.mxu0 0.0
      %6109 = vmatpush1.msra.mxu0 0.0
      %6110 = vmatprep.subr.mxu0 0.0
      %6111 = vmatpush1.msra.mxu0 0.0
      %6112 = vmatprep.subr.mxu0 0.0
      %6113 = vmatpush1.msra.mxu0 0.0
      %6114 = vmatprep.subr.mxu0 0.0
      %6115 = vmatpush1.msra.mxu0 0.0
      %6116 = vmatprep.subr.mxu0 0.0
      %6117 = vmatpush1.msra.mxu0 0.0
      %6118 = vmatprep.subr.mxu0 0.0
      %6119 = vmatpush1.msra.mxu0 0.0
      %6120 = vmatprep.subr.mxu0 0.0
      %6121 = vmatpush1.msra.mxu0 0.0
      %6122 = vmatprep.subr.mxu0 0.0
      %6123 = vmatpush1.msra.mxu0 0.0
      %6124 = vmatprep.subr.mxu0 0.0
      %6125 = vmatpush1.msra.mxu0 0.0
      %6126 = vmatprep.subr.mxu0 0.0
      %6127 = vmatpush1.msra.mxu0 0.0
      %6128 = vmatprep.mubr.f32.mxu0 0.0
      %6129 = vmatmul.mubr.f32.gmra.mrb[0].mxu0 %v6062
      %v6130 = vpop.f32.mrb[0].mxu0
      %v6131 = vadd.f32 0.0, %v6130
      %v6132 = vpop.f32.mrb[0].mxu0
      %6133 = vdwg.mxu0
      %v6134 = vadd.f32 %v5841, %v6131
      %v6135 = vxor.u32 %v6134, 2147483648
      %v6136 = vmul.f32 %v6135, 1.442695
      %v6137 = vpow.pop %v6136
      %v6138 = vadd.f32 %v6137, 1.0
      %v6139 = vrcp.pop %v6138
      %v6140 = vmul.f32 1.0, %v6139
      %v6141 = vtanh.pop %v6134
      %v6142 = vmul.f32 %v6140, %v6052
      %6144 = vrot.lane.b32.xlu0 %v6141, 108
      %v6145 = vpop.permute.xlu0 %6144
      %v6147 = vmul.f32 %v6140, %v6145
      %6149 = vrot.lane.b32.xlu0 %v6147, 10
      %v6150 = vpop.permute.xlu0 %6149
      %v6152 = vadd.f32 %v6142, %v6150
      %v6153 = vtanh.pop %v6152
      %6155 = vrot.lane.b32.xlu0 %v6153, 20
      %v6156 = vpop.permute.xlu0 %6155
      %v6158 = vmul.f32 %v6140, %v6156
      %6160 = vrot.lane.b32.xlu0 %v6158, 98
      %v6161 = vpop.permute.xlu0 %6160
      %v6162 = vsel %vm5856, %v6161, 0
      %6164 = vmatprep.subr.mxu0 0.0
      %6165 = vmatpush1.msra.mxu0 %v5854
      %6166 = vmatprep.subr.mxu0 0.0
      %6167 = vmatpush1.msra.mxu0 %v5862
      %6168 = vmatprep.subr.mxu0 0.0
      %6169 = vmatpush1.msra.mxu0 0.0
      %6170 = vmatprep.subr.mxu0 0.0
      %6171 = vmatpush1.msra.mxu0 0.0
      %6172 = vmatprep.subr.mxu0 0.0
      %6173 = vmatpush1.msra.mxu0 0.0
      %6174 = vmatprep.subr.mxu0 0.0
      %6175 = vmatpush1.msra.mxu0 0.0
      %6176 = vmatprep.subr.mxu0 0.0
      %6177 = vmatpush1.msra.mxu0 0.0
      %6178 = vmatprep.subr.mxu0 0.0
      %6179 = vmatpush1.msra.mxu0 0.0
      %6180 = vmatprep.subr.mxu0 0.0
      %6181 = vmatpush1.msra.mxu0 0.0
      %6182 = vmatprep.subr.mxu0 0.0
      %6183 = vmatpush1.msra.mxu0 0.0
      %6184 = vmatprep.subr.mxu0 0.0
      %6185 = vmatpush1.msra.mxu0 0.0
      %6186 = vmatprep.subr.mxu0 0.0
      %6187 = vmatpush1.msra.mxu0 0.0
      %6188 = vmatprep.subr.mxu0 0.0
      %6189 = vmatpush1.msra.mxu0 0.0
      %6190 = vmatprep.subr.mxu0 0.0
      %6191 = vmatpush1.msra.mxu0 0.0
      %6192 = vmatprep.subr.mxu0 0.0
      %6193 = vmatpush1.msra.mxu0 0.0
      %6194 = vmatprep.subr.mxu0 0.0
      %6195 = vmatpush1.msra.mxu0 0.0
      %6196 = vmatprep.subr.mxu0 0.0
      %6197 = vmatpush1.msra.mxu0 0.0
      %6198 = vmatprep.subr.mxu0 0.0
      %6199 = vmatpush1.msra.mxu0 0.0
      %6200 = vmatprep.subr.mxu0 0.0
      %6201 = vmatpush1.msra.mxu0 0.0
      %6202 = vmatprep.subr.mxu0 0.0
      %6203 = vmatpush1.msra.mxu0 0.0
      %6204 = vmatprep.subr.mxu0 0.0
      %6205 = vmatpush1.msra.mxu0 0.0
      %6206 = vmatprep.subr.mxu0 0.0
      %6207 = vmatpush1.msra.mxu0 0.0
      %6208 = vmatprep.subr.mxu0 0.0
      %6209 = vmatpush1.msra.mxu0 0.0
      %6210 = vmatprep.subr.mxu0 0.0
      %6211 = vmatpush1.msra.mxu0 0.0
      %6212 = vmatprep.subr.mxu0 0.0
      %6213 = vmatpush1.msra.mxu0 0.0
      %6214 = vmatprep.subr.mxu0 0.0
      %6215 = vmatpush1.msra.mxu0 0.0
      %6216 = vmatprep.subr.mxu0 0.0
      %6217 = vmatpush1.msra.mxu0 0.0
      %6218 = vmatprep.subr.mxu0 0.0
      %6219 = vmatpush1.msra.mxu0 0.0
      %6220 = vmatprep.subr.mxu0 0.0
      %6221 = vmatpush1.msra.mxu0 0.0
      %6222 = vmatprep.subr.mxu0 0.0
      %6223 = vmatpush1.msra.mxu0 0.0
      %6224 = vmatprep.subr.mxu0 0.0
      %6225 = vmatpush1.msra.mxu0 0.0
      %6226 = vmatprep.subr.mxu0 0.0
      %6227 = vmatpush1.msra.mxu0 0.0
      %6228 = vmatprep.mubr.f32.mxu0 0.0
      %6229 = vmatmul.mubr.f32.gmra.mrb[0].mxu0 %v6162
      %v6230 = vpop.f32.mrb[0].mxu0
      %v6231 = vadd.f32 0.0, %v6230
      %v6232 = vpop.f32.mrb[0].mxu0
      %6233 = vdwg.mxu0
      %v6234 = vadd.f32 %v5844, %v6231
      %v6235 = vxor.u32 %v6234, 2147483648
      %v6236 = vmul.f32 %v6235, 1.442695
      %v6237 = vpow.pop %v6236
      %v6238 = vadd.f32 %v6237, 1.0
      %v6239 = vrcp.pop %v6238
      %v6240 = vmul.f32 1.0, %v6239
      %v6241 = vtanh.pop %v6234
      %v6242 = vmul.f32 %v6240, %v6152
      %6244 = vrot.lane.b32.xlu0 %v6241, 108
      %v6245 = vpop.permute.xlu0 %6244
      %v6247 = vmul.f32 %v6240, %v6245
      %6249 = vrot.lane.b32.xlu0 %v6247, 10
      %v6250 = vpop.permute.xlu0 %6249
      %v6252 = vadd.f32 %v6242, %v6250
      %v6253 = vtanh.pop %v6252
      %6255 = vrot.lane.b32.xlu0 %v6253, 20
      %v6256 = vpop.permute.xlu0 %6255
      %v6258 = vmul.f32 %v6240, %v6256
      %6260 = vrot.lane.b32.xlu0 %v6258, 98
      %v6261 = vpop.permute.xlu0 %6260
      %v6262 = vsel %vm5856, %v6261, 0
      %6264 = vmatprep.subr.mxu0 0.0
      %6265 = vmatpush1.msra.mxu0 %v5854
      %6266 = vmatprep.subr.mxu0 0.0
      %6267 = vmatpush1.msra.mxu0 %v5862
      %6268 = vmatprep.subr.mxu0 0.0
      %6269 = vmatpush1.msra.mxu0 0.0
      %6270 = vmatprep.subr.mxu0 0.0
      %6271 = vmatpush1.msra.mxu0 0.0
      %6272 = vmatprep.subr.mxu0 0.0
      %6273 = vmatpush1.msra.mxu0 0.0
      %6274 = vmatprep.subr.mxu0 0.0
      %6275 = vmatpush1.msra.mxu0 0.0
      %6276 = vmatprep.subr.mxu0 0.0
      %6277 = vmatpush1.msra.mxu0 0.0
      %6278 = vmatprep.subr.mxu0 0.0
      %6279 = vmatpush1.msra.mxu0 0.0
      %6280 = vmatprep.subr.mxu0 0.0
      %6281 = vmatpush1.msra.mxu0 0.0
      %6282 = vmatprep.subr.mxu0 0.0
      %6283 = vmatpush1.msra.mxu0 0.0
      %6284 = vmatprep.subr.mxu0 0.0
      %6285 = vmatpush1.msra.mxu0 0.0
      %6286 = vmatprep.subr.mxu0 0.0
      %6287 = vmatpush1.msra.mxu0 0.0
      %6288 = vmatprep.subr.mxu0 0.0
      %6289 = vmatpush1.msra.mxu0 0.0
      %6290 = vmatprep.subr.mxu0 0.0
      %6291 = vmatpush1.msra.mxu0 0.0
      %6292 = vmatprep.subr.mxu0 0.0
      %6293 = vmatpush1.msra.mxu0 0.0
      %6294 = vmatprep.subr.mxu0 0.0
      %6295 = vmatpush1.msra.mxu0 0.0
      %6296 = vmatprep.subr.mxu0 0.0
      %6297 = vmatpush1.msra.mxu0 0.0
      %6298 = vmatprep.subr.mxu0 0.0
      %6299 = vmatpush1.msra.mxu0 0.0
      %6300 = vmatprep.subr.mxu0 0.0
      %6301 = vmatpush1.msra.mxu0 0.0
      %6302 = vmatprep.subr.mxu0 0.0
      %6303 = vmatpush1.msra.mxu0 0.0
      %6304 = vmatprep.subr.mxu0 0.0
      %6305 = vmatpush1.msra.mxu0 0.0
      %6306 = vmatprep.subr.mxu0 0.0
      %6307 = vmatpush1.msra.mxu0 0.0
      %6308 = vmatprep.subr.mxu0 0.0
      %6309 = vmatpush1.msra.mxu0 0.0
      %6310 = vmatprep.subr.mxu0 0.0
      %6311 = vmatpush1.msra.mxu0 0.0
      %6312 = vmatprep.subr.mxu0 0.0
      %6313 = vmatpush1.msra.mxu0 0.0
      %6314 = vmatprep.subr.mxu0 0.0
      %6315 = vmatpush1.msra.mxu0 0.0
      %6316 = vmatprep.subr.mxu0 0.0
      %6317 = vmatpush1.msra.mxu0 0.0
      %6318 = vmatprep.subr.mxu0 0.0
      %6319 = vmatpush1.msra.mxu0 0.0
      %6320 = vmatprep.subr.mxu0 0.0
      %6321 = vmatpush1.msra.mxu0 0.0
      %6322 = vmatprep.subr.mxu0 0.0
      %6323 = vmatpush1.msra.mxu0 0.0
      %6324 = vmatprep.subr.mxu0 0.0
      %6325 = vmatpush1.msra.mxu0 0.0
      %6326 = vmatprep.subr.mxu0 0.0
      %6327 = vmatpush1.msra.mxu0 0.0
      %6328 = vmatprep.mubr.f32.mxu0 0.0
      %6329 = vmatmul.mubr.f32.gmra.mrb[0].mxu0 %v6262
      %v6330 = vpop.f32.mrb[0].mxu0
      %v6331 = vadd.f32 0.0, %v6330
      %v6332 = vpop.f32.mrb[0].mxu0
      %6333 = vdwg.mxu0
      %v6334 = vadd.f32 %v5849, %v6331
      %v6335 = vxor.u32 %v6334, 2147483648
      %v6336 = vmul.f32 %v6335, 1.442695
      %v6337 = vpow.pop %v6336
      %v6338 = vadd.f32 %v6337, 1.0
      %v6339 = vrcp.pop %v6338
      %v6340 = vmul.f32 1.0, %v6339
      %v6341 = vtanh.pop %v6334
      %v6342 = vmul.f32 %v6340, %v6252
      %6344 = vrot.lane.b32.xlu0 %v6341, 108
      %v6345 = vpop.permute.xlu0 %6344
      %v6347 = vmul.f32 %v6340, %v6345
      %6349 = vrot.lane.b32.xlu0 %v6347, 10
      %v6350 = vpop.permute.xlu0 %6349
      %v6352 = vadd.f32 %v6342, %v6350
      %v6353 = vtanh.pop %v6352
      %6355 = vrot.lane.b32.xlu0 %v6353, 20
      %v6356 = vpop.permute.xlu0 %6355
      %v6358 = vmul.f32 %v6340, %v6356
      %v6359 = vld [vmem:[%s4] sm:$0xff]
      %v6360 = vld [vmem:[%s4 + $0x8] sm:$0x3]
      %v6361 = vld [vmem:[%s5] sm:$0x1]
      %v6363 = vlaneseq
      %v6364 = vshrl.u32 %v6363, 7
      %v6365 = vsub.s32 0, %v6364
      %v6366 = vrot.slane %v6361, %v6365
      %6369 = vrot.lane.b32.xlu0 %v6358, 98
      %v6370 = vpop.permute.xlu0 %6369
      %v6371 = vsel %vm5856, %v6370, 0
      %v6374 = vsel %vm5860, %v6360, 0
      %6376 = vmatprep.subr.mxu0 0.0
      %6377 = vmatpush1.msra.mxu0 %v6359
      %6378 = vmatprep.subr.mxu0 0.0
      %6379 = vmatpush1.msra.mxu0 %v6374
      %6380 = vmatprep.subr.mxu0 0.0
      %6381 = vmatpush1.msra.mxu0 0.0
      %6382 = vmatprep.subr.mxu0 0.0
      %6383 = vmatpush1.msra.mxu0 0.0
      %6384 = vmatprep.subr.mxu0 0.0
      %6385 = vmatpush1.msra.mxu0 0.0
      %6386 = vmatprep.subr.mxu0 0.0
      %6387 = vmatpush1.msra.mxu0 0.0
      %6388 = vmatprep.subr.mxu0 0.0
      %6389 = vmatpush1.msra.mxu0 0.0
      %6390 = vmatprep.subr.mxu0 0.0
      %6391 = vmatpush1.msra.mxu0 0.0
      %6392 = vmatprep.subr.mxu0 0.0
      %6393 = vmatpush1.msra.mxu0 0.0
      %6394 = vmatprep.subr.mxu0 0.0
      %6395 = vmatpush1.msra.mxu0 0.0
      %6396 = vmatprep.subr.mxu0 0.0
      %6397 = vmatpush1.msra.mxu0 0.0
      %6398 = vmatprep.subr.mxu0 0.0
      %6399 = vmatpush1.msra.mxu0 0.0
      %6400 = vmatprep.subr.mxu0 0.0
      %6401 = vmatpush1.msra.mxu0 0.0
      %6402 = vmatprep.subr.mxu0 0.0
      %6403 = vmatpush1.msra.mxu0 0.0
      %6404 = vmatprep.subr.mxu0 0.0
      %6405 = vmatpush1.msra.mxu0 0.0
      %6406 = vmatprep.subr.mxu0 0.0
      %6407 = vmatpush1.msra.mxu0 0.0
      %6408 = vmatprep.subr.mxu0 0.0
      %6409 = vmatpush1.msra.mxu0 0.0
      %6410 = vmatprep.subr.mxu0 0.0
      %6411 = vmatpush1.msra.mxu0 0.0
      %6412 = vmatprep.subr.mxu0 0.0
      %6413 = vmatpush1.msra.mxu0 0.0
      %6414 = vmatprep.subr.mxu0 0.0
      %6415 = vmatpush1.msra.mxu0 0.0
      %6416 = vmatprep.subr.mxu0 0.0
      %6417 = vmatpush1.msra.mxu0 0.0
      %6418 = vmatprep.subr.mxu0 0.0
      %6419 = vmatpush1.msra.mxu0 0.0
      %6420 = vmatprep.subr.mxu0 0.0
      %6421 = vmatpush1.msra.mxu0 0.0
      %6422 = vmatprep.subr.mxu0 0.0
      %6423 = vmatpush1.msra.mxu0 0.0
      %6424 = vmatprep.subr.mxu0 0.0
      %6425 = vmatpush1.msra.mxu0 0.0
      %6426 = vmatprep.subr.mxu0 0.0
      %6427 = vmatpush1.msra.mxu0 0.0
      %6428 = vmatprep.subr.mxu0 0.0
      %6429 = vmatpush1.msra.mxu0 0.0
      %6430 = vmatprep.subr.mxu0 0.0
      %6431 = vmatpush1.msra.mxu0 0.0
      %6432 = vmatprep.subr.mxu0 0.0
      %6433 = vmatpush1.msra.mxu0 0.0
      %6434 = vmatprep.subr.mxu0 0.0
      %6435 = vmatpush1.msra.mxu0 0.0
      %6436 = vmatprep.subr.mxu0 0.0
      %6437 = vmatpush1.msra.mxu0 0.0
      %6438 = vmatprep.subr.mxu0 0.0
      %6439 = vmatpush1.msra.mxu0 0.0
      %6440 = vmatprep.mubr.f32.mxu0 0.0
      %6441 = vmatmul.mubr.f32.gmra.mrb[0].mxu0 %v6371
      %v6442 = vpop.f32.mrb[0].mxu0
      %v6443 = vadd.f32 %v6366, %v6442
      %v6444 = vpop.f32.mrb[0].mxu0
      %6445 = vdwg.mxu0
      %6446 = vst [vmem:[%s254] sm:$0xff] %v6443
      %p6447 = scmp.lt.s32.totalorder %s17, 1
      %s6448 = scalar_select %p6447, %s17, 1
      %s6449 = smul.addr %s6448, 8
      %s6450 = scalar_lea.vmem %s6, %s6449
      // Predicated region
      $region45: #{conv_lstm_forward.1} parent=43 // pred_check
        %p6451 = pneg %p166
      $region46: #{conv_lstm_forward.1} parent=43 // pred_check_branch
        %6453 = sbr.rel (%p6451) target = $region48
      $region47: #{conv_lstm_forward.1} parent=43 // pred_region
        _
      $region48: #{conv_lstm_forward.1} parent=43 // pred_fallthru
        _
    $region44: #{conv_lstm_forward.1} parent=5 // pred_fallthru
      _
    %p6454 = scmp.le.s32.totalorder 2, %s12
    // Predicated region
    $region49: #{conv_lstm_forward.1} parent=5 // pred_check
      %p6455 = pneg %p6454
    $region50: #{conv_lstm_forward.1} parent=5 // pred_check_branch
      %6457 = sbr.rel (%p6455) target = $region52
    $region51: #{conv_lstm_forward.1} parent=5 // pred_region
      %s6458 = ssub.s32 %s12, 2
      // Predicated region
      $region53: #{conv_lstm_forward.1} parent=51 // pred_check
        %p6459 = pneg %p172
      $region54: #{conv_lstm_forward.1} parent=51 // pred_check_branch
        %6461 = sbr.rel (%p6459) target = $region56
      $region55: #{conv_lstm_forward.1} parent=51 // pred_region
        %p6462 = scmp.lt.s32.totalorder %s18, 1
        %s6463 = scalar_select %p6462, %s18, 1
        %s6464 = smul.addr %s6463, 8
        %s6465 = scalar_lea.vmem %s6, %s6464
      $region56: #{conv_lstm_forward.1} parent=51 // pred_fallthru
        _
    $region52: #{conv_lstm_forward.1} parent=5 // pred_fallthru
      _
  $region6: #{conv_lstm_forward.1} parent=0 // loop_footer
    %s16 = sadd.s32 1, %s12
  $region7: #{conv_lstm_forward.1} parent=0 // loop_footer_branch
    %11 = sbr.rel target = $region3
  $region8: #{conv_lstm_forward.1} parent=0 // loop_exit
    _

</llo_original>
